<compile_context>
chip_gen: v7x
topology: tpu7x:2x2x1
jax: 0.10.0
libtpu: 0.0.40
codegen_flags: <defaults>
</compile_context>

<pallas_src>
import jax
import jax.numpy as jnp
from jax.experimental import pallas as pl
from jax.experimental.pallas import tpu as pltpu

EPS = 1e-5


# ----------------------------- in-kernel helpers -----------------------------

def _zero_halo_border(pad_ref, Hp, Wp):
    """Zero only the 1-wide halo border (4 thin strips), not the whole scratch."""
    Wpad = pad_ref.shape[1]
    c = pad_ref.shape[2]
    zrow = jnp.zeros((1, Wpad, c), pad_ref.dtype)
    pad_ref[0:1, :, :] = zrow
    pad_ref[Hp + 1:Hp + 2, :, :] = zrow
    zcol = jnp.zeros((Hp + 2, 1, c), pad_ref.dtype)
    pad_ref[:, 0:1, :] = zcol
    pad_ref[:, Wp + 1:Wp + 2, :] = zcol


def _conv3x3_taps(pad_ref, w_ref, Hp, Wp):
    """3x3 SAME conv as 9 per-tap MXU matmuls accumulated in f32.

    pad_ref: (Hp+2, Wpad, Cin) bf16 zero-halo scratch (interior already written)
    w_ref  : (9, Cin, Cout) bf16 per-tap weights
    returns: (Hp*Wp, Cout) f32
    """
    cin = pad_ref.shape[-1]
    cout = w_ref.shape[-1]
    acc = jnp.zeros((Hp * Wp, cout), jnp.float32)
    t = 0
    for dh in range(3):
        for dw in range(3):
            tap = pad_ref[dh:dh + Hp, dw:dw + Wp, :].reshape(Hp * Wp, cin)
            acc = acc + jnp.dot(tap, w_ref[t], preferred_element_type=jnp.float32)
            t += 1
    return acc


# --------------------------------- kernels -----------------------------------

def _pool_conv1_kernel(x_ref, w_ref, y_ref, st_ref, pad_ref):
    """MaxPool2d(2) + conv1 (pre-BN) + per-batch partial BN1 stats.

    x_ref  : (1, H, Wp, 2*Cin) bf16  (W-pairs folded onto the lane axis)
    w_ref  : (9, Cin, Cmid) bf16
    y_ref  : (1, Hp, Wp, Cmid) f32   conv1 pre-BN output
    st_ref : (1, 2, Cmid) f32        [sum; sum of squares] over this batch element
    pad_ref: (Hp+2, Wpad, Cin) bf16  zero-halo scratch
    """
    _, H, Wp, C2 = x_ref.shape
    Cin = C2 // 2
    Hp = H // 2
    Cmid = w_ref.shape[-1]

    # 2x2 max-pool from the single contiguous input, in bf16.
    xv = x_ref[0]                                      # (H, Wp, 2*Cin)
    mw = jnp.maximum(xv[:, :, :Cin], xv[:, :, Cin:])   # max over W pairs (lane slices)
    mh = mw.reshape(Hp, 2, Wp, Cin)                    # major-dim split of H
    pooled = jnp.maximum(mh[:, 0], mh[:, 1])           # (Hp, Wp, Cin) bf16

    _zero_halo_border(pad_ref, Hp, Wp)
    pad_ref[1:Hp + 1, 1:Wp + 1, :] = pooled

    acc = _conv3x3_taps(pad_ref, w_ref, Hp, Wp)        # (Hp*Wp, Cmid) f32
    y_ref[0] = acc.reshape(Hp, Wp, Cmid)
    s = jnp.sum(acc, axis=0, keepdims=True)
    q = jnp.sum(acc * acc, axis=0, keepdims=True)
    st_ref[0] = jnp.concatenate([s, q], axis=0)


def _bn1_conv2_kernel(h_ref, sc_ref, sh_ref, w_ref, y_ref, st_ref, pad_ref):
    """Folded BN1 (scale/shift) + ReLU + conv2 (pre-BN) + partial BN2 stats.

    h_ref  : (1, Hp, Wp, Cmid) f32   conv1 pre-BN output
    sc_ref : (1, Cmid) f32  scale = g1 * rsqrt(var1 + eps)
    sh_ref : (1, Cmid) f32  shift = b1 - mean1 * scale
    w_ref  : (9, Cmid, Cout) bf16
    y_ref  : (1, Hp, Wp, Cout) f32
    st_ref : (1, 2, Cout) f32
    pad_ref: (Hp+2, Wpad, Cmid) bf16
    """
    _, Hp, Wp, Cmid = h_ref.shape
    Cout = w_ref.shape[-1]

    sc = sc_ref[...].reshape(1, 1, Cmid)
    sh = sh_ref[...].reshape(1, 1, Cmid)
    h = jnp.maximum(h_ref[0] * sc + sh, 0.0)           # BN1 fold + ReLU, f32

    _zero_halo_border(pad_ref, Hp, Wp)
    pad_ref[1:Hp + 1, 1:Wp + 1, :] = h.astype(pad_ref.dtype)

    acc = _conv3x3_taps(pad_ref, w_ref, Hp, Wp)        # (Hp*Wp, Cout) f32
    y_ref[0] = acc.reshape(Hp, Wp, Cout)
    s = jnp.sum(acc, axis=0, keepdims=True)
    q = jnp.sum(acc * acc, axis=0, keepdims=True)
    st_ref[0] = jnp.concatenate([s, q], axis=0)


def _bn2_relu_kernel(y_ref, sc_ref, sh_ref, o_ref):
    """Lane-dense folded BN2 + ReLU.  y/o: (Hp, Wp*Cout) f32; sc/sh: (1, Wp*Cout)."""
    o_ref[...] = jnp.maximum(y_ref[...] * sc_ref[...] + sh_ref[...],
                             0.0).astype(o_ref.dtype)


# --------------------------------- wrapper ------------------------------------

def _round_up(x, m):
    return (x + m - 1) // m * m


def _vmem_limit(per_iter_bytes):
    # double-buffered tiles + headroom, capped well below v7x's 64 MiB physical VMEM
    return int(min(max(2 * per_iter_bytes + (4 << 20), 8 << 20), 48 << 20))


@jax.jit
def down_forward(x_nhwc, w1_hwio, g1, b1, w2_hwio, g2, b2):
    """x_nhwc: (N, H, W, Cin) f32.  Returns (N, H//2, W//2, Cout) f32."""
    N, H, W, Cin = x_nhwc.shape
    assert H % 2 == 0 and W % 2 == 0, "MaxPool2d(2) requires even H and W"
    Hp, Wp = H // 2, W // 2
    Cmid = w1_hwio.shape[-1]
    Cout = w2_hwio.shape[-1]
    cnt = float(N * Hp * Wp)

    # bf16 activation path; free metadata reshape folds each W-pair onto the lane axis.
    x_f = x_nhwc.astype(jnp.bfloat16).reshape(N, H, Wp, 2 * Cin)
    w1r = w1_hwio.reshape(9, Cin, Cmid).astype(jnp.bfloat16)   # (3,3,ci,co)->(9,ci,co)
    w2r = w2_hwio.reshape(9, Cmid, Cout).astype(jnp.bfloat16)

    Wpad1 = _round_up(Wp + 2, 8)
    Wpad2 = _round_up(Wp + 2, 8)

    # ---- Pass 1: maxpool + conv1, per-batch partial BN1 stats ----
    bytes1 = (H * Wp * 2 * Cin * 2 + 9 * Cin * Cmid * 2
              + 2 * Hp * Wp * Cmid * 4 + 2 * Cmid * 4
              + (Hp + 2) * Wpad1 * Cin * 2)
    conv1, st1 = pl.pallas_call(
        _pool_conv1_kernel,
        grid=(N,),
        in_specs=[
            pl.BlockSpec((1, H, Wp, 2 * Cin), lambda n: (n, 0, 0, 0)),
            pl.BlockSpec((9, Cin, Cmid), lambda n: (0, 0, 0)),
        ],
        out_specs=(
            pl.BlockSpec((1, Hp, Wp, Cmid), lambda n: (n, 0, 0, 0)),
            pl.BlockSpec((1, 2, Cmid), lambda n: (n, 0, 0)),
        ),
        out_shape=(
            jax.ShapeDtypeStruct((N, Hp, Wp, Cmid), jnp.float32),
            jax.ShapeDtypeStruct((N, 2, Cmid), jnp.float32),
        ),
        scratch_shapes=[pltpu.VMEM((Hp + 2, Wpad1, Cin), jnp.bfloat16)],
        compiler_params=pltpu.CompilerParams(
            dimension_semantics=("parallel",),
            vmem_limit_bytes=_vmem_limit(bytes1)),
    )(x_f, w1r)

    # Tiny cross-batch BN1 reduction + fold into per-channel scale/shift (plain JAX).
    mean1 = jnp.sum(st1[:, 0, :], axis=0) / cnt
    var1 = jnp.maximum(jnp.sum(st1[:, 1, :], axis=0) / cnt - mean1 * mean1, 0.0)
    scale1_v = g1 * jax.lax.rsqrt(var1 + EPS)
    shift1_v = b1 - mean1 * scale1_v
    scale1 = scale1_v.reshape(1, Cmid)
    shift1 = shift1_v.reshape(1, Cmid)

    # ---- Pass 2: BN1+ReLU + conv2, per-batch partial BN2 stats ----
    bytes2 = (2 * Hp * Wp * Cmid * 4 + 2 * Cmid * 4 + 9 * Cmid * Cout * 2
              + 2 * Hp * Wp * Cout * 4 + 2 * Cout * 4
              + (Hp + 2) * Wpad2 * Cmid * 2)
    conv2, st2 = pl.pallas_call(
        _bn1_conv2_kernel,
        grid=(N,),
        in_specs=[
            pl.BlockSpec((1, Hp, Wp, Cmid), lambda n: (n, 0, 0, 0)),
            pl.BlockSpec((1, Cmid), lambda n: (0, 0)),
            pl.BlockSpec((1, Cmid), lambda n: (0, 0)),
            pl.BlockSpec((9, Cmid, Cout), lambda n: (0, 0, 0)),
        ],
        out_specs=(
            pl.BlockSpec((1, Hp, Wp, Cout), lambda n: (n, 0, 0, 0)),
            pl.BlockSpec((1, 2, Cout), lambda n: (n, 0, 0)),
        ),
        out_shape=(
            jax.ShapeDtypeStruct((N, Hp, Wp, Cout), jnp.float32),
            jax.ShapeDtypeStruct((N, 2, Cout), jnp.float32),
        ),
        scratch_shapes=[pltpu.VMEM((Hp + 2, Wpad2, Cmid), jnp.bfloat16)],
        compiler_params=pltpu.CompilerParams(
            dimension_semantics=("parallel",),
            vmem_limit_bytes=_vmem_limit(bytes2)),
    )(conv1, scale1, shift1, w2r)

    mean2 = jnp.sum(st2[:, 0, :], axis=0) / cnt
    var2 = jnp.maximum(jnp.sum(st2[:, 1, :], axis=0) / cnt - mean2 * mean2, 0.0)
    scale2_v = g2 * jax.lax.rsqrt(var2 + EPS)
    shift2_v = b2 - mean2 * scale2_v

    # ---- Pass 3: lane-dense folded BN2 + ReLU ----
    y2d = conv2.reshape(N * Hp, Wp * Cout)                 # metadata reshape (HBM)
    sc2 = jnp.tile(scale2_v, Wp).reshape(1, Wp * Cout)     # channel cycles along lanes
    sh2 = jnp.tile(shift2_v, Wp).reshape(1, Wp * Cout)

    bytes3 = 2 * 2 * Hp * Wp * Cout * 4 + 2 * Wp * Cout * 4
    out2d = pl.pallas_call(
        _bn2_relu_kernel,
        grid=(N,),
        in_specs=[
            pl.BlockSpec((Hp, Wp * Cout), lambda n: (n, 0)),
            pl.BlockSpec((1, Wp * Cout), lambda n: (0, 0)),
            pl.BlockSpec((1, Wp * Cout), lambda n: (0, 0)),
        ],
        out_specs=pl.BlockSpec((Hp, Wp * Cout), lambda n: (n, 0)),
        out_shape=jax.ShapeDtypeStruct((N * Hp, Wp * Cout), jnp.float32),
        compiler_params=pltpu.CompilerParams(
            dimension_semantics=("parallel",),
            vmem_limit_bytes=_vmem_limit(bytes3)),
    )(y2d, sc2, sh2)

    return out2d.reshape(N, Hp, Wp, Cout)


# --------------------------------- reference ----------------------------------

def _ref_down(x_nhwc, w1, g1, b1, w2, g2, b2):
    """Pure-JAX NHWC reference mirroring the kernel numerics:
    pool in bf16, convs with bf16 operands + f32 accumulation, BN/ReLU in f32."""
    N, H, W, Cin = x_nhwc.shape
    xb = x_nhwc.astype(jnp.bfloat16)
    pooled = xb.reshape(N, H // 2, 2, W // 2, 2, Cin).max(axis=(2, 4))

    def conv_bn_relu(h_bf16, w, g, b):
        c = jax.lax.conv_general_dilated(
            h_bf16, w.astype(jnp.bfloat16),
            window_strides=(1, 1), padding="SAME",
            dimension_numbers=("NHWC", "HWIO", "NHWC"),
            preferred_element_type=jnp.float32)
        m = c.mean(axis=(0, 1, 2))
        v = ((c - m) ** 2).mean(axis=(0, 1, 2))
        scale = g * jax.lax.rsqrt(v + EPS)
        shift = b - m * scale
        return jnp.maximum(c * scale + shift, 0.0)

    h1 = conv_bn_relu(pooled, w1, g1, b1)
    return conv_bn_relu(h1.astype(jnp.bfloat16), w2, g2, b2)


if __name__ == "__main__":
    # Down(in_channels=4, out_channels=8), input NCHW (2, 4, 16, 16) like PyTorch.
    N, Cin, H, W = 2, 4, 16, 16
    Cout = 8
    Cmid = Cout  # DoubleConv default: mid_channels = out_channels

    key = jax.random.PRNGKey(0)
    kx, kw1, kw2 = jax.random.split(key, 3)

    x_nchw = jax.random.normal(kx, (N, Cin, H, W), jnp.float32)
    x_nhwc = jnp.transpose(x_nchw, (0, 2, 3, 1))  # NCHW -> NHWC for the kernel

    # Conv2d has bias=False; BN init: gamma=1, beta=0.
    w1 = 0.1 * jax.random.normal(kw1, (3, 3, Cin, Cmid), jnp.float32)   # HWIO
    w2 = 0.1 * jax.random.normal(kw2, (3, 3, Cmid, Cout), jnp.float32)  # HWIO
    g1 = jnp.ones((Cmid,), jnp.float32)
    b1 = jnp.zeros((Cmid,), jnp.float32)
    g2 = jnp.ones((Cout,), jnp.float32)
    b2 = jnp.zeros((Cout,), jnp.float32)

    out = jax.block_until_ready(down_forward(x_nhwc, w1, g1, b1, w2, g2, b2))
    ref = jax.block_until_ready(_ref_down(x_nhwc, w1, g1, b1, w2, g2, b2))

    assert out.shape == (N, H // 2, W // 2, Cout), out.shape
    max_err = float(jnp.abs(out - ref).max())
    assert max_err < 2e-2, f"max abs error {max_err}"

    print("KERNEL_OK")
</pallas_src>

<mosaic_0001>
module attributes {stable_mosaic.version = 11 : i64} {
  func.func @_pool_conv1_kernel(%arg0: i32, %arg1: memref<1x16x8x8xbf16, #tpu.memory_space<vmem>>, %arg2: memref<9x4x8xbf16, #tpu.memory_space<vmem>>, %arg3: memref<1x8x8x8xf32, #tpu.memory_space<vmem>>, %arg4: memref<1x2x8xf32, #tpu.memory_space<vmem>>, %arg5: memref<10x16x4xbf16, #tpu.memory_space<vmem>>) attributes {dimension_semantics = [#tpu.dimension_semantics<parallel>], iteration_bounds = array<i64: 2>, scalar_prefetch = 0 : i64, scratch_operands = 1 : i64, tpu.core_type = #tpu.core_type<tc>, window_params = [{transform_indices = @transform_0, window_bounds = array<i64: 1, 16, 8, 8>}, {pipeline_mode = #tpu.pipeline_mode<synchronous>, transform_indices = @transform_1, window_bounds = array<i64: 9, 4, 8>}, {transform_indices = @transform_2, window_bounds = array<i64: 1, 8, 8, 8>}, {transform_indices = @transform_3, window_bounds = array<i64: 1, 2, 8>}]} {
    %c0 = arith.constant 0 : index
    %c0_0 = arith.constant 0 : index
    %c0_1 = arith.constant 0 : index
    %c0_2 = arith.constant 0 : index
    %0 = vector.load %arg1[%c0, %c0_0, %c0_1, %c0_2] : memref<1x16x8x8xbf16, #tpu.memory_space<vmem>>, vector<1x16x8x8xbf16>
    %1 = vector.shape_cast %0 : vector<1x16x8x8xbf16> to vector<16x8x8xbf16>
    %2 = vector.extract_strided_slice %1 {offsets = [0, 0, 0], sizes = [16, 8, 4], strides = [1, 1, 1]} : vector<16x8x8xbf16> to vector<16x8x4xbf16>
    %3 = vector.extract_strided_slice %1 {offsets = [0, 0, 4], sizes = [16, 8, 4], strides = [1, 1, 1]} : vector<16x8x8xbf16> to vector<16x8x4xbf16>
    %4 = arith.maximumf %2, %3 : vector<16x8x4xbf16>
    %5 = vector.shape_cast %4 : vector<16x8x4xbf16> to vector<8x2x8x4xbf16>
    %6 = vector.extract_strided_slice %5 {offsets = [0, 0, 0, 0], sizes = [8, 1, 8, 4], strides = [1, 1, 1, 1]} : vector<8x2x8x4xbf16> to vector<8x1x8x4xbf16>
    %7 = vector.shape_cast %6 : vector<8x1x8x4xbf16> to vector<8x8x4xbf16>
    %8 = vector.extract_strided_slice %5 {offsets = [0, 1, 0, 0], sizes = [8, 1, 8, 4], strides = [1, 1, 1, 1]} : vector<8x2x8x4xbf16> to vector<8x1x8x4xbf16>
    %9 = vector.shape_cast %8 : vector<8x1x8x4xbf16> to vector<8x8x4xbf16>
    %10 = arith.maximumf %7, %9 : vector<8x8x4xbf16>
    %cst = arith.constant 0.000000e+00 : bf16
    %11 = vector.broadcast %cst : bf16 to vector<1x16x4xbf16>
    %c0_3 = arith.constant 0 : index
    %c0_4 = arith.constant 0 : index
    %c0_5 = arith.constant 0 : index
    %12 = vector.load %arg5[%c0_3, %c0_4, %c0_5] : memref<10x16x4xbf16, #tpu.memory_space<vmem>>, vector<1x16x4xbf16>
    tpu.vector_store %arg5[%c0_3, %c0_4, %c0_5], %11 {strides = array<i32>} : memref<10x16x4xbf16, #tpu.memory_space<vmem>>, vector<1x16x4xbf16>,
    %c9 = arith.constant 9 : index
    %c0_6 = arith.constant 0 : index
    %c0_7 = arith.constant 0 : index
    %13 = vector.load %arg5[%c9, %c0_6, %c0_7] : memref<10x16x4xbf16, #tpu.memory_space<vmem>>, vector<1x16x4xbf16>
    tpu.vector_store %arg5[%c9, %c0_6, %c0_7], %11 {strides = array<i32>} : memref<10x16x4xbf16, #tpu.memory_space<vmem>>, vector<1x16x4xbf16>,
    %cst_8 = arith.constant 0.000000e+00 : bf16
    %14 = vector.broadcast %cst_8 : bf16 to vector<10x1x4xbf16>
    %c0_9 = arith.constant 0 : index
    %c0_10 = arith.constant 0 : index
    %c0_11 = arith.constant 0 : index
    %15 = vector.load %arg5[%c0_9, %c0_10, %c0_11] : memref<10x16x4xbf16, #tpu.memory_space<vmem>>, vector<10x1x4xbf16>
    tpu.vector_store %arg5[%c0_9, %c0_10, %c0_11], %14 {strides = array<i32>} : memref<10x16x4xbf16, #tpu.memory_space<vmem>>, vector<10x1x4xbf16>,
    %c0_12 = arith.constant 0 : index
    %c9_13 = arith.constant 9 : index
    %c0_14 = arith.constant 0 : index
    %16 = vector.load %arg5[%c0_12, %c9_13, %c0_14] : memref<10x16x4xbf16, #tpu.memory_space<vmem>>, vector<10x1x4xbf16>
    tpu.vector_store %arg5[%c0_12, %c9_13, %c0_14], %14 {strides = array<i32>} : memref<10x16x4xbf16, #tpu.memory_space<vmem>>, vector<10x1x4xbf16>,
    %c1 = arith.constant 1 : index
    %c1_15 = arith.constant 1 : index
    %c0_16 = arith.constant 0 : index
    %17 = vector.load %arg5[%c1, %c1_15, %c0_16] : memref<10x16x4xbf16, #tpu.memory_space<vmem>>, vector<8x8x4xbf16>
    tpu.vector_store %arg5[%c1, %c1_15, %c0_16], %10 {strides = array<i32>} : memref<10x16x4xbf16, #tpu.memory_space<vmem>>, vector<8x8x4xbf16>,
    %cst_17 = arith.constant 0.000000e+00 : f32
    %18 = vector.broadcast %cst_17 : f32 to vector<64x8xf32>
    %c0_18 = arith.constant 0 : index
    %c0_19 = arith.constant 0 : index
    %c0_20 = arith.constant 0 : index
    %19 = vector.load %arg5[%c0_18, %c0_19, %c0_20] : memref<10x16x4xbf16, #tpu.memory_space<vmem>>, vector<8x8x4xbf16>
    %20 = vector.shape_cast %19 : vector<8x8x4xbf16> to vector<64x4xbf16>
    %c0_21 = arith.constant 0 : index
    %c0_22 = arith.constant 0 : index
    %c0_23 = arith.constant 0 : index
    %21 = vector.load %arg2[%c0_21, %c0_22, %c0_23] : memref<9x4x8xbf16, #tpu.memory_space<vmem>>, vector<1x4x8xbf16>
    %22 = vector.shape_cast %21 : vector<1x4x8xbf16> to vector<4x8xbf16>
    %cst_24 = arith.constant dense<0.000000e+00> : vector<64x8xf32>
    %23 = tpu.matmul %20, %22, %cst_24 {dimension_numbers = #tpu.dot_dimension_numbers<[1], [0], [0], [1], [0, 0, 1, 1], [], []>} : vector<64x4xbf16>, vector<4x8xbf16>, vector<64x8xf32> -> vector<64x8xf32>
    %24 = arith.addf %18, %23 : vector<64x8xf32>
    %c0_25 = arith.constant 0 : index
    %c1_26 = arith.constant 1 : index
    %c0_27 = arith.constant 0 : index
    %25 = vector.load %arg5[%c0_25, %c1_26, %c0_27] : memref<10x16x4xbf16, #tpu.memory_space<vmem>>, vector<8x8x4xbf16>
    %26 = vector.shape_cast %25 : vector<8x8x4xbf16> to vector<64x4xbf16>
    %c1_28 = arith.constant 1 : index
    %c0_29 = arith.constant 0 : index
    %c0_30 = arith.constant 0 : index
    %27 = vector.load %arg2[%c1_28, %c0_29, %c0_30] : memref<9x4x8xbf16, #tpu.memory_space<vmem>>, vector<1x4x8xbf16>
    %28 = vector.shape_cast %27 : vector<1x4x8xbf16> to vector<4x8xbf16>
    %cst_31 = arith.constant dense<0.000000e+00> : vector<64x8xf32>
    %29 = tpu.matmul %26, %28, %cst_31 {dimension_numbers = #tpu.dot_dimension_numbers<[1], [0], [0], [1], [0, 0, 1, 1], [], []>} : vector<64x4xbf16>, vector<4x8xbf16>, vector<64x8xf32> -> vector<64x8xf32>
    %30 = arith.addf %24, %29 : vector<64x8xf32>
    %c0_32 = arith.constant 0 : index
    %c2 = arith.constant 2 : index
    %c0_33 = arith.constant 0 : index
    %31 = vector.load %arg5[%c0_32, %c2, %c0_33] : memref<10x16x4xbf16, #tpu.memory_space<vmem>>, vector<8x8x4xbf16>
    %32 = vector.shape_cast %31 : vector<8x8x4xbf16> to vector<64x4xbf16>
    %c2_34 = arith.constant 2 : index
    %c0_35 = arith.constant 0 : index
    %c0_36 = arith.constant 0 : index
    %33 = vector.load %arg2[%c2_34, %c0_35, %c0_36] : memref<9x4x8xbf16, #tpu.memory_space<vmem>>, vector<1x4x8xbf16>
    %34 = vector.shape_cast %33 : vector<1x4x8xbf16> to vector<4x8xbf16>
    %cst_37 = arith.constant dense<0.000000e+00> : vector<64x8xf32>
    %35 = tpu.matmul %32, %34, %cst_37 {dimension_numbers = #tpu.dot_dimension_numbers<[1], [0], [0], [1], [0, 0, 1, 1], [], []>} : vector<64x4xbf16>, vector<4x8xbf16>, vector<64x8xf32> -> vector<64x8xf32>
    %36 = arith.addf %30, %35 : vector<64x8xf32>
    %c1_38 = arith.constant 1 : index
    %c0_39 = arith.constant 0 : index
    %c0_40 = arith.constant 0 : index
    %37 = vector.load %arg5[%c1_38, %c0_39, %c0_40] : memref<10x16x4xbf16, #tpu.memory_space<vmem>>, vector<8x8x4xbf16>
    %38 = vector.shape_cast %37 : vector<8x8x4xbf16> to vector<64x4xbf16>
    %c3 = arith.constant 3 : index
    %c0_41 = arith.constant 0 : index
    %c0_42 = arith.constant 0 : index
    %39 = vector.load %arg2[%c3, %c0_41, %c0_42] : memref<9x4x8xbf16, #tpu.memory_space<vmem>>, vector<1x4x8xbf16>
    %40 = vector.shape_cast %39 : vector<1x4x8xbf16> to vector<4x8xbf16>
    %cst_43 = arith.constant dense<0.000000e+00> : vector<64x8xf32>
    %41 = tpu.matmul %38, %40, %cst_43 {dimension_numbers = #tpu.dot_dimension_numbers<[1], [0], [0], [1], [0, 0, 1, 1], [], []>} : vector<64x4xbf16>, vector<4x8xbf16>, vector<64x8xf32> -> vector<64x8xf32>
    %42 = arith.addf %36, %41 : vector<64x8xf32>
    %c1_44 = arith.constant 1 : index
    %c1_45 = arith.constant 1 : index
    %c0_46 = arith.constant 0 : index
    %43 = vector.load %arg5[%c1_44, %c1_45, %c0_46] : memref<10x16x4xbf16, #tpu.memory_space<vmem>>, vector<8x8x4xbf16>
    %44 = vector.shape_cast %43 : vector<8x8x4xbf16> to vector<64x4xbf16>
    %c4 = arith.constant 4 : index
    %c0_47 = arith.constant 0 : index
    %c0_48 = arith.constant 0 : index
    %45 = vector.load %arg2[%c4, %c0_47, %c0_48] : memref<9x4x8xbf16, #tpu.memory_space<vmem>>, vector<1x4x8xbf16>
    %46 = vector.shape_cast %45 : vector<1x4x8xbf16> to vector<4x8xbf16>
    %cst_49 = arith.constant dense<0.000000e+00> : vector<64x8xf32>
    %47 = tpu.matmul %44, %46, %cst_49 {dimension_numbers = #tpu.dot_dimension_numbers<[1], [0], [0], [1], [0, 0, 1, 1], [], []>} : vector<64x4xbf16>, vector<4x8xbf16>, vector<64x8xf32> -> vector<64x8xf32>
    %48 = arith.addf %42, %47 : vector<64x8xf32>
    %c1_50 = arith.constant 1 : index
    %c2_51 = arith.constant 2 : index
    %c0_52 = arith.constant 0 : index
    %49 = vector.load %arg5[%c1_50, %c2_51, %c0_52] : memref<10x16x4xbf16, #tpu.memory_space<vmem>>, vector<8x8x4xbf16>
    %50 = vector.shape_cast %49 : vector<8x8x4xbf16> to vector<64x4xbf16>
    %c5 = arith.constant 5 : index
    %c0_53 = arith.constant 0 : index
    %c0_54 = arith.constant 0 : index
    %51 = vector.load %arg2[%c5, %c0_53, %c0_54] : memref<9x4x8xbf16, #tpu.memory_space<vmem>>, vector<1x4x8xbf16>
    %52 = vector.shape_cast %51 : vector<1x4x8xbf16> to vector<4x8xbf16>
    %cst_55 = arith.constant dense<0.000000e+00> : vector<64x8xf32>
    %53 = tpu.matmul %50, %52, %cst_55 {dimension_numbers = #tpu.dot_dimension_numbers<[1], [0], [0], [1], [0, 0, 1, 1], [], []>} : vector<64x4xbf16>, vector<4x8xbf16>, vector<64x8xf32> -> vector<64x8xf32>
    %54 = arith.addf %48, %53 : vector<64x8xf32>
    %c2_56 = arith.constant 2 : index
    %c0_57 = arith.constant 0 : index
    %c0_58 = arith.constant 0 : index
    %55 = vector.load %arg5[%c2_56, %c0_57, %c0_58] : memref<10x16x4xbf16, #tpu.memory_space<vmem>>, vector<8x8x4xbf16>
    %56 = vector.shape_cast %55 : vector<8x8x4xbf16> to vector<64x4xbf16>
    %c6 = arith.constant 6 : index
    %c0_59 = arith.constant 0 : index
    %c0_60 = arith.constant 0 : index
    %57 = vector.load %arg2[%c6, %c0_59, %c0_60] : memref<9x4x8xbf16, #tpu.memory_space<vmem>>, vector<1x4x8xbf16>
    %58 = vector.shape_cast %57 : vector<1x4x8xbf16> to vector<4x8xbf16>
    %cst_61 = arith.constant dense<0.000000e+00> : vector<64x8xf32>
    %59 = tpu.matmul %56, %58, %cst_61 {dimension_numbers = #tpu.dot_dimension_numbers<[1], [0], [0], [1], [0, 0, 1, 1], [], []>} : vector<64x4xbf16>, vector<4x8xbf16>, vector<64x8xf32> -> vector<64x8xf32>
    %60 = arith.addf %54, %59 : vector<64x8xf32>
    %c2_62 = arith.constant 2 : index
    %c1_63 = arith.constant 1 : index
    %c0_64 = arith.constant 0 : index
    %61 = vector.load %arg5[%c2_62, %c1_63, %c0_64] : memref<10x16x4xbf16, #tpu.memory_space<vmem>>, vector<8x8x4xbf16>
    %62 = vector.shape_cast %61 : vector<8x8x4xbf16> to vector<64x4xbf16>
    %c7 = arith.constant 7 : index
    %c0_65 = arith.constant 0 : index
    %c0_66 = arith.constant 0 : index
    %63 = vector.load %arg2[%c7, %c0_65, %c0_66] : memref<9x4x8xbf16, #tpu.memory_space<vmem>>, vector<1x4x8xbf16>
    %64 = vector.shape_cast %63 : vector<1x4x8xbf16> to vector<4x8xbf16>
    %cst_67 = arith.constant dense<0.000000e+00> : vector<64x8xf32>
    %65 = tpu.matmul %62, %64, %cst_67 {dimension_numbers = #tpu.dot_dimension_numbers<[1], [0], [0], [1], [0, 0, 1, 1], [], []>} : vector<64x4xbf16>, vector<4x8xbf16>, vector<64x8xf32> -> vector<64x8xf32>
    %66 = arith.addf %60, %65 : vector<64x8xf32>
    %c2_68 = arith.constant 2 : index
    %c2_69 = arith.constant 2 : index
    %c0_70 = arith.constant 0 : index
    %67 = vector.load %arg5[%c2_68, %c2_69, %c0_70] : memref<10x16x4xbf16, #tpu.memory_space<vmem>>, vector<8x8x4xbf16>
    %68 = vector.shape_cast %67 : vector<8x8x4xbf16> to vector<64x4xbf16>
    %c8 = arith.constant 8 : index
    %c0_71 = arith.constant 0 : index
    %c0_72 = arith.constant 0 : index
    %69 = vector.load %arg2[%c8, %c0_71, %c0_72] : memref<9x4x8xbf16, #tpu.memory_space<vmem>>, vector<1x4x8xbf16>
    %70 = vector.shape_cast %69 : vector<1x4x8xbf16> to vector<4x8xbf16>
    %cst_73 = arith.constant dense<0.000000e+00> : vector<64x8xf32>
    %71 = tpu.matmul %68, %70, %cst_73 {dimension_numbers = #tpu.dot_dimension_numbers<[1], [0], [0], [1], [0, 0, 1, 1], [], []>} : vector<64x4xbf16>, vector<4x8xbf16>, vector<64x8xf32> -> vector<64x8xf32>
    %72 = arith.addf %66, %71 : vector<64x8xf32>
    %73 = vector.shape_cast %72 : vector<64x8xf32> to vector<8x8x8xf32>
    %c0_74 = arith.constant 0 : index
    %c0_75 = arith.constant 0 : index
    %c0_76 = arith.constant 0 : index
    %c0_77 = arith.constant 0 : index
    %74 = vector.load %arg3[%c0_74, %c0_75, %c0_76, %c0_77] : memref<1x8x8x8xf32, #tpu.memory_space<vmem>>, vector<1x8x8x8xf32>
    %75 = vector.shape_cast %74 : vector<1x8x8x8xf32> to vector<8x8x8xf32>
    %76 = vector.shape_cast %73 : vector<8x8x8xf32> to vector<1x8x8x8xf32>
    tpu.vector_store %arg3[%c0_74, %c0_75, %c0_76, %c0_77], %76 {strides = array<i32>} : memref<1x8x8x8xf32, #tpu.memory_space<vmem>>, vector<1x8x8x8xf32>,
    %cst_78 = arith.constant dense<0.000000e+00> : vector<8xf32>
    %77 = vector.multi_reduction <add>, %72, %cst_78 [0] : vector<64x8xf32> to vector<8xf32>
    %78 = vector.shape_cast %77 : vector<8xf32> to vector<1x8xf32>
    %79 = arith.mulf %72, %72 : vector<64x8xf32>
    %cst_79 = arith.constant dense<0.000000e+00> : vector<8xf32>
    %80 = vector.multi_reduction <add>, %79, %cst_79 [0] : vector<64x8xf32> to vector<8xf32>
    %81 = vector.shape_cast %80 : vector<8xf32> to vector<1x8xf32>
    %82 = tpu.concatenate %78, %81 in 0 : vector<1x8xf32>, vector<1x8xf32> -> vector<2x8xf32>
    %c0_80 = arith.constant 0 : index
    %c0_81 = arith.constant 0 : index
    %c0_82 = arith.constant 0 : index
    %83 = vector.load %arg4[%c0_80, %c0_81, %c0_82] : memref<1x2x8xf32, #tpu.memory_space<vmem>>, vector<1x2x8xf32>
    %84 = vector.shape_cast %83 : vector<1x2x8xf32> to vector<2x8xf32>
    %85 = vector.shape_cast %82 : vector<2x8xf32> to vector<1x2x8xf32>
    tpu.vector_store %arg4[%c0_80, %c0_81, %c0_82], %85 {strides = array<i32>} : memref<1x2x8xf32, #tpu.memory_space<vmem>>, vector<1x2x8xf32>,
    return
  }
  func.func @transform_0(%arg0: i32) -> (i32, i32, i32, i32) {
    %c0_i32 = arith.constant 0 : i32
    %c0_i32_0 = arith.constant 0 : i32
    %c0_i32_1 = arith.constant 0 : i32
    %c0_i32_2 = arith.constant 0 : i32
    return %arg0, %c0_i32, %c0_i32_0, %c0_i32_1 : i32, i32, i32, i32
  }
  func.func @transform_1(%arg0: i32) -> (i32, i32, i32) {
    %c0_i32 = arith.constant 0 : i32
    %c0_i32_0 = arith.constant 0 : i32
    %c0_i32_1 = arith.constant 0 : i32
    %c0_i32_2 = arith.constant 0 : i32
    return %c0_i32, %c0_i32_0, %c0_i32_1 : i32, i32, i32
  }
  func.func @transform_2(%arg0: i32) -> (i32, i32, i32, i32) {
    %c0_i32 = arith.constant 0 : i32
    %c0_i32_0 = arith.constant 0 : i32
    %c0_i32_1 = arith.constant 0 : i32
    %c0_i32_2 = arith.constant 0 : i32
    return %arg0, %c0_i32, %c0_i32_0, %c0_i32_1 : i32, i32, i32, i32
  }
  func.func @transform_3(%arg0: i32) -> (i32, i32, i32) {
    %c0_i32 = arith.constant 0 : i32
    %c0_i32_0 = arith.constant 0 : i32
    %c0_i32_1 = arith.constant 0 : i32
    return %arg0, %c0_i32, %c0_i32_0 : i32, i32, i32
  }
}

module attributes {stable_mosaic.version = 11 : i64} {
  func.func @_bn1_conv2_kernel(%arg0: i32, %arg1: memref<1x8x8x8xf32, #tpu.memory_space<vmem>>, %arg2: memref<1x8xf32, #tpu.memory_space<vmem>>, %arg3: memref<1x8xf32, #tpu.memory_space<vmem>>, %arg4: memref<9x8x8xbf16, #tpu.memory_space<vmem>>, %arg5: memref<1x8x8x8xf32, #tpu.memory_space<vmem>>, %arg6: memref<1x2x8xf32, #tpu.memory_space<vmem>>, %arg7: memref<10x16x8xbf16, #tpu.memory_space<vmem>>) attributes {dimension_semantics = [#tpu.dimension_semantics<parallel>], iteration_bounds = array<i64: 2>, scalar_prefetch = 0 : i64, scratch_operands = 1 : i64, tpu.core_type = #tpu.core_type<tc>, window_params = [{transform_indices = @transform_0, window_bounds = array<i64: 1, 8, 8, 8>}, {pipeline_mode = #tpu.pipeline_mode<synchronous>, transform_indices = @transform_1, window_bounds = array<i64: 1, 8>}, {pipeline_mode = #tpu.pipeline_mode<synchronous>, transform_indices = @transform_2, window_bounds = array<i64: 1, 8>}, {pipeline_mode = #tpu.pipeline_mode<synchronous>, transform_indices = @transform_3, window_bounds = array<i64: 9, 8, 8>}, {transform_indices = @transform_4, window_bounds = array<i64: 1, 8, 8, 8>}, {transform_indices = @transform_5, window_bounds = array<i64: 1, 2, 8>}]} {
    %c0 = arith.constant 0 : index
    %c0_0 = arith.constant 0 : index
    %0 = vector.load %arg2[%c0, %c0_0] : memref<1x8xf32, #tpu.memory_space<vmem>>, vector<1x8xf32>
    %1 = vector.shape_cast %0 : vector<1x8xf32> to vector<1x1x8xf32>
    %c0_1 = arith.constant 0 : index
    %c0_2 = arith.constant 0 : index
    %2 = vector.load %arg3[%c0_1, %c0_2] : memref<1x8xf32, #tpu.memory_space<vmem>>, vector<1x8xf32>
    %3 = vector.shape_cast %2 : vector<1x8xf32> to vector<1x1x8xf32>
    %c0_3 = arith.constant 0 : index
    %c0_4 = arith.constant 0 : index
    %c0_5 = arith.constant 0 : index
    %c0_6 = arith.constant 0 : index
    %4 = vector.load %arg1[%c0_3, %c0_4, %c0_5, %c0_6] : memref<1x8x8x8xf32, #tpu.memory_space<vmem>>, vector<1x8x8x8xf32>
    %5 = vector.shape_cast %4 : vector<1x8x8x8xf32> to vector<8x8x8xf32>
    %6 = vector.broadcast %1 : vector<1x1x8xf32> to vector<8x8x8xf32>
    %7 = arith.mulf %5, %6 : vector<8x8x8xf32>
    %8 = vector.broadcast %3 : vector<1x1x8xf32> to vector<8x8x8xf32>
    %9 = arith.addf %7, %8 : vector<8x8x8xf32>
    %cst = arith.constant 0.000000e+00 : f32
    %10 = vector.broadcast %cst : f32 to vector<8x8x8xf32>
    %11 = arith.maximumf %9, %10 : vector<8x8x8xf32>
    %cst_7 = arith.constant 0.000000e+00 : bf16
    %12 = vector.broadcast %cst_7 : bf16 to vector<1x16x8xbf16>
    %c0_8 = arith.constant 0 : index
    %c0_9 = arith.constant 0 : index
    %c0_10 = arith.constant 0 : index
    %13 = vector.load %arg7[%c0_8, %c0_9, %c0_10] : memref<10x16x8xbf16, #tpu.memory_space<vmem>>, vector<1x16x8xbf16>
    tpu.vector_store %arg7[%c0_8, %c0_9, %c0_10], %12 {strides = array<i32>} : memref<10x16x8xbf16, #tpu.memory_space<vmem>>, vector<1x16x8xbf16>,
    %c9 = arith.constant 9 : index
    %c0_11 = arith.constant 0 : index
    %c0_12 = arith.constant 0 : index
    %14 = vector.load %arg7[%c9, %c0_11, %c0_12] : memref<10x16x8xbf16, #tpu.memory_space<vmem>>, vector<1x16x8xbf16>
    tpu.vector_store %arg7[%c9, %c0_11, %c0_12], %12 {strides = array<i32>} : memref<10x16x8xbf16, #tpu.memory_space<vmem>>, vector<1x16x8xbf16>,
    %cst_13 = arith.constant 0.000000e+00 : bf16
    %15 = vector.broadcast %cst_13 : bf16 to vector<10x1x8xbf16>
    %c0_14 = arith.constant 0 : index
    %c0_15 = arith.constant 0 : index
    %c0_16 = arith.constant 0 : index
    %16 = vector.load %arg7[%c0_14, %c0_15, %c0_16] : memref<10x16x8xbf16, #tpu.memory_space<vmem>>, vector<10x1x8xbf16>
    tpu.vector_store %arg7[%c0_14, %c0_15, %c0_16], %15 {strides = array<i32>} : memref<10x16x8xbf16, #tpu.memory_space<vmem>>, vector<10x1x8xbf16>,
    %c0_17 = arith.constant 0 : index
    %c9_18 = arith.constant 9 : index
    %c0_19 = arith.constant 0 : index
    %17 = vector.load %arg7[%c0_17, %c9_18, %c0_19] : memref<10x16x8xbf16, #tpu.memory_space<vmem>>, vector<10x1x8xbf16>
    tpu.vector_store %arg7[%c0_17, %c9_18, %c0_19], %15 {strides = array<i32>} : memref<10x16x8xbf16, #tpu.memory_space<vmem>>, vector<10x1x8xbf16>,
    %18 = arith.truncf %11 : vector<8x8x8xf32> to vector<8x8x8xbf16>
    %c1 = arith.constant 1 : index
    %c1_20 = arith.constant 1 : index
    %c0_21 = arith.constant 0 : index
    %19 = vector.load %arg7[%c1, %c1_20, %c0_21] : memref<10x16x8xbf16, #tpu.memory_space<vmem>>, vector<8x8x8xbf16>
    tpu.vector_store %arg7[%c1, %c1_20, %c0_21], %18 {strides = array<i32>} : memref<10x16x8xbf16, #tpu.memory_space<vmem>>, vector<8x8x8xbf16>,
    %cst_22 = arith.constant 0.000000e+00 : f32
    %20 = vector.broadcast %cst_22 : f32 to vector<64x8xf32>
    %c0_23 = arith.constant 0 : index
    %c0_24 = arith.constant 0 : index
    %c0_25 = arith.constant 0 : index
    %21 = vector.load %arg7[%c0_23, %c0_24, %c0_25] : memref<10x16x8xbf16, #tpu.memory_space<vmem>>, vector<8x8x8xbf16>
    %22 = vector.shape_cast %21 : vector<8x8x8xbf16> to vector<64x8xbf16>
    %c0_26 = arith.constant 0 : index
    %c0_27 = arith.constant 0 : index
    %c0_28 = arith.constant 0 : index
    %23 = vector.load %arg4[%c0_26, %c0_27, %c0_28] : memref<9x8x8xbf16, #tpu.memory_space<vmem>>, vector<1x8x8xbf16>
    %24 = vector.shape_cast %23 : vector<1x8x8xbf16> to vector<8x8xbf16>
    %cst_29 = arith.constant dense<0.000000e+00> : vector<64x8xf32>
    %25 = tpu.matmul %22, %24, %cst_29 {dimension_numbers = #tpu.dot_dimension_numbers<[1], [0], [0], [1], [0, 0, 1, 1], [], []>} : vector<64x8xbf16>, vector<8x8xbf16>, vector<64x8xf32> -> vector<64x8xf32>
    %26 = arith.addf %20, %25 : vector<64x8xf32>
    %c0_30 = arith.constant 0 : index
    %c1_31 = arith.constant 1 : index
    %c0_32 = arith.constant 0 : index
    %27 = vector.load %arg7[%c0_30, %c1_31, %c0_32] : memref<10x16x8xbf16, #tpu.memory_space<vmem>>, vector<8x8x8xbf16>
    %28 = vector.shape_cast %27 : vector<8x8x8xbf16> to vector<64x8xbf16>
    %c1_33 = arith.constant 1 : index
    %c0_34 = arith.constant 0 : index
    %c0_35 = arith.constant 0 : index
    %29 = vector.load %arg4[%c1_33, %c0_34, %c0_35] : memref<9x8x8xbf16, #tpu.memory_space<vmem>>, vector<1x8x8xbf16>
    %30 = vector.shape_cast %29 : vector<1x8x8xbf16> to vector<8x8xbf16>
    %cst_36 = arith.constant dense<0.000000e+00> : vector<64x8xf32>
    %31 = tpu.matmul %28, %30, %cst_36 {dimension_numbers = #tpu.dot_dimension_numbers<[1], [0], [0], [1], [0, 0, 1, 1], [], []>} : vector<64x8xbf16>, vector<8x8xbf16>, vector<64x8xf32> -> vector<64x8xf32>
    %32 = arith.addf %26, %31 : vector<64x8xf32>
    %c0_37 = arith.constant 0 : index
    %c2 = arith.constant 2 : index
    %c0_38 = arith.constant 0 : index
    %33 = vector.load %arg7[%c0_37, %c2, %c0_38] : memref<10x16x8xbf16, #tpu.memory_space<vmem>>, vector<8x8x8xbf16>
    %34 = vector.shape_cast %33 : vector<8x8x8xbf16> to vector<64x8xbf16>
    %c2_39 = arith.constant 2 : index
    %c0_40 = arith.constant 0 : index
    %c0_41 = arith.constant 0 : index
    %35 = vector.load %arg4[%c2_39, %c0_40, %c0_41] : memref<9x8x8xbf16, #tpu.memory_space<vmem>>, vector<1x8x8xbf16>
    %36 = vector.shape_cast %35 : vector<1x8x8xbf16> to vector<8x8xbf16>
    %cst_42 = arith.constant dense<0.000000e+00> : vector<64x8xf32>
    %37 = tpu.matmul %34, %36, %cst_42 {dimension_numbers = #tpu.dot_dimension_numbers<[1], [0], [0], [1], [0, 0, 1, 1], [], []>} : vector<64x8xbf16>, vector<8x8xbf16>, vector<64x8xf32> -> vector<64x8xf32>
    %38 = arith.addf %32, %37 : vector<64x8xf32>
    %c1_43 = arith.constant 1 : index
    %c0_44 = arith.constant 0 : index
    %c0_45 = arith.constant 0 : index
    %39 = vector.load %arg7[%c1_43, %c0_44, %c0_45] : memref<10x16x8xbf16, #tpu.memory_space<vmem>>, vector<8x8x8xbf16>
    %40 = vector.shape_cast %39 : vector<8x8x8xbf16> to vector<64x8xbf16>
    %c3 = arith.constant 3 : index
    %c0_46 = arith.constant 0 : index
    %c0_47 = arith.constant 0 : index
    %41 = vector.load %arg4[%c3, %c0_46, %c0_47] : memref<9x8x8xbf16, #tpu.memory_space<vmem>>, vector<1x8x8xbf16>
    %42 = vector.shape_cast %41 : vector<1x8x8xbf16> to vector<8x8xbf16>
    %cst_48 = arith.constant dense<0.000000e+00> : vector<64x8xf32>
    %43 = tpu.matmul %40, %42, %cst_48 {dimension_numbers = #tpu.dot_dimension_numbers<[1], [0], [0], [1], [0, 0, 1, 1], [], []>} : vector<64x8xbf16>, vector<8x8xbf16>, vector<64x8xf32> -> vector<64x8xf32>
    %44 = arith.addf %38, %43 : vector<64x8xf32>
    %c1_49 = arith.constant 1 : index
    %c1_50 = arith.constant 1 : index
    %c0_51 = arith.constant 0 : index
    %45 = vector.load %arg7[%c1_49, %c1_50, %c0_51] : memref<10x16x8xbf16, #tpu.memory_space<vmem>>, vector<8x8x8xbf16>
    %46 = vector.shape_cast %45 : vector<8x8x8xbf16> to vector<64x8xbf16>
    %c4 = arith.constant 4 : index
    %c0_52 = arith.constant 0 : index
    %c0_53 = arith.constant 0 : index
    %47 = vector.load %arg4[%c4, %c0_52, %c0_53] : memref<9x8x8xbf16, #tpu.memory_space<vmem>>, vector<1x8x8xbf16>
    %48 = vector.shape_cast %47 : vector<1x8x8xbf16> to vector<8x8xbf16>
    %cst_54 = arith.constant dense<0.000000e+00> : vector<64x8xf32>
    %49 = tpu.matmul %46, %48, %cst_54 {dimension_numbers = #tpu.dot_dimension_numbers<[1], [0], [0], [1], [0, 0, 1, 1], [], []>} : vector<64x8xbf16>, vector<8x8xbf16>, vector<64x8xf32> -> vector<64x8xf32>
    %50 = arith.addf %44, %49 : vector<64x8xf32>
    %c1_55 = arith.constant 1 : index
    %c2_56 = arith.constant 2 : index
    %c0_57 = arith.constant 0 : index
    %51 = vector.load %arg7[%c1_55, %c2_56, %c0_57] : memref<10x16x8xbf16, #tpu.memory_space<vmem>>, vector<8x8x8xbf16>
    %52 = vector.shape_cast %51 : vector<8x8x8xbf16> to vector<64x8xbf16>
    %c5 = arith.constant 5 : index
    %c0_58 = arith.constant 0 : index
    %c0_59 = arith.constant 0 : index
    %53 = vector.load %arg4[%c5, %c0_58, %c0_59] : memref<9x8x8xbf16, #tpu.memory_space<vmem>>, vector<1x8x8xbf16>
    %54 = vector.shape_cast %53 : vector<1x8x8xbf16> to vector<8x8xbf16>
    %cst_60 = arith.constant dense<0.000000e+00> : vector<64x8xf32>
    %55 = tpu.matmul %52, %54, %cst_60 {dimension_numbers = #tpu.dot_dimension_numbers<[1], [0], [0], [1], [0, 0, 1, 1], [], []>} : vector<64x8xbf16>, vector<8x8xbf16>, vector<64x8xf32> -> vector<64x8xf32>
    %56 = arith.addf %50, %55 : vector<64x8xf32>
    %c2_61 = arith.constant 2 : index
    %c0_62 = arith.constant 0 : index
    %c0_63 = arith.constant 0 : index
    %57 = vector.load %arg7[%c2_61, %c0_62, %c0_63] : memref<10x16x8xbf16, #tpu.memory_space<vmem>>, vector<8x8x8xbf16>
    %58 = vector.shape_cast %57 : vector<8x8x8xbf16> to vector<64x8xbf16>
    %c6 = arith.constant 6 : index
    %c0_64 = arith.constant 0 : index
    %c0_65 = arith.constant 0 : index
    %59 = vector.load %arg4[%c6, %c0_64, %c0_65] : memref<9x8x8xbf16, #tpu.memory_space<vmem>>, vector<1x8x8xbf16>
    %60 = vector.shape_cast %59 : vector<1x8x8xbf16> to vector<8x8xbf16>
    %cst_66 = arith.constant dense<0.000000e+00> : vector<64x8xf32>
    %61 = tpu.matmul %58, %60, %cst_66 {dimension_numbers = #tpu.dot_dimension_numbers<[1], [0], [0], [1], [0, 0, 1, 1], [], []>} : vector<64x8xbf16>, vector<8x8xbf16>, vector<64x8xf32> -> vector<64x8xf32>
    %62 = arith.addf %56, %61 : vector<64x8xf32>
    %c2_67 = arith.constant 2 : index
    %c1_68 = arith.constant 1 : index
    %c0_69 = arith.constant 0 : index
    %63 = vector.load %arg7[%c2_67, %c1_68, %c0_69] : memref<10x16x8xbf16, #tpu.memory_space<vmem>>, vector<8x8x8xbf16>
    %64 = vector.shape_cast %63 : vector<8x8x8xbf16> to vector<64x8xbf16>
    %c7 = arith.constant 7 : index
    %c0_70 = arith.constant 0 : index
    %c0_71 = arith.constant 0 : index
    %65 = vector.load %arg4[%c7, %c0_70, %c0_71] : memref<9x8x8xbf16, #tpu.memory_space<vmem>>, vector<1x8x8xbf16>
    %66 = vector.shape_cast %65 : vector<1x8x8xbf16> to vector<8x8xbf16>
    %cst_72 = arith.constant dense<0.000000e+00> : vector<64x8xf32>
    %67 = tpu.matmul %64, %66, %cst_72 {dimension_numbers = #tpu.dot_dimension_numbers<[1], [0], [0], [1], [0, 0, 1, 1], [], []>} : vector<64x8xbf16>, vector<8x8xbf16>, vector<64x8xf32> -> vector<64x8xf32>
    %68 = arith.addf %62, %67 : vector<64x8xf32>
    %c2_73 = arith.constant 2 : index
    %c2_74 = arith.constant 2 : index
    %c0_75 = arith.constant 0 : index
    %69 = vector.load %arg7[%c2_73, %c2_74, %c0_75] : memref<10x16x8xbf16, #tpu.memory_space<vmem>>, vector<8x8x8xbf16>
    %70 = vector.shape_cast %69 : vector<8x8x8xbf16> to vector<64x8xbf16>
    %c8 = arith.constant 8 : index
    %c0_76 = arith.constant 0 : index
    %c0_77 = arith.constant 0 : index
    %71 = vector.load %arg4[%c8, %c0_76, %c0_77] : memref<9x8x8xbf16, #tpu.memory_space<vmem>>, vector<1x8x8xbf16>
    %72 = vector.shape_cast %71 : vector<1x8x8xbf16> to vector<8x8xbf16>
    %cst_78 = arith.constant dense<0.000000e+00> : vector<64x8xf32>
    %73 = tpu.matmul %70, %72, %cst_78 {dimension_numbers = #tpu.dot_dimension_numbers<[1], [0], [0], [1], [0, 0, 1, 1], [], []>} : vector<64x8xbf16>, vector<8x8xbf16>, vector<64x8xf32> -> vector<64x8xf32>
    %74 = arith.addf %68, %73 : vector<64x8xf32>
    %75 = vector.shape_cast %74 : vector<64x8xf32> to vector<8x8x8xf32>
    %c0_79 = arith.constant 0 : index
    %c0_80 = arith.constant 0 : index
    %c0_81 = arith.constant 0 : index
    %c0_82 = arith.constant 0 : index
    %76 = vector.load %arg5[%c0_79, %c0_80, %c0_81, %c0_82] : memref<1x8x8x8xf32, #tpu.memory_space<vmem>>, vector<1x8x8x8xf32>
    %77 = vector.shape_cast %76 : vector<1x8x8x8xf32> to vector<8x8x8xf32>
    %78 = vector.shape_cast %75 : vector<8x8x8xf32> to vector<1x8x8x8xf32>
    tpu.vector_store %arg5[%c0_79, %c0_80, %c0_81, %c0_82], %78 {strides = array<i32>} : memref<1x8x8x8xf32, #tpu.memory_space<vmem>>, vector<1x8x8x8xf32>,
    %cst_83 = arith.constant dense<0.000000e+00> : vector<8xf32>
    %79 = vector.multi_reduction <add>, %74, %cst_83 [0] : vector<64x8xf32> to vector<8xf32>
    %80 = vector.shape_cast %79 : vector<8xf32> to vector<1x8xf32>
    %81 = arith.mulf %74, %74 : vector<64x8xf32>
    %cst_84 = arith.constant dense<0.000000e+00> : vector<8xf32>
    %82 = vector.multi_reduction <add>, %81, %cst_84 [0] : vector<64x8xf32> to vector<8xf32>
    %83 = vector.shape_cast %82 : vector<8xf32> to vector<1x8xf32>
    %84 = tpu.concatenate %80, %83 in 0 : vector<1x8xf32>, vector<1x8xf32> -> vector<2x8xf32>
    %c0_85 = arith.constant 0 : index
    %c0_86 = arith.constant 0 : index
    %c0_87 = arith.constant 0 : index
    %85 = vector.load %arg6[%c0_85, %c0_86, %c0_87] : memref<1x2x8xf32, #tpu.memory_space<vmem>>, vector<1x2x8xf32>
    %86 = vector.shape_cast %85 : vector<1x2x8xf32> to vector<2x8xf32>
    %87 = vector.shape_cast %84 : vector<2x8xf32> to vector<1x2x8xf32>
    tpu.vector_store %arg6[%c0_85, %c0_86, %c0_87], %87 {strides = array<i32>} : memref<1x2x8xf32, #tpu.memory_space<vmem>>, vector<1x2x8xf32>,
    return
  }
  func.func @transform_0(%arg0: i32) -> (i32, i32, i32, i32) {
    %c0_i32 = arith.constant 0 : i32
    %c0_i32_0 = arith.constant 0 : i32
    %c0_i32_1 = arith.constant 0 : i32
    %c0_i32_2 = arith.constant 0 : i32
    return %arg0, %c0_i32, %c0_i32_0, %c0_i32_1 : i32, i32, i32, i32
  }
  func.func @transform_1(%arg0: i32) -> (i32, i32) {
    %c0_i32 = arith.constant 0 : i32
    %c0_i32_0 = arith.constant 0 : i32
    %c0_i32_1 = arith.constant 0 : i32
    return %c0_i32, %c0_i32_0 : i32, i32
  }
  func.func @transform_2(%arg0: i32) -> (i32, i32) {
    %c0_i32 = arith.constant 0 : i32
    %c0_i32_0 = arith.constant 0 : i32
    %c0_i32_1 = arith.constant 0 : i32
    return %c0_i32, %c0_i32_0 : i32, i32
  }
  func.func @transform_3(%arg0: i32) -> (i32, i32, i32) {
    %c0_i32 = arith.constant 0 : i32
    %c0_i32_0 = arith.constant 0 : i32
    %c0_i32_1 = arith.constant 0 : i32
    %c0_i32_2 = arith.constant 0 : i32
    return %c0_i32, %c0_i32_0, %c0_i32_1 : i32, i32, i32
  }
  func.func @transform_4(%arg0: i32) -> (i32, i32, i32, i32) {
    %c0_i32 = arith.constant 0 : i32
    %c0_i32_0 = arith.constant 0 : i32
    %c0_i32_1 = arith.constant 0 : i32
    %c0_i32_2 = arith.constant 0 : i32
    return %arg0, %c0_i32, %c0_i32_0, %c0_i32_1 : i32, i32, i32, i32
  }
  func.func @transform_5(%arg0: i32) -> (i32, i32, i32) {
    %c0_i32 = arith.constant 0 : i32
    %c0_i32_0 = arith.constant 0 : i32
    %c0_i32_1 = arith.constant 0 : i32
    return %arg0, %c0_i32, %c0_i32_0 : i32, i32, i32
  }
}

module attributes {stable_mosaic.version = 11 : i64} {
  func.func @_bn2_relu_kernel(%arg0: i32, %arg1: memref<8x64xf32, #tpu.memory_space<vmem>>, %arg2: memref<1x64xf32, #tpu.memory_space<vmem>>, %arg3: memref<1x64xf32, #tpu.memory_space<vmem>>, %arg4: memref<8x64xf32, #tpu.memory_space<vmem>>) attributes {dimension_semantics = [#tpu.dimension_semantics<parallel>], iteration_bounds = array<i64: 2>, scalar_prefetch = 0 : i64, scratch_operands = 0 : i64, tpu.core_type = #tpu.core_type<tc>, window_params = [{transform_indices = @transform_0, window_bounds = array<i64: 8, 64>}, {pipeline_mode = #tpu.pipeline_mode<synchronous>, transform_indices = @transform_1, window_bounds = array<i64: 1, 64>}, {pipeline_mode = #tpu.pipeline_mode<synchronous>, transform_indices = @transform_2, window_bounds = array<i64: 1, 64>}, {transform_indices = @transform_3, window_bounds = array<i64: 8, 64>}]} {
    %c0 = arith.constant 0 : index
    %c0_0 = arith.constant 0 : index
    %0 = vector.load %arg1[%c0, %c0_0] : memref<8x64xf32, #tpu.memory_space<vmem>>, vector<8x64xf32>
    %c0_1 = arith.constant 0 : index
    %c0_2 = arith.constant 0 : index
    %1 = vector.load %arg2[%c0_1, %c0_2] : memref<1x64xf32, #tpu.memory_space<vmem>>, vector<1x64xf32>
    %2 = vector.broadcast %1 : vector<1x64xf32> to vector<8x64xf32>
    %3 = arith.mulf %0, %2 : vector<8x64xf32>
    %c0_3 = arith.constant 0 : index
    %c0_4 = arith.constant 0 : index
    %4 = vector.load %arg3[%c0_3, %c0_4] : memref<1x64xf32, #tpu.memory_space<vmem>>, vector<1x64xf32>
    %5 = vector.broadcast %4 : vector<1x64xf32> to vector<8x64xf32>
    %6 = arith.addf %3, %5 : vector<8x64xf32>
    %cst = arith.constant 0.000000e+00 : f32
    %7 = vector.broadcast %cst : f32 to vector<8x64xf32>
    %8 = arith.maximumf %6, %7 : vector<8x64xf32>
    %c0_5 = arith.constant 0 : index
    %c0_6 = arith.constant 0 : index
    %9 = vector.load %arg4[%c0_5, %c0_6] : memref<8x64xf32, #tpu.memory_space<vmem>>, vector<8x64xf32>
    tpu.vector_store %arg4[%c0_5, %c0_6], %8 {strides = array<i32>} : memref<8x64xf32, #tpu.memory_space<vmem>>, vector<8x64xf32>,
    return
  }
  func.func @transform_0(%arg0: i32) -> (i32, i32) {
    %c0_i32 = arith.constant 0 : i32
    %c0_i32_0 = arith.constant 0 : i32
    return %arg0, %c0_i32 : i32, i32
  }
  func.func @transform_1(%arg0: i32) -> (i32, i32) {
    %c0_i32 = arith.constant 0 : i32
    %c0_i32_0 = arith.constant 0 : i32
    %c0_i32_1 = arith.constant 0 : i32
    return %c0_i32, %c0_i32_0 : i32, i32
  }
  func.func @transform_2(%arg0: i32) -> (i32, i32) {
    %c0_i32 = arith.constant 0 : i32
    %c0_i32_0 = arith.constant 0 : i32
    %c0_i32_1 = arith.constant 0 : i32
    return %c0_i32, %c0_i32_0 : i32, i32
  }
  func.func @transform_3(%arg0: i32) -> (i32, i32) {
    %c0_i32 = arith.constant 0 : i32
    %c0_i32_0 = arith.constant 0 : i32
    return %arg0, %c0_i32 : i32, i32
  }
}

</mosaic_0001>

<llo_original>
// kernel: tile.13
$region0: #{tile.13}
  #allocation0 [shape = 's32[1]{0}', space=sflag, size = 0x4, scoped, tag = 'scoped memory for tile.13']
  %s0 = inlined_call_operand.vmem [shape: f32[8], index: 0, kind: input, shape index: {}]
  %s1 = inlined_call_operand.vmem [shape: f32[8,8], index: 1, kind: output, shape index: {}]
  // Predicated region
  $region2: #{tile.13} parent=0 // pred_check
    _
  $region3: #{tile.13} parent=0 // pred_check_branch
    %3 = sbr.rel (0) target = $region5
  $region4: #{tile.13} parent=0 // pred_region
    _
  $region5: #{tile.13} parent=0 // pred_fallthru
    _
  %v4 = vld [vmem:[%s0] ss:$0 sm:$0xff]
  %5 = vst [vmem:[%s1] sm:$0xff] %v4

// kernel: tile.14
$region0: #{tile.14}
  %s0 = inlined_call_operand.vmem [shape: f32[8,8], index: 0, kind: input, shape index: {}]
  %s1 = inlined_call_operand.vmem [shape: f32[1,64], index: 1, kind: output, shape index: {}]
  $region1: #{tile.14} parent=0
    #allocation0 [shape = 'u8[4096]{0}', space=vmem, size = 0x1000, scoped, tag = 'scoped mem for output reshape']
    %v2 = vld [vmem:[%s0] sm:$0x1]
    %vm3 = vcmask 64512
    %4 = vst.msk [vmem:[#allocation0] sm:$0x1] %vm3, %v2
    %s5 = scalar_lea.vmem %s0, 7
    %v6 = vld [vmem:[%s5] sm:$0x1]
    %7 = vrot.lane.b32.xlu0 %v6, 56
    %v8 = vpop.permute.xlu0 %7
    %vm9 = vcmask 523712
    %10 = vst.msk [vmem:[#allocation0] sm:$0x1] %vm9, %v8
    %s11 = scalar_lea.vmem %s0, 6
    %v12 = vld [vmem:[%s11] sm:$0x1]
    %13 = vrot.lane.b32.xlu0 %v12, 48
    %v14 = vpop.permute.xlu0 %13
    %vm15 = vcmask 458112
    %16 = vst.msk [vmem:[#allocation0] sm:$0x1] %vm15, %v14
    %s17 = scalar_lea.vmem %s0, 5
    %v18 = vld [vmem:[%s17] sm:$0x1]
    %19 = vrot.lane.b32.xlu0 %v18, 40
    %v20 = vpop.permute.xlu0 %19
    %vm21 = vcmask 392512
    %22 = vst.msk [vmem:[#allocation0] sm:$0x1] %vm21, %v20
    %s23 = scalar_lea.vmem %s0, 4
    %v24 = vld [vmem:[%s23] sm:$0x1]
    %25 = vrot.lane.b32.xlu0 %v24, 32
    %v26 = vpop.permute.xlu0 %25
    %vm27 = vcmask 326912
    %28 = vst.msk [vmem:[#allocation0] sm:$0x1] %vm27, %v26
    %s29 = scalar_lea.vmem %s0, 3
    %v30 = vld [vmem:[%s29] sm:$0x1]
    %31 = vrot.lane.b32.xlu0 %v30, 24
    %v32 = vpop.permute.xlu0 %31
    %vm33 = vcmask 261312
    %34 = vst.msk [vmem:[#allocation0] sm:$0x1] %vm33, %v32
    %s35 = scalar_lea.vmem %s0, 2
    %v36 = vld [vmem:[%s35] sm:$0x1]
    %37 = vrot.lane.b32.xlu0 %v36, 16
    %v38 = vpop.permute.xlu0 %37
    %vm39 = vcmask 195712
    %40 = vst.msk [vmem:[#allocation0] sm:$0x1] %vm39, %v38
    %s41 = scalar_lea.vmem %s0, 1
    %v42 = vld [vmem:[%s41] sm:$0x1]
    %43 = vrot.lane.b32.xlu0 %v42, 8
    %v44 = vpop.permute.xlu0 %43
    %vm45 = vcmask 130112
    %46 = vst.msk [vmem:[#allocation0] sm:$0x1] %vm45, %v44
    %s48 = sshllo.u32 0, 1
    %v50 = vld [vmem:[#allocation0] sm:%s48]
    %s51 = sshllo.u32 0, 1
    %52 = vst [vmem:[%s1] sm:%s51] %v50

// kernel: down_forward.5
$region0: #{down_forward.5}
  #allocation0 [shape = 'u32[]', space=smem, size = 0x4, offset = 0x4, fixed_abs, tag = 'smem constant byte address 0x4 - core index']
  #allocation1 [shape = 'u32[144,128]{1,0:T(1,128)}', space=vmem, size = 0x12000, scoped, tag = 'internal scratch']
  %s0 = inlined_call_operand.vmem [shape: f32[16,64], index: 0, kind: input, shape index: {}]
  %s1 = inlined_call_operand.vmem [shape: f32[1,64], index: 1, kind: input, shape index: {}]
  %s2 = inlined_call_operand.vmem [shape: f32[1,64], index: 2, kind: input, shape index: {}]
  %s3 = inlined_call_operand.vmem [shape: f32[16,64], index: 3, kind: output, shape index: {}]
  %s4 = sld [smem:[#allocation0]]
  $region45: #{down_forward.5} parent=0
    _
  %s6 = ssub.s32 1, %s4
  %s7 = scalar_select 0, %s6, %s4
  loop: start=0, step=1, limit=4
  $region2: #{down_forward.5} parent=0 // loop_pre_header
    _
  $region3: #{down_forward.5} parent=0 // loop_header
    %s9 = sphi 0, %s13
    %p10 = scmp.ge.s32.totalorder %s9, 4
    %s19 = sphi 0, %s21
    %s22 = sphi 0, %s19
    %s23 = sphi 0, %s22
    %s39 = sphi 0, %s23
    %s43 = sphi 0, %s43
    %s45 = sphi 0, %s43
    %s46 = sphi 0, %s45
    %s60 = sphi 0, %s46
    %s64 = sphi 0, %s64
    %s66 = sphi 0, %s64
    %s67 = sphi 0, %s66
    %s81 = sphi 0, %s67
    %s87 = sphi 0, %s89
    %s90 = sphi 0, %s87
    %s91 = sphi 0, %s90
    %s107 = sphi 0, %s91
  $region4: #{down_forward.5} parent=0 // loop_header_branch
    %12 = sbr.rel (%p10) target = $region8
  $region5: #{down_forward.5} parent=0 // loop_body
    %s14 = ssub.s32 %s9, 1
    %s15 = ssub.s32 %s9, 2
    %s16 = sadd.s32 %s9, 1
    %s17 = ssub.s32 %s9, %s16
    %p18 = scmp.eq.s32.totalorder %s17, 0
    %s20 = sadd.s32 %s19, 1
    %s21 = scalar_select %p18, %s19, %s20
    %p24 = pneg %p18
    %p25 = scmp.eq.s32.totalorder %s9, 1
    %p26 = por %p24, %p25
    %p27 = scmp.ne.s32.totalorder %s19, %s22
    %p28 = scmp.eq.s32.totalorder %s9, 0
    %p29 = por %p27, %p28
    %p30 = scmp.ne.s32.totalorder %s19, %s22
    %p31 = scmp.eq.s32.totalorder %s14, 1
    %p32 = por %p30, %p31
    %p33 = scmp.ne.s32.totalorder %s22, %s23
    %p34 = scmp.eq.s32.totalorder %s14, 0
    %p35 = por %p33, %p34
    %p36 = scmp.ne.s32.totalorder %s22, %s23
    %p37 = scmp.eq.s32.totalorder %s15, 1
    %p38 = por %p36, %p37
    %p40 = scmp.ne.s32.totalorder %s23, %s39
    %p41 = scmp.eq.s32.totalorder %s15, 0
    %p42 = por %p40, %p41
    %s44 = sadd.s32 %s43, 1
    %p47 = scmp.eq.s32.totalorder %s9, 1
    %p48 = scmp.ne.s32.totalorder %s43, %s45
    %p49 = scmp.eq.s32.totalorder %s9, 0
    %p50 = por %p48, %p49
    %p51 = scmp.ne.s32.totalorder %s43, %s45
    %p52 = scmp.eq.s32.totalorder %s14, 1
    %p53 = por %p51, %p52
    %p54 = scmp.ne.s32.totalorder %s45, %s46
    %p55 = scmp.eq.s32.totalorder %s14, 0
    %p56 = por %p54, %p55
    %p57 = scmp.ne.s32.totalorder %s45, %s46
    %p58 = scmp.eq.s32.totalorder %s15, 1
    %p59 = por %p57, %p58
    %p61 = scmp.ne.s32.totalorder %s46, %s60
    %p62 = scmp.eq.s32.totalorder %s15, 0
    %p63 = por %p61, %p62
    %s65 = sadd.s32 %s64, 1
    %p68 = scmp.eq.s32.totalorder %s9, 1
    %p69 = scmp.ne.s32.totalorder %s64, %s66
    %p70 = scmp.eq.s32.totalorder %s9, 0
    %p71 = por %p69, %p70
    %p72 = scmp.ne.s32.totalorder %s64, %s66
    %p73 = scmp.eq.s32.totalorder %s14, 1
    %p74 = por %p72, %p73
    %p75 = scmp.ne.s32.totalorder %s66, %s67
    %p76 = scmp.eq.s32.totalorder %s14, 0
    %p77 = por %p75, %p76
    %p78 = scmp.ne.s32.totalorder %s66, %s67
    %p79 = scmp.eq.s32.totalorder %s15, 1
    %p80 = por %p78, %p79
    %p82 = scmp.ne.s32.totalorder %s67, %s81
    %p83 = scmp.eq.s32.totalorder %s15, 0
    %p84 = por %p82, %p83
    %s85 = ssub.s32 %s9, %s16
    %p86 = scmp.eq.s32.totalorder %s85, 0
    %s88 = sadd.s32 %s87, 1
    %s89 = scalar_select %p86, %s87, %s88
    %p92 = pneg %p86
    %p93 = scmp.eq.s32.totalorder %s9, 1
    %p94 = por %p92, %p93
    %p95 = scmp.ne.s32.totalorder %s87, %s90
    %p96 = scmp.eq.s32.totalorder %s9, 0
    %p97 = por %p95, %p96
    %p98 = scmp.ne.s32.totalorder %s87, %s90
    %p99 = scmp.eq.s32.totalorder %s14, 1
    %p100 = por %p98, %p99
    %p101 = scmp.ne.s32.totalorder %s90, %s91
    %p102 = scmp.eq.s32.totalorder %s14, 0
    %p103 = por %p101, %p102
    %p104 = scmp.ne.s32.totalorder %s90, %s91
    %p105 = scmp.eq.s32.totalorder %s15, 1
    %p106 = por %p104, %p105
    %p108 = scmp.ne.s32.totalorder %s91, %s107
    %p109 = scmp.eq.s32.totalorder %s15, 0
    %p110 = por %p108, %p109
    %p111 = scmp.le.s32.totalorder 1, %s9
    %p112 = scmp.lt.s32.totalorder %s9, 3
    %p113 = pnand %p111, %p112
    %p114 = pneg %p113
    // Predicated region
    $region9: #{down_forward.5} parent=5 // pred_check
      _
    $region10: #{down_forward.5} parent=5 // pred_check_branch
      %116 = sbr.rel (%p113) target = $region12
    $region11: #{down_forward.5} parent=5 // pred_region
      %s117 = ssub.s32 %s9, 1
      // Predicated region
      $region13: #{down_forward.5} parent=11 // pred_check
        %p118 = pneg %p56
      $region14: #{down_forward.5} parent=11 // pred_check_branch
        %120 = sbr.rel (%p118) target = $region16
      $region15: #{down_forward.5} parent=11 // pred_region
        _
      $region16: #{down_forward.5} parent=11 // pred_fallthru
        _
      // Predicated region
      $region17: #{down_forward.5} parent=11 // pred_check
        %p121 = pneg %p77
      $region18: #{down_forward.5} parent=11 // pred_check_branch
        %123 = sbr.rel (%p121) target = $region20
      $region19: #{down_forward.5} parent=11 // pred_region
        _
      $region20: #{down_forward.5} parent=11 // pred_fallthru
        _
    $region12: #{down_forward.5} parent=5 // pred_fallthru
      _
    %p124 = scmp.lt.s32.totalorder %s9, 2
    // Predicated region
    $region21: #{down_forward.5} parent=5 // pred_check
      %p125 = pneg %p124
    $region22: #{down_forward.5} parent=5 // pred_check_branch
      %127 = sbr.rel (%p125) target = $region24
    $region23: #{down_forward.5} parent=5 // pred_region
      // Predicated region
      $region25: #{down_forward.5} parent=23 // pred_check
        %p128 = pneg %p29
      $region26: #{down_forward.5} parent=23 // pred_check_branch
        %130 = sbr.rel (%p128) target = $region28
      $region27: #{down_forward.5} parent=23 // pred_region
        %p131 = scmp.lt.s32.totalorder %s9, 1
        %s132 = scalar_select %p131, %s9, 1
        %s133 = smul.addr %s132, 8
        %s134 = scalar_lea.vmem %s0, %s133
      $region28: #{down_forward.5} parent=23 // pred_fallthru
        _
    $region24: #{down_forward.5} parent=5 // pred_fallthru
      _
    %p135 = scmp.le.s32.totalorder 1, %s9
    %p136 = scmp.lt.s32.totalorder %s9, 3
    %p137 = pnand %p135, %p136
    %p138 = pneg %p137
    // Predicated region
    $region29: #{down_forward.5} parent=5 // pred_check
      _
    $region30: #{down_forward.5} parent=5 // pred_check_branch
      %140 = sbr.rel (%p137) target = $region32
    $region31: #{down_forward.5} parent=5 // pred_region
      %s141 = ssub.s32 %s9, 1
      %p142 = scmp.lt.s32.totalorder %s14, 1
      %s143 = scalar_select %p142, %s14, 1
      %s144 = smul.addr %s143, 8
      %s145 = scalar_lea.vmem %s0, %s144
      %p146 = pneg %p35
      %p147 = pneg %p32
      %p148 = pneg %p56
      %p149 = pneg %p53
      %p150 = pneg %p77
      %p151 = pneg %p74
      %p152 = pneg %p103
      %p153 = pneg %p100
      %p154 = scmp.lt.s32.totalorder %s14, 1
      %s155 = scalar_select %p154, %s14, 1
      %s156 = smul.addr %s155, 8
      %s157 = scalar_lea.vmem %s3, %s156
      %p158 = scmp.lt.s32.totalorder %s14, 1
      %s159 = scalar_select %p158, %s14, 1
      %s160 = smul.addr %s159, 8
      %s161 = scalar_lea.vmem %s0, %s160
      %p162 = scmp.lt.s32.totalorder %s14, 1
      %s163 = scalar_select %p162, %s14, 1
      %s164 = smul.addr %s163, 8
      %s165 = scalar_lea.vmem %s3, %s164
      %v166 = vld [vmem:[%s161] sm:$0xff]
      %v167 = vld [vmem:[%s1] sm:$0x1]
      %v169 = vlaneseq
      %v170 = vshrl.u32 %v169, 7
      %v171 = vsub.s32 0, %v170
      %v172 = vrot.slane %v167, %v171
      %v174 = vmul.f32 %v166, %v172
      %v175 = vld [vmem:[%s2] sm:$0x1]
      %v177 = vlaneseq
      %v178 = vshrl.u32 %v177, 7
      %v179 = vsub.s32 0, %v178
      %v180 = vrot.slane %v175, %v179
      %v182 = vadd.f32 %v174, %v180
      %v183 = vmax.f32 %v182, 0.0
      %vm184 = vcmask 523264
      %185 = vst.msk [vmem:[%s165] sm:$0xff] %vm184, %v183
      %p186 = scmp.lt.s32.totalorder %s14, 1
      %s187 = scalar_select %p186, %s14, 1
      %s188 = smul.addr %s187, 8
      %s189 = scalar_lea.vmem %s3, %s188
      // Predicated region
      $region33: #{down_forward.5} parent=31 // pred_check
        %p190 = pneg %p100
      $region34: #{down_forward.5} parent=31 // pred_check_branch
        %192 = sbr.rel (%p190) target = $region36
      $region35: #{down_forward.5} parent=31 // pred_region
        _
      $region36: #{down_forward.5} parent=31 // pred_fallthru
        _
    $region32: #{down_forward.5} parent=5 // pred_fallthru
      _
    %p193 = scmp.le.s32.totalorder 2, %s9
    // Predicated region
    $region37: #{down_forward.5} parent=5 // pred_check
      %p194 = pneg %p193
    $region38: #{down_forward.5} parent=5 // pred_check_branch
      %196 = sbr.rel (%p194) target = $region40
    $region39: #{down_forward.5} parent=5 // pred_region
      %s197 = ssub.s32 %s9, 2
      // Predicated region
      $region41: #{down_forward.5} parent=39 // pred_check
        %p198 = pneg %p106
      $region42: #{down_forward.5} parent=39 // pred_check_branch
        %200 = sbr.rel (%p198) target = $region44
      $region43: #{down_forward.5} parent=39 // pred_region
        %p201 = scmp.lt.s32.totalorder %s15, 1
        %s202 = scalar_select %p201, %s15, 1
        %s203 = smul.addr %s202, 8
        %s204 = scalar_lea.vmem %s3, %s203
      $region44: #{down_forward.5} parent=39 // pred_fallthru
        _
    $region40: #{down_forward.5} parent=5 // pred_fallthru
      _
  $region6: #{down_forward.5} parent=0 // loop_footer
    %s13 = sadd.s32 1, %s9
  $region7: #{down_forward.5} parent=0 // loop_footer_branch
    %8 = sbr.rel target = $region3
  $region8: #{down_forward.5} parent=0 // loop_exit
    _

// kernel: down_forward.3
$region0: #{down_forward.3}
  #allocation0 [shape = 'u32[]', space=smem, size = 0x4, offset = 0x4, fixed_abs, tag = 'smem constant byte address 0x4 - core index']
  #allocation1 [shape = 'u32[144,128]{1,0:T(1,128)}', space=vmem, size = 0x12000, scoped, tag = 'internal scratch']
  #allocation2 [shape = 'bf16[10,16,4]{2,1,0:T(16,128)(2,1)}', space=vmem, size = 0xa000, scoped, tag = 'scratch operand']
  %s0 = inlined_call_operand.vmem [shape: bf16[2,16,8,8], index: 0, kind: input, shape index: {}]
  %s1 = inlined_call_operand.vmem [shape: bf16[9,4,8], index: 1, kind: input, shape index: {}]
  %s2 = inlined_call_operand.vmem [shape: f32[2,8,8,8], index: 2, kind: output, shape index: {0}]
  %s3 = inlined_call_operand.vmem [shape: f32[2,2,8], index: 3, kind: output, shape index: {1}]
  %4 = xla_tuple %s2, %s3
  %s5 = sld [smem:[#allocation0]]
  $region49: #{down_forward.3} parent=0
    _
  %s7 = ssub.s32 1, %s5
  %s8 = scalar_select 0, %s7, %s5
  loop: start=0, step=1, limit=4
  $region2: #{down_forward.3} parent=0 // loop_pre_header
    _
  $region3: #{down_forward.3} parent=0 // loop_header
    %s10 = sphi 0, %s14
    %p11 = scmp.ge.s32.totalorder %s10, 4
    %s20 = sphi 0, %s22
    %s23 = sphi 0, %s20
    %s24 = sphi 0, %s23
    %s40 = sphi 0, %s24
    %s44 = sphi 0, %s44
    %s46 = sphi 0, %s44
    %s47 = sphi 0, %s46
    %s61 = sphi 0, %s47
    %s67 = sphi 0, %s69
    %s70 = sphi 0, %s67
    %s71 = sphi 0, %s70
    %s87 = sphi 0, %s71
    %s93 = sphi 0, %s95
    %s96 = sphi 0, %s93
    %s97 = sphi 0, %s96
    %s113 = sphi 0, %s97
  $region4: #{down_forward.3} parent=0 // loop_header_branch
    %13 = sbr.rel (%p11) target = $region8
  $region5: #{down_forward.3} parent=0 // loop_body
    %s15 = ssub.s32 %s10, 1
    %s16 = ssub.s32 %s10, 2
    %s17 = sadd.s32 %s10, 1
    %s18 = ssub.s32 %s10, %s17
    %p19 = scmp.eq.s32.totalorder %s18, 0
    %s21 = sadd.s32 %s20, 1
    %s22 = scalar_select %p19, %s20, %s21
    %p25 = pneg %p19
    %p26 = scmp.eq.s32.totalorder %s10, 1
    %p27 = por %p25, %p26
    %p28 = scmp.ne.s32.totalorder %s20, %s23
    %p29 = scmp.eq.s32.totalorder %s10, 0
    %p30 = por %p28, %p29
    %p31 = scmp.ne.s32.totalorder %s20, %s23
    %p32 = scmp.eq.s32.totalorder %s15, 1
    %p33 = por %p31, %p32
    %p34 = scmp.ne.s32.totalorder %s23, %s24
    %p35 = scmp.eq.s32.totalorder %s15, 0
    %p36 = por %p34, %p35
    %p37 = scmp.ne.s32.totalorder %s23, %s24
    %p38 = scmp.eq.s32.totalorder %s16, 1
    %p39 = por %p37, %p38
    %p41 = scmp.ne.s32.totalorder %s24, %s40
    %p42 = scmp.eq.s32.totalorder %s16, 0
    %p43 = por %p41, %p42
    %s45 = sadd.s32 %s44, 1
    %p48 = scmp.eq.s32.totalorder %s10, 1
    %p49 = scmp.ne.s32.totalorder %s44, %s46
    %p50 = scmp.eq.s32.totalorder %s10, 0
    %p51 = por %p49, %p50
    %p52 = scmp.ne.s32.totalorder %s44, %s46
    %p53 = scmp.eq.s32.totalorder %s15, 1
    %p54 = por %p52, %p53
    %p55 = scmp.ne.s32.totalorder %s46, %s47
    %p56 = scmp.eq.s32.totalorder %s15, 0
    %p57 = por %p55, %p56
    %p58 = scmp.ne.s32.totalorder %s46, %s47
    %p59 = scmp.eq.s32.totalorder %s16, 1
    %p60 = por %p58, %p59
    %p62 = scmp.ne.s32.totalorder %s47, %s61
    %p63 = scmp.eq.s32.totalorder %s16, 0
    %p64 = por %p62, %p63
    %s65 = ssub.s32 %s10, %s17
    %p66 = scmp.eq.s32.totalorder %s65, 0
    %s68 = sadd.s32 %s67, 1
    %s69 = scalar_select %p66, %s67, %s68
    %p72 = pneg %p66
    %p73 = scmp.eq.s32.totalorder %s10, 1
    %p74 = por %p72, %p73
    %p75 = scmp.ne.s32.totalorder %s67, %s70
    %p76 = scmp.eq.s32.totalorder %s10, 0
    %p77 = por %p75, %p76
    %p78 = scmp.ne.s32.totalorder %s67, %s70
    %p79 = scmp.eq.s32.totalorder %s15, 1
    %p80 = por %p78, %p79
    %p81 = scmp.ne.s32.totalorder %s70, %s71
    %p82 = scmp.eq.s32.totalorder %s15, 0
    %p83 = por %p81, %p82
    %p84 = scmp.ne.s32.totalorder %s70, %s71
    %p85 = scmp.eq.s32.totalorder %s16, 1
    %p86 = por %p84, %p85
    %p88 = scmp.ne.s32.totalorder %s71, %s87
    %p89 = scmp.eq.s32.totalorder %s16, 0
    %p90 = por %p88, %p89
    %s91 = ssub.s32 %s10, %s17
    %p92 = scmp.eq.s32.totalorder %s91, 0
    %s94 = sadd.s32 %s93, 1
    %s95 = scalar_select %p92, %s93, %s94
    %p98 = pneg %p92
    %p99 = scmp.eq.s32.totalorder %s10, 1
    %p100 = por %p98, %p99
    %p101 = scmp.ne.s32.totalorder %s93, %s96
    %p102 = scmp.eq.s32.totalorder %s10, 0
    %p103 = por %p101, %p102
    %p104 = scmp.ne.s32.totalorder %s93, %s96
    %p105 = scmp.eq.s32.totalorder %s15, 1
    %p106 = por %p104, %p105
    %p107 = scmp.ne.s32.totalorder %s96, %s97
    %p108 = scmp.eq.s32.totalorder %s15, 0
    %p109 = por %p107, %p108
    %p110 = scmp.ne.s32.totalorder %s96, %s97
    %p111 = scmp.eq.s32.totalorder %s16, 1
    %p112 = por %p110, %p111
    %p114 = scmp.ne.s32.totalorder %s97, %s113
    %p115 = scmp.eq.s32.totalorder %s16, 0
    %p116 = por %p114, %p115
    %p117 = scmp.le.s32.totalorder 1, %s10
    %p118 = scmp.lt.s32.totalorder %s10, 3
    %p119 = pnand %p117, %p118
    %p120 = pneg %p119
    // Predicated region
    $region9: #{down_forward.3} parent=5 // pred_check
      _
    $region10: #{down_forward.3} parent=5 // pred_check_branch
      %122 = sbr.rel (%p119) target = $region12
    $region11: #{down_forward.3} parent=5 // pred_region
      %s123 = ssub.s32 %s10, 1
      // Predicated region
      $region13: #{down_forward.3} parent=11 // pred_check
        %p124 = pneg %p57
      $region14: #{down_forward.3} parent=11 // pred_check_branch
        %126 = sbr.rel (%p124) target = $region16
      $region15: #{down_forward.3} parent=11 // pred_region
        _
      $region16: #{down_forward.3} parent=11 // pred_fallthru
        _
    $region12: #{down_forward.3} parent=5 // pred_fallthru
      _
    %p127 = scmp.lt.s32.totalorder %s10, 2
    // Predicated region
    $region17: #{down_forward.3} parent=5 // pred_check
      %p128 = pneg %p127
    $region18: #{down_forward.3} parent=5 // pred_check_branch
      %130 = sbr.rel (%p128) target = $region20
    $region19: #{down_forward.3} parent=5 // pred_region
      // Predicated region
      $region21: #{down_forward.3} parent=19 // pred_check
        %p131 = pneg %p30
      $region22: #{down_forward.3} parent=19 // pred_check_branch
        %133 = sbr.rel (%p131) target = $region24
      $region23: #{down_forward.3} parent=19 // pred_region
        %p134 = scmp.lt.s32.totalorder %s10, 1
        %s135 = scalar_select %p134, %s10, 1
        %s136 = smul.addr %s135, 16
        %s137 = smul.addr %s136, 4
        %s138 = scalar_lea.vmem %s0, %s137
      $region24: #{down_forward.3} parent=19 // pred_fallthru
        _
    $region20: #{down_forward.3} parent=5 // pred_fallthru
      _
    %p139 = scmp.le.s32.totalorder 1, %s10
    %p140 = scmp.lt.s32.totalorder %s10, 3
    %p141 = pnand %p139, %p140
    %p142 = pneg %p141
    // Predicated region
    $region25: #{down_forward.3} parent=5 // pred_check
      _
    $region26: #{down_forward.3} parent=5 // pred_check_branch
      %144 = sbr.rel (%p141) target = $region28
    $region27: #{down_forward.3} parent=5 // pred_region
      %s145 = ssub.s32 %s10, 1
      %p146 = scmp.lt.s32.totalorder %s15, 1
      %s147 = scalar_select %p146, %s15, 1
      %s148 = smul.addr %s147, 16
      %s149 = smul.addr %s148, 4
      %s150 = scalar_lea.vmem %s0, %s149
      %p151 = pneg %p36
      %p152 = pneg %p33
      %p153 = pneg %p57
      %p154 = pneg %p54
      %p155 = pneg %p83
      %p156 = pneg %p80
      %p157 = scmp.lt.s32.totalorder %s15, 1
      %s158 = scalar_select %p157, %s15, 1
      %s159 = smul.addr %s158, 8
      %s160 = smul.addr %s159, 8
      %s161 = scalar_lea.vmem %s2, %s160
      %p162 = pneg %p109
      %p163 = pneg %p106
      %p164 = scmp.lt.s32.totalorder %s15, 1
      %s165 = scalar_select %p164, %s15, 1
      %s166 = smul.addr %s165, 2
      %s167 = scalar_lea.vmem %s3, %s166
      %p168 = scmp.lt.s32.totalorder %s15, 1
      %s169 = scalar_select %p168, %s15, 1
      %s170 = smul.addr %s169, 16
      %s171 = smul.addr %s170, 4
      %s172 = scalar_lea.vmem %s0, %s171
      %p173 = scmp.lt.s32.totalorder %s15, 1
      %s174 = scalar_select %p173, %s15, 1
      %s175 = smul.addr %s174, 8
      %s176 = smul.addr %s175, 8
      %s177 = scalar_lea.vmem %s2, %s176
      %p178 = scmp.lt.s32.totalorder %s15, 1
      %s179 = scalar_select %p178, %s15, 1
      %s180 = smul.addr %s179, 2
      %s181 = scalar_lea.vmem %s3, %s180
      %v183 = vld [vmem:[%s172] sm:$0xf]
      %v184 = vld [vmem:[%s172 + $0x4] sm:$0xf]
      %v185 = vld [vmem:[%s172 + $0x8] sm:$0xf]
      %v186 = vld [vmem:[%s172 + $0xc] sm:$0xf]
      %v187 = vld [vmem:[%s172 + $0x10] sm:$0xf]
      %v188 = vld [vmem:[%s172 + $0x14] sm:$0xf]
      %v189 = vld [vmem:[%s172 + $0x18] sm:$0xf]
      %v190 = vld [vmem:[%s172 + $0x1c] sm:$0xf]
      %v191 = vld [vmem:[%s172 + $0x20] sm:$0xf]
      %v192 = vld [vmem:[%s172 + $0x24] sm:$0xf]
      %v193 = vld [vmem:[%s172 + $0x28] sm:$0xf]
      %v194 = vld [vmem:[%s172 + $0x2c] sm:$0xf]
      %v195 = vld [vmem:[%s172 + $0x30] sm:$0xf]
      %v196 = vld [vmem:[%s172 + $0x34] sm:$0xf]
      %v197 = vld [vmem:[%s172 + $0x38] sm:$0xf]
      %v198 = vld [vmem:[%s172 + $0x3c] sm:$0xf]
      %215 = vrot.lane.b32.xlu0 %v183, 124
      %v216 = vpop.permute.xlu0 %215
      %217 = vrot.lane.b32.xlu0 %v184, 124
      %v218 = vpop.permute.xlu0 %217
      %219 = vrot.lane.b32.xlu0 %v185, 124
      %v220 = vpop.permute.xlu0 %219
      %221 = vrot.lane.b32.xlu0 %v186, 124
      %v222 = vpop.permute.xlu0 %221
      %223 = vrot.lane.b32.xlu0 %v187, 124
      %v224 = vpop.permute.xlu0 %223
      %225 = vrot.lane.b32.xlu0 %v188, 124
      %v226 = vpop.permute.xlu0 %225
      %227 = vrot.lane.b32.xlu0 %v189, 124
      %v228 = vpop.permute.xlu0 %227
      %229 = vrot.lane.b32.xlu0 %v190, 124
      %v230 = vpop.permute.xlu0 %229
      %231 = vrot.lane.b32.xlu0 %v191, 124
      %v232 = vpop.permute.xlu0 %231
      %233 = vrot.lane.b32.xlu0 %v192, 124
      %v234 = vpop.permute.xlu0 %233
      %235 = vrot.lane.b32.xlu0 %v193, 124
      %v236 = vpop.permute.xlu0 %235
      %237 = vrot.lane.b32.xlu0 %v194, 124
      %v238 = vpop.permute.xlu0 %237
      %239 = vrot.lane.b32.xlu0 %v195, 124
      %v240 = vpop.permute.xlu0 %239
      %241 = vrot.lane.b32.xlu0 %v196, 124
      %v242 = vpop.permute.xlu0 %241
      %243 = vrot.lane.b32.xlu0 %v197, 124
      %v244 = vpop.permute.xlu0 %243
      %245 = vrot.lane.b32.xlu0 %v198, 124
      %v246 = vpop.permute.xlu0 %245
      %v263 = vmax.bf16 %v183, %v216
      %v264 = vmax.bf16 %v184, %v218
      %v265 = vmax.bf16 %v185, %v220
      %v266 = vmax.bf16 %v186, %v222
      %v267 = vmax.bf16 %v187, %v224
      %v268 = vmax.bf16 %v188, %v226
      %v269 = vmax.bf16 %v189, %v228
      %v270 = vmax.bf16 %v190, %v230
      %v271 = vmax.bf16 %v191, %v232
      %v272 = vmax.bf16 %v192, %v234
      %v273 = vmax.bf16 %v193, %v236
      %v274 = vmax.bf16 %v194, %v238
      %v275 = vmax.bf16 %v195, %v240
      %v276 = vmax.bf16 %v196, %v242
      %v277 = vmax.bf16 %v197, %v244
      %v278 = vmax.bf16 %v198, %v246
      %v279 = vmax.bf16 %v263, %v264
      %v280 = vmax.bf16 %v265, %v266
      %v281 = vmax.bf16 %v267, %v268
      %v282 = vmax.bf16 %v269, %v270
      %v283 = vmax.bf16 %v271, %v272
      %v284 = vmax.bf16 %v273, %v274
      %v285 = vmax.bf16 %v275, %v276
      %v286 = vmax.bf16 %v277, %v278
      %vm287 = vcmask 31744
      %288 = vst.msk [vmem:[#allocation2] sm:$0xff] %vm287, 0
      %s289 = scalar_lea.vmem [#allocation2], 72
      %290 = vst.msk [vmem:[%s289] sm:$0xff] %vm287, 0
      %vm291 = vcmask 24576
      %vm292 = vsmask.f32 256
      %vm293 = vmand %vm291, %vm292
      %v294 = vld [vmem:[#allocation2] sm:$0x1]
      %v295 = vsel %vm293, 0, %v294
      %296 = vst [vmem:[#allocation2] sm:$0x1] %v295
      %v297 = vld [vmem:[#allocation2 + $0x8] sm:$0x1]
      %v298 = vsel %vm293, 0, %v297
      %299 = vst [vmem:[#allocation2 + $0x8] sm:$0x1] %v298
      %v300 = vld [vmem:[#allocation2 + $0x10] sm:$0x1]
      %v301 = vsel %vm293, 0, %v300
      %302 = vst [vmem:[#allocation2 + $0x10] sm:$0x1] %v301
      %v303 = vld [vmem:[#allocation2 + $0x18] sm:$0x1]
      %v304 = vsel %vm293, 0, %v303
      %305 = vst [vmem:[#allocation2 + $0x18] sm:$0x1] %v304
      %v306 = vld [vmem:[#allocation2 + $0x20] sm:$0x1]
      %v307 = vsel %vm293, 0, %v306
      %308 = vst [vmem:[#allocation2 + $0x20] sm:$0x1] %v307
      %v309 = vld [vmem:[#allocation2 + $0x28] sm:$0x1]
      %v310 = vsel %vm293, 0, %v309
      %311 = vst [vmem:[#allocation2 + $0x28] sm:$0x1] %v310
      %v312 = vld [vmem:[#allocation2 + $0x30] sm:$0x1]
      %v313 = vsel %vm293, 0, %v312
      %314 = vst [vmem:[#allocation2 + $0x30] sm:$0x1] %v313
      %v315 = vld [vmem:[#allocation2 + $0x38] sm:$0x1]
      %v316 = vsel %vm293, 0, %v315
      %317 = vst [vmem:[#allocation2 + $0x38] sm:$0x1] %v316
      %v318 = vld [vmem:[#allocation2 + $0x40] sm:$0x1]
      %v319 = vsel %vm293, 0, %v318
      %320 = vst [vmem:[#allocation2 + $0x40] sm:$0x1] %v319
      %v321 = vld [vmem:[#allocation2 + $0x48] sm:$0x1]
      %v322 = vsel %vm293, 0, %v321
      %323 = vst [vmem:[#allocation2 + $0x48] sm:$0x1] %v322
      %vm324 = vcmask 28676
      %vm325 = vsmask.f32 7954
      %vm326 = vmand %vm324, %vm325
      %v327 = vld [vmem:[#allocation2] sm:$0x10]
      %v328 = vsel %vm326, 0, %v327
      %329 = vst [vmem:[#allocation2] sm:$0x10] %v328
      %v330 = vld [vmem:[#allocation2 + $0x8] sm:$0x10]
      %v331 = vsel %vm326, 0, %v330
      %332 = vst [vmem:[#allocation2 + $0x8] sm:$0x10] %v331
      %v333 = vld [vmem:[#allocation2 + $0x10] sm:$0x10]
      %v334 = vsel %vm326, 0, %v333
      %335 = vst [vmem:[#allocation2 + $0x10] sm:$0x10] %v334
      %v336 = vld [vmem:[#allocation2 + $0x18] sm:$0x10]
      %v337 = vsel %vm326, 0, %v336
      %338 = vst [vmem:[#allocation2 + $0x18] sm:$0x10] %v337
      %v339 = vld [vmem:[#allocation2 + $0x20] sm:$0x10]
      %v340 = vsel %vm326, 0, %v339
      %341 = vst [vmem:[#allocation2 + $0x20] sm:$0x10] %v340
      %v342 = vld [vmem:[#allocation2 + $0x28] sm:$0x10]
      %v343 = vsel %vm326, 0, %v342
      %344 = vst [vmem:[#allocation2 + $0x28] sm:$0x10] %v343
      %v345 = vld [vmem:[#allocation2 + $0x30] sm:$0x10]
      %v346 = vsel %vm326, 0, %v345
      %347 = vst [vmem:[#allocation2 + $0x30] sm:$0x10] %v346
      %v348 = vld [vmem:[#allocation2 + $0x38] sm:$0x10]
      %v349 = vsel %vm326, 0, %v348
      %350 = vst [vmem:[#allocation2 + $0x38] sm:$0x10] %v349
      %v351 = vld [vmem:[#allocation2 + $0x40] sm:$0x10]
      %v352 = vsel %vm326, 0, %v351
      %353 = vst [vmem:[#allocation2 + $0x40] sm:$0x10] %v352
      %v354 = vld [vmem:[#allocation2 + $0x48] sm:$0x10]
      %v355 = vsel %vm326, 0, %v354
      %356 = vst [vmem:[#allocation2 + $0x48] sm:$0x10] %v355
      %v365 = vunpack.c.l.b16 %v279
      %v366 = vunpack.c.l.b16 %v280
      %v367 = vunpack.c.l.b16 %v281
      %v368 = vunpack.c.l.b16 %v282
      %v369 = vunpack.c.l.b16 %v283
      %v370 = vunpack.c.l.b16 %v284
      %v371 = vunpack.c.l.b16 %v285
      %v372 = vunpack.c.l.b16 %v286
      %v373 = vpack.c.b16 %v365, %v365
      %v374 = vpack.c.b16 %v366, %v366
      %v375 = vpack.c.b16 %v367, %v367
      %v376 = vpack.c.b16 %v368, %v368
      %v377 = vpack.c.b16 %v369, %v369
      %v378 = vpack.c.b16 %v370, %v370
      %v379 = vpack.c.b16 %v371, %v371
      %v380 = vpack.c.b16 %v372, %v372
      %v382 = vshrl.u32 %v373, 16
      %v384 = vrot.slane %v382, 7
      %v385 = vshll.u32 %v373, 16
      %v387 = vor.u32 %v384, %v385
      %v389 = vshrl.u32 %v374, 16
      %v391 = vrot.slane %v389, 7
      %v392 = vshll.u32 %v374, 16
      %v394 = vor.u32 %v391, %v392
      %v396 = vshrl.u32 %v375, 16
      %v398 = vrot.slane %v396, 7
      %v399 = vshll.u32 %v375, 16
      %v401 = vor.u32 %v398, %v399
      %v403 = vshrl.u32 %v376, 16
      %v405 = vrot.slane %v403, 7
      %v406 = vshll.u32 %v376, 16
      %v408 = vor.u32 %v405, %v406
      %v410 = vshrl.u32 %v377, 16
      %v412 = vrot.slane %v410, 7
      %v413 = vshll.u32 %v377, 16
      %v415 = vor.u32 %v412, %v413
      %v417 = vshrl.u32 %v378, 16
      %v419 = vrot.slane %v417, 7
      %v420 = vshll.u32 %v378, 16
      %v422 = vor.u32 %v419, %v420
      %v424 = vshrl.u32 %v379, 16
      %v426 = vrot.slane %v424, 7
      %v427 = vshll.u32 %v379, 16
      %v429 = vor.u32 %v426, %v427
      %v431 = vshrl.u32 %v380, 16
      %v433 = vrot.slane %v431, 7
      %v434 = vshll.u32 %v380, 16
      %v436 = vor.u32 %v433, %v434
      %s445 = scalar_lea.vmem [#allocation2], 8
      %vm446 = vcmask 28672
      %vm447 = vsmask.f32 4354
      %vm448 = vmand %vm446, %vm447
      %v449 = vld [vmem:[%s445] sm:$0x1f]
      %v450 = vsel %vm448, %v387, %v449
      %451 = vst [vmem:[%s445] sm:$0x1f] %v450
      %v452 = vld [vmem:[%s445 + $0x8] sm:$0x1f]
      %v453 = vsel %vm448, %v394, %v452
      %454 = vst [vmem:[%s445 + $0x8] sm:$0x1f] %v453
      %v455 = vld [vmem:[%s445 + $0x10] sm:$0x1f]
      %v456 = vsel %vm448, %v401, %v455
      %457 = vst [vmem:[%s445 + $0x10] sm:$0x1f] %v456
      %v458 = vld [vmem:[%s445 + $0x18] sm:$0x1f]
      %v459 = vsel %vm448, %v408, %v458
      %460 = vst [vmem:[%s445 + $0x18] sm:$0x1f] %v459
      %v461 = vld [vmem:[%s445 + $0x20] sm:$0x1f]
      %v462 = vsel %vm448, %v415, %v461
      %463 = vst [vmem:[%s445 + $0x20] sm:$0x1f] %v462
      %v464 = vld [vmem:[%s445 + $0x28] sm:$0x1f]
      %v465 = vsel %vm448, %v422, %v464
      %466 = vst [vmem:[%s445 + $0x28] sm:$0x1f] %v465
      %v467 = vld [vmem:[%s445 + $0x30] sm:$0x1f]
      %v468 = vsel %vm448, %v429, %v467
      %469 = vst [vmem:[%s445 + $0x30] sm:$0x1f] %v468
      %v470 = vld [vmem:[%s445 + $0x38] sm:$0x1f]
      %v471 = vsel %vm448, %v436, %v470
      %472 = vst [vmem:[%s445 + $0x38] sm:$0x1f] %v471
      %v473 = vld [vmem:[#allocation2] sm:$0xf]
      %v474 = vld [vmem:[#allocation2 + $0x8] sm:$0xf]
      %v475 = vld [vmem:[#allocation2 + $0x10] sm:$0xf]
      %v476 = vld [vmem:[#allocation2 + $0x18] sm:$0xf]
      %v477 = vld [vmem:[#allocation2 + $0x20] sm:$0xf]
      %v478 = vld [vmem:[#allocation2 + $0x28] sm:$0xf]
      %v479 = vld [vmem:[#allocation2 + $0x30] sm:$0xf]
      %v480 = vld [vmem:[#allocation2 + $0x38] sm:$0xf]
      %v481 = vld [vmem:[%s1] sm:$0x3]
      %v482 = vld [vmem:[#allocation2] sm:$0x1f]
      %v483 = vld [vmem:[#allocation2 + $0x8] sm:$0x1f]
      %v484 = vld [vmem:[#allocation2 + $0x10] sm:$0x1f]
      %v485 = vld [vmem:[#allocation2 + $0x18] sm:$0x1f]
      %v486 = vld [vmem:[#allocation2 + $0x20] sm:$0x1f]
      %v487 = vld [vmem:[#allocation2 + $0x28] sm:$0x1f]
      %v488 = vld [vmem:[#allocation2 + $0x30] sm:$0x1f]
      %v489 = vld [vmem:[#allocation2 + $0x38] sm:$0x1f]
      %v498 = vunpack.c.l.b16 %v482
      %v499 = vunpack.c.h.b16 %v482
      %v500 = vunpack.c.l.b16 %v483
      %v501 = vunpack.c.h.b16 %v483
      %v502 = vunpack.c.l.b16 %v484
      %v503 = vunpack.c.h.b16 %v484
      %v504 = vunpack.c.l.b16 %v485
      %v505 = vunpack.c.h.b16 %v485
      %v506 = vunpack.c.l.b16 %v486
      %v507 = vunpack.c.h.b16 %v486
      %v508 = vunpack.c.l.b16 %v487
      %v509 = vunpack.c.h.b16 %v487
      %v510 = vunpack.c.l.b16 %v488
      %v511 = vunpack.c.h.b16 %v488
      %v512 = vunpack.c.l.b16 %v489
      %v513 = vunpack.c.h.b16 %v489
      %v514 = vpack.c.b16 %v498, %v498
      %v515 = vpack.c.b16 %v499, %v499
      %v516 = vpack.c.b16 %v500, %v500
      %v517 = vpack.c.b16 %v501, %v501
      %v518 = vpack.c.b16 %v502, %v502
      %v519 = vpack.c.b16 %v503, %v503
      %v520 = vpack.c.b16 %v504, %v504
      %v521 = vpack.c.b16 %v505, %v505
      %v522 = vpack.c.b16 %v506, %v506
      %v523 = vpack.c.b16 %v507, %v507
      %v524 = vpack.c.b16 %v508, %v508
      %v525 = vpack.c.b16 %v509, %v509
      %v526 = vpack.c.b16 %v510, %v510
      %v527 = vpack.c.b16 %v511, %v511
      %v528 = vpack.c.b16 %v512, %v512
      %v529 = vpack.c.b16 %v513, %v513
      %vm530 = vsmask.f32 3328
      %vm531 = vsmask.f32 7440
      %vm532 = vmor %vm530, %vm531
      %v534 = vshrl.u32 %v514, 16
      %v536 = vrot.slane %v534, 4
      %v537 = vshll.u32 %v514, 16
      %v539 = vrot.slane %v537, 5
      %v540 = vor.u32 %v536, %v539
      %v541 = vrot.slane %v540, 4
      %v543 = vshll.u32 %v515, 16
      %v545 = vrot.slane %v543, 5
      %v546 = vsel %vm532, %v541, %v545
      %v548 = vshrl.u32 %v516, 16
      %v550 = vrot.slane %v548, 4
      %v551 = vshll.u32 %v516, 16
      %v553 = vrot.slane %v551, 5
      %v554 = vor.u32 %v550, %v553
      %v555 = vrot.slane %v554, 4
      %v557 = vshll.u32 %v517, 16
      %v559 = vrot.slane %v557, 5
      %v560 = vsel %vm532, %v555, %v559
      %v562 = vshrl.u32 %v518, 16
      %v564 = vrot.slane %v562, 4
      %v565 = vshll.u32 %v518, 16
      %v567 = vrot.slane %v565, 5
      %v568 = vor.u32 %v564, %v567
      %v569 = vrot.slane %v568, 4
      %v571 = vshll.u32 %v519, 16
      %v573 = vrot.slane %v571, 5
      %v574 = vsel %vm532, %v569, %v573
      %v576 = vshrl.u32 %v520, 16
      %v578 = vrot.slane %v576, 4
      %v579 = vshll.u32 %v520, 16
      %v581 = vrot.slane %v579, 5
      %v582 = vor.u32 %v578, %v581
      %v583 = vrot.slane %v582, 4
      %v585 = vshll.u32 %v521, 16
      %v587 = vrot.slane %v585, 5
      %v588 = vsel %vm532, %v583, %v587
      %v590 = vshrl.u32 %v522, 16
      %v592 = vrot.slane %v590, 4
      %v593 = vshll.u32 %v522, 16
      %v595 = vrot.slane %v593, 5
      %v596 = vor.u32 %v592, %v595
      %v597 = vrot.slane %v596, 4
      %v599 = vshll.u32 %v523, 16
      %v601 = vrot.slane %v599, 5
      %v602 = vsel %vm532, %v597, %v601
      %v604 = vshrl.u32 %v524, 16
      %v606 = vrot.slane %v604, 4
      %v607 = vshll.u32 %v524, 16
      %v609 = vrot.slane %v607, 5
      %v610 = vor.u32 %v606, %v609
      %v611 = vrot.slane %v610, 4
      %v613 = vshll.u32 %v525, 16
      %v615 = vrot.slane %v613, 5
      %v616 = vsel %vm532, %v611, %v615
      %v618 = vshrl.u32 %v526, 16
      %v620 = vrot.slane %v618, 4
      %v621 = vshll.u32 %v526, 16
      %v623 = vrot.slane %v621, 5
      %v624 = vor.u32 %v620, %v623
      %v625 = vrot.slane %v624, 4
      %v627 = vshll.u32 %v527, 16
      %v629 = vrot.slane %v627, 5
      %v630 = vsel %vm532, %v625, %v629
      %v632 = vshrl.u32 %v528, 16
      %v634 = vrot.slane %v632, 4
      %v635 = vshll.u32 %v528, 16
      %v637 = vrot.slane %v635, 5
      %v638 = vor.u32 %v634, %v637
      %v639 = vrot.slane %v638, 4
      %v641 = vshll.u32 %v529, 16
      %v643 = vrot.slane %v641, 5
      %v644 = vsel %vm532, %v639, %v643
      %s645 = scalar_lea.vmem %s1, 2
      %v646 = vld [vmem:[%s645] sm:$0x3]
      %v647 = vunpack.c.l.b16 %v546
      %v648 = vunpack.c.l.b16 %v560
      %v649 = vunpack.c.l.b16 %v574
      %v650 = vunpack.c.l.b16 %v588
      %v651 = vunpack.c.l.b16 %v602
      %v652 = vunpack.c.l.b16 %v616
      %v653 = vunpack.c.l.b16 %v630
      %v654 = vunpack.c.l.b16 %v644
      %v655 = vpack.c.b16 %v648, %v647
      %v656 = vpack.c.b16 %v650, %v649
      %v657 = vpack.c.b16 %v652, %v651
      %v658 = vpack.c.b16 %v654, %v653
      %v660 = vsel %vm287, %v655, 0
      %v663 = vsel %vm287, %v656, 0
      %v666 = vsel %vm287, %v657, 0
      %v669 = vsel %vm287, %v658, 0
      %vm671 = vcmask 1041408
      %v673 = vsel %vm671, %v646, 0
      %675 = vmatprep.subr.bf16.mxu0 0
      %676 = vmatpush1.bf16.msra.mxu0 %v673
      %677 = vmatprep.subr.bf16.mxu0 0
      %678 = vmatpush1.bf16.msra.mxu0 0
      %679 = vmatprep.subr.bf16.mxu0 0
      %680 = vmatpush1.bf16.msra.mxu0 0
      %681 = vmatprep.subr.bf16.mxu0 0
      %682 = vmatpush1.bf16.msra.mxu0 0
      %683 = vmatprep.subr.bf16.mxu0 0
      %684 = vmatpush1.bf16.msra.mxu0 0
      %685 = vmatprep.subr.bf16.mxu0 0
      %686 = vmatpush1.bf16.msra.mxu0 0
      %687 = vmatprep.subr.bf16.mxu0 0
      %688 = vmatpush1.bf16.msra.mxu0 0
      %689 = vmatprep.subr.bf16.mxu0 0
      %690 = vmatpush1.bf16.msra.mxu0 0
      %691 = vmatprep.subr.bf16.mxu0 0
      %692 = vmatpush1.bf16.msra.mxu0 0
      %693 = vmatprep.subr.bf16.mxu0 0
      %694 = vmatpush1.bf16.msra.mxu0 0
      %695 = vmatprep.subr.bf16.mxu0 0
      %696 = vmatpush1.bf16.msra.mxu0 0
      %697 = vmatprep.subr.bf16.mxu0 0
      %698 = vmatpush1.bf16.msra.mxu0 0
      %699 = vmatprep.subr.bf16.mxu0 0
      %700 = vmatpush1.bf16.msra.mxu0 0
      %701 = vmatprep.subr.bf16.mxu0 0
      %702 = vmatpush1.bf16.msra.mxu0 0
      %703 = vmatprep.subr.bf16.mxu0 0
      %704 = vmatpush1.bf16.msra.mxu0 0
      %705 = vmatprep.subr.bf16.mxu0 0
      %706 = vmatpush1.bf16.msra.mxu0 0
      %707 = vmatprep.mubr.bf16.mxu0 0
      %708 = vmatmul.mubr.bf16.gmra.mrb[0].mxu0 %v660
      %v709 = vpop.f32.mrb[0].mxu0
      %v710 = vadd.f32 0.0, %v709
      %v711 = vpop.f32.mrb[0].mxu0
      %v712 = vpop.f32.mrb[0].mxu0
      %v713 = vadd.f32 0.0, %v712
      %v714 = vpop.f32.mrb[0].mxu0
      %715 = vmatprep.mubr.bf16.mxu0 0
      %716 = vmatmul.mubr.bf16.gmra.mrb[0].mxu0 %v663
      %v717 = vpop.f32.mrb[0].mxu0
      %v718 = vadd.f32 0.0, %v717
      %v719 = vpop.f32.mrb[0].mxu0
      %v720 = vpop.f32.mrb[0].mxu0
      %v721 = vadd.f32 0.0, %v720
      %v722 = vpop.f32.mrb[0].mxu0
      %723 = vmatprep.mubr.bf16.mxu0 0
      %724 = vmatmul.mubr.bf16.gmra.mrb[0].mxu0 %v666
      %v725 = vpop.f32.mrb[0].mxu0
      %v726 = vadd.f32 0.0, %v725
      %v727 = vpop.f32.mrb[0].mxu0
      %v728 = vpop.f32.mrb[0].mxu0
      %v729 = vadd.f32 0.0, %v728
      %v730 = vpop.f32.mrb[0].mxu0
      %731 = vmatprep.mubr.bf16.mxu0 0
      %732 = vmatmul.mubr.bf16.gmra.mrb[0].mxu0 %v669
      %v733 = vpop.f32.mrb[0].mxu0
      %v734 = vadd.f32 0.0, %v733
      %v735 = vpop.f32.mrb[0].mxu0
      %v736 = vpop.f32.mrb[0].mxu0
      %v737 = vadd.f32 0.0, %v736
      %v738 = vpop.f32.mrb[0].mxu0
      %739 = vdwg.mxu0
      %v748 = vunpack.c.l.b16 %v473
      %v749 = vunpack.c.l.b16 %v474
      %v750 = vunpack.c.l.b16 %v475
      %v751 = vunpack.c.l.b16 %v476
      %v752 = vunpack.c.l.b16 %v477
      %v753 = vunpack.c.l.b16 %v478
      %v754 = vunpack.c.l.b16 %v479
      %v755 = vunpack.c.l.b16 %v480
      %v756 = vpack.c.b16 %v749, %v748
      %v757 = vpack.c.b16 %v751, %v750
      %v758 = vpack.c.b16 %v753, %v752
      %v759 = vpack.c.b16 %v755, %v754
      %v761 = vsel %vm287, %v756, 0
      %v764 = vsel %vm287, %v757, 0
      %v767 = vsel %vm287, %v758, 0
      %v770 = vsel %vm287, %v759, 0
      %v773 = vsel %vm671, %v481, 0
      %775 = vmatprep.subr.bf16.mxu0 0
      %776 = vmatpush1.bf16.msra.mxu0 %v773
      %777 = vmatprep.subr.bf16.mxu0 0
      %778 = vmatpush1.bf16.msra.mxu0 0
      %779 = vmatprep.subr.bf16.mxu0 0
      %780 = vmatpush1.bf16.msra.mxu0 0
      %781 = vmatprep.subr.bf16.mxu0 0
      %782 = vmatpush1.bf16.msra.mxu0 0
      %783 = vmatprep.subr.bf16.mxu0 0
      %784 = vmatpush1.bf16.msra.mxu0 0
      %785 = vmatprep.subr.bf16.mxu0 0
      %786 = vmatpush1.bf16.msra.mxu0 0
      %787 = vmatprep.subr.bf16.mxu0 0
      %788 = vmatpush1.bf16.msra.mxu0 0
      %789 = vmatprep.subr.bf16.mxu0 0
      %790 = vmatpush1.bf16.msra.mxu0 0
      %791 = vmatprep.subr.bf16.mxu0 0
      %792 = vmatpush1.bf16.msra.mxu0 0
      %793 = vmatprep.subr.bf16.mxu0 0
      %794 = vmatpush1.bf16.msra.mxu0 0
      %795 = vmatprep.subr.bf16.mxu0 0
      %796 = vmatpush1.bf16.msra.mxu0 0
      %797 = vmatprep.subr.bf16.mxu0 0
      %798 = vmatpush1.bf16.msra.mxu0 0
      %799 = vmatprep.subr.bf16.mxu0 0
      %800 = vmatpush1.bf16.msra.mxu0 0
      %801 = vmatprep.subr.bf16.mxu0 0
      %802 = vmatpush1.bf16.msra.mxu0 0
      %803 = vmatprep.subr.bf16.mxu0 0
      %804 = vmatpush1.bf16.msra.mxu0 0
      %805 = vmatprep.subr.bf16.mxu0 0
      %806 = vmatpush1.bf16.msra.mxu0 0
      %807 = vmatprep.mubr.bf16.mxu0 0
      %808 = vmatmul.mubr.bf16.gmra.mrb[0].mxu0 %v761
      %v809 = vpop.f32.mrb[0].mxu0
      %v810 = vadd.f32 %v710, %v809
      %v811 = vpop.f32.mrb[0].mxu0
      %v812 = vpop.f32.mrb[0].mxu0
      %v813 = vadd.f32 %v713, %v812
      %v814 = vpop.f32.mrb[0].mxu0
      %815 = vmatprep.mubr.bf16.mxu0 0
      %816 = vmatmul.mubr.bf16.gmra.mrb[0].mxu0 %v764
      %v817 = vpop.f32.mrb[0].mxu0
      %v818 = vadd.f32 %v718, %v817
      %v819 = vpop.f32.mrb[0].mxu0
      %v820 = vpop.f32.mrb[0].mxu0
      %v821 = vadd.f32 %v721, %v820
      %v822 = vpop.f32.mrb[0].mxu0
      %823 = vmatprep.mubr.bf16.mxu0 0
      %824 = vmatmul.mubr.bf16.gmra.mrb[0].mxu0 %v767
      %v825 = vpop.f32.mrb[0].mxu0
      %v826 = vadd.f32 %v726, %v825
      %v827 = vpop.f32.mrb[0].mxu0
      %v828 = vpop.f32.mrb[0].mxu0
      %v829 = vadd.f32 %v729, %v828
      %v830 = vpop.f32.mrb[0].mxu0
      %831 = vmatprep.mubr.bf16.mxu0 0
      %832 = vmatmul.mubr.bf16.gmra.mrb[0].mxu0 %v770
      %v833 = vpop.f32.mrb[0].mxu0
      %v834 = vadd.f32 %v734, %v833
      %v835 = vpop.f32.mrb[0].mxu0
      %v836 = vpop.f32.mrb[0].mxu0
      %v837 = vadd.f32 %v737, %v836
      %v838 = vpop.f32.mrb[0].mxu0
      %839 = vdwg.mxu0
      %v840 = vld [vmem:[#allocation2] sm:$0x1e]
      %v841 = vld [vmem:[#allocation2 + $0x8] sm:$0x1e]
      %v842 = vld [vmem:[#allocation2 + $0x10] sm:$0x1e]
      %v843 = vld [vmem:[#allocation2 + $0x18] sm:$0x1e]
      %v844 = vld [vmem:[#allocation2 + $0x20] sm:$0x1e]
      %v845 = vld [vmem:[#allocation2 + $0x28] sm:$0x1e]
      %v846 = vld [vmem:[#allocation2 + $0x30] sm:$0x1e]
      %v847 = vld [vmem:[#allocation2 + $0x38] sm:$0x1e]
      %v856 = vunpack.c.l.b16 %v840
      %v857 = vunpack.c.h.b16 %v840
      %v858 = vunpack.c.l.b16 %v841
      %v859 = vunpack.c.h.b16 %v841
      %v860 = vunpack.c.l.b16 %v842
      %v861 = vunpack.c.h.b16 %v842
      %v862 = vunpack.c.l.b16 %v843
      %v863 = vunpack.c.h.b16 %v843
      %v864 = vunpack.c.l.b16 %v844
      %v865 = vunpack.c.h.b16 %v844
      %v866 = vunpack.c.l.b16 %v845
      %v867 = vunpack.c.h.b16 %v845
      %v868 = vunpack.c.l.b16 %v846
      %v869 = vunpack.c.h.b16 %v846
      %v870 = vunpack.c.l.b16 %v847
      %v871 = vunpack.c.h.b16 %v847
      %v872 = vpack.c.b16 %v856, %v856
      %v873 = vpack.c.b16 %v857, %v857
      %v874 = vpack.c.b16 %v858, %v858
      %v875 = vpack.c.b16 %v859, %v859
      %v876 = vpack.c.b16 %v860, %v860
      %v877 = vpack.c.b16 %v861, %v861
      %v878 = vpack.c.b16 %v862, %v862
      %v879 = vpack.c.b16 %v863, %v863
      %v880 = vpack.c.b16 %v864, %v864
      %v881 = vpack.c.b16 %v865, %v865
      %v882 = vpack.c.b16 %v866, %v866
      %v883 = vpack.c.b16 %v867, %v867
      %v884 = vpack.c.b16 %v868, %v868
      %v885 = vpack.c.b16 %v869, %v869
      %v886 = vpack.c.b16 %v870, %v870
      %v887 = vpack.c.b16 %v871, %v871
      %vm888 = vcmask 1042432
      %vm889 = vcmask 1046532
      %vm890 = vmor %vm888, %vm889
      %v891 = vrot.slane %v872, 5
      %v892 = vrot.slane %v891, 4
      %v893 = vrot.slane %v873, 5
      %v894 = vsel %vm890, %v892, %v893
      %v895 = vrot.slane %v874, 5
      %v896 = vrot.slane %v895, 4
      %v897 = vrot.slane %v875, 5
      %v898 = vsel %vm890, %v896, %v897
      %v899 = vrot.slane %v876, 5
      %v900 = vrot.slane %v899, 4
      %v901 = vrot.slane %v877, 5
      %v902 = vsel %vm890, %v900, %v901
      %v903 = vrot.slane %v878, 5
      %v904 = vrot.slane %v903, 4
      %v905 = vrot.slane %v879, 5
      %v906 = vsel %vm890, %v904, %v905
      %v907 = vrot.slane %v880, 5
      %v908 = vrot.slane %v907, 4
      %v909 = vrot.slane %v881, 5
      %v910 = vsel %vm890, %v908, %v909
      %v911 = vrot.slane %v882, 5
      %v912 = vrot.slane %v911, 4
      %v913 = vrot.slane %v883, 5
      %v914 = vsel %vm890, %v912, %v913
      %v915 = vrot.slane %v884, 5
      %v916 = vrot.slane %v915, 4
      %v917 = vrot.slane %v885, 5
      %v918 = vsel %vm890, %v916, %v917
      %v919 = vrot.slane %v886, 5
      %v920 = vrot.slane %v919, 4
      %v921 = vrot.slane %v887, 5
      %v922 = vsel %vm890, %v920, %v921
      %s923 = scalar_lea.vmem %s1, 4
      %v924 = vld [vmem:[%s923] sm:$0x3]
      %v925 = vunpack.c.l.b16 %v894
      %v926 = vunpack.c.l.b16 %v898
      %v927 = vunpack.c.l.b16 %v902
      %v928 = vunpack.c.l.b16 %v906
      %v929 = vunpack.c.l.b16 %v910
      %v930 = vunpack.c.l.b16 %v914
      %v931 = vunpack.c.l.b16 %v918
      %v932 = vunpack.c.l.b16 %v922
      %v933 = vpack.c.b16 %v926, %v925
      %v934 = vpack.c.b16 %v928, %v927
      %v935 = vpack.c.b16 %v930, %v929
      %v936 = vpack.c.b16 %v932, %v931
      %v938 = vsel %vm287, %v933, 0
      %v941 = vsel %vm287, %v934, 0
      %v944 = vsel %vm287, %v935, 0
      %v947 = vsel %vm287, %v936, 0
      %v950 = vsel %vm671, %v924, 0
      %952 = vmatprep.subr.bf16.mxu0 0
      %953 = vmatpush1.bf16.msra.mxu0 %v950
      %954 = vmatprep.subr.bf16.mxu0 0
      %955 = vmatpush1.bf16.msra.mxu0 0
      %956 = vmatprep.subr.bf16.mxu0 0
      %957 = vmatpush1.bf16.msra.mxu0 0
      %958 = vmatprep.subr.bf16.mxu0 0
      %959 = vmatpush1.bf16.msra.mxu0 0
      %960 = vmatprep.subr.bf16.mxu0 0
      %961 = vmatpush1.bf16.msra.mxu0 0
      %962 = vmatprep.subr.bf16.mxu0 0
      %963 = vmatpush1.bf16.msra.mxu0 0
      %964 = vmatprep.subr.bf16.mxu0 0
      %965 = vmatpush1.bf16.msra.mxu0 0
      %966 = vmatprep.subr.bf16.mxu0 0
      %967 = vmatpush1.bf16.msra.mxu0 0
      %968 = vmatprep.subr.bf16.mxu0 0
      %969 = vmatpush1.bf16.msra.mxu0 0
      %970 = vmatprep.subr.bf16.mxu0 0
      %971 = vmatpush1.bf16.msra.mxu0 0
      %972 = vmatprep.subr.bf16.mxu0 0
      %973 = vmatpush1.bf16.msra.mxu0 0
      %974 = vmatprep.subr.bf16.mxu0 0
      %975 = vmatpush1.bf16.msra.mxu0 0
      %976 = vmatprep.subr.bf16.mxu0 0
      %977 = vmatpush1.bf16.msra.mxu0 0
      %978 = vmatprep.subr.bf16.mxu0 0
      %979 = vmatpush1.bf16.msra.mxu0 0
      %980 = vmatprep.subr.bf16.mxu0 0
      %981 = vmatpush1.bf16.msra.mxu0 0
      %982 = vmatprep.subr.bf16.mxu0 0
      %983 = vmatpush1.bf16.msra.mxu0 0
      %984 = vmatprep.mubr.bf16.mxu0 0
      %985 = vmatmul.mubr.bf16.gmra.mrb[0].mxu0 %v938
      %v986 = vpop.f32.mrb[0].mxu0
      %v987 = vadd.f32 0.0, %v986
      %v988 = vpop.f32.mrb[0].mxu0
      %v989 = vpop.f32.mrb[0].mxu0
      %v990 = vadd.f32 0.0, %v989
      %v991 = vpop.f32.mrb[0].mxu0
      %992 = vmatprep.mubr.bf16.mxu0 0
      %993 = vmatmul.mubr.bf16.gmra.mrb[0].mxu0 %v941
      %v994 = vpop.f32.mrb[0].mxu0
      %v995 = vadd.f32 0.0, %v994
      %v996 = vpop.f32.mrb[0].mxu0
      %v997 = vpop.f32.mrb[0].mxu0
      %v998 = vadd.f32 0.0, %v997
      %v999 = vpop.f32.mrb[0].mxu0
      %1000 = vmatprep.mubr.bf16.mxu0 0
      %1001 = vmatmul.mubr.bf16.gmra.mrb[0].mxu0 %v944
      %v1002 = vpop.f32.mrb[0].mxu0
      %v1003 = vadd.f32 0.0, %v1002
      %v1004 = vpop.f32.mrb[0].mxu0
      %v1005 = vpop.f32.mrb[0].mxu0
      %v1006 = vadd.f32 0.0, %v1005
      %v1007 = vpop.f32.mrb[0].mxu0
      %1008 = vmatprep.mubr.bf16.mxu0 0
      %1009 = vmatmul.mubr.bf16.gmra.mrb[0].mxu0 %v947
      %v1010 = vpop.f32.mrb[0].mxu0
      %v1011 = vadd.f32 0.0, %v1010
      %v1012 = vpop.f32.mrb[0].mxu0
      %v1013 = vpop.f32.mrb[0].mxu0
      %v1014 = vadd.f32 0.0, %v1013
      %v1015 = vpop.f32.mrb[0].mxu0
      %1016 = vdwg.mxu0
      %v1017 = vadd.f32 %v810, %v987
      %v1018 = vadd.f32 %v813, %v990
      %v1019 = vadd.f32 %v818, %v995
      %v1020 = vadd.f32 %v821, %v998
      %v1021 = vadd.f32 %v826, %v1003
      %v1022 = vadd.f32 %v829, %v1006
      %v1023 = vadd.f32 %v834, %v1011
      %v1024 = vadd.f32 %v837, %v1014
      %v1025 = vld [vmem:[%s445] sm:$0xf]
      %v1026 = vld [vmem:[%s445 + $0x8] sm:$0xf]
      %v1027 = vld [vmem:[%s445 + $0x10] sm:$0xf]
      %v1028 = vld [vmem:[%s445 + $0x18] sm:$0xf]
      %v1029 = vld [vmem:[%s445 + $0x20] sm:$0xf]
      %v1030 = vld [vmem:[%s445 + $0x28] sm:$0xf]
      %v1031 = vld [vmem:[%s445 + $0x30] sm:$0xf]
      %v1032 = vld [vmem:[%s445 + $0x38] sm:$0xf]
      %s1033 = scalar_lea.vmem %s1, 6
      %v1034 = vld [vmem:[%s1033] sm:$0x3]
      %v1043 = vunpack.c.l.b16 %v1025
      %v1044 = vunpack.c.l.b16 %v1026
      %v1045 = vunpack.c.l.b16 %v1027
      %v1046 = vunpack.c.l.b16 %v1028
      %v1047 = vunpack.c.l.b16 %v1029
      %v1048 = vunpack.c.l.b16 %v1030
      %v1049 = vunpack.c.l.b16 %v1031
      %v1050 = vunpack.c.l.b16 %v1032
      %v1051 = vpack.c.b16 %v1044, %v1043
      %v1052 = vpack.c.b16 %v1046, %v1045
      %v1053 = vpack.c.b16 %v1048, %v1047
      %v1054 = vpack.c.b16 %v1050, %v1049
      %v1056 = vsel %vm287, %v1051, 0
      %v1059 = vsel %vm287, %v1052, 0
      %v1062 = vsel %vm287, %v1053, 0
      %v1065 = vsel %vm287, %v1054, 0
      %v1068 = vsel %vm671, %v1034, 0
      %1070 = vmatprep.subr.bf16.mxu0 0
      %1071 = vmatpush1.bf16.msra.mxu0 %v1068
      %1072 = vmatprep.subr.bf16.mxu0 0
      %1073 = vmatpush1.bf16.msra.mxu0 0
      %1074 = vmatprep.subr.bf16.mxu0 0
      %1075 = vmatpush1.bf16.msra.mxu0 0
      %1076 = vmatprep.subr.bf16.mxu0 0
      %1077 = vmatpush1.bf16.msra.mxu0 0
      %1078 = vmatprep.subr.bf16.mxu0 0
      %1079 = vmatpush1.bf16.msra.mxu0 0
      %1080 = vmatprep.subr.bf16.mxu0 0
      %1081 = vmatpush1.bf16.msra.mxu0 0
      %1082 = vmatprep.subr.bf16.mxu0 0
      %1083 = vmatpush1.bf16.msra.mxu0 0
      %1084 = vmatprep.subr.bf16.mxu0 0
      %1085 = vmatpush1.bf16.msra.mxu0 0
      %1086 = vmatprep.subr.bf16.mxu0 0
      %1087 = vmatpush1.bf16.msra.mxu0 0
      %1088 = vmatprep.subr.bf16.mxu0 0
      %1089 = vmatpush1.bf16.msra.mxu0 0
      %1090 = vmatprep.subr.bf16.mxu0 0
      %1091 = vmatpush1.bf16.msra.mxu0 0
      %1092 = vmatprep.subr.bf16.mxu0 0
      %1093 = vmatpush1.bf16.msra.mxu0 0
      %1094 = vmatprep.subr.bf16.mxu0 0
      %1095 = vmatpush1.bf16.msra.mxu0 0
      %1096 = vmatprep.subr.bf16.mxu0 0
      %1097 = vmatpush1.bf16.msra.mxu0 0
      %1098 = vmatprep.subr.bf16.mxu0 0
      %1099 = vmatpush1.bf16.msra.mxu0 0
      %1100 = vmatprep.subr.bf16.mxu0 0
      %1101 = vmatpush1.bf16.msra.mxu0 0
      %1102 = vmatprep.mubr.bf16.mxu0 0
      %1103 = vmatmul.mubr.bf16.gmra.mrb[0].mxu0 %v1056
      %v1104 = vpop.f32.mrb[0].mxu0
      %v1105 = vadd.f32 0.0, %v1104
      %v1106 = vpop.f32.mrb[0].mxu0
      %v1107 = vpop.f32.mrb[0].mxu0
      %v1108 = vadd.f32 0.0, %v1107
      %v1109 = vpop.f32.mrb[0].mxu0
      %1110 = vmatprep.mubr.bf16.mxu0 0
      %1111 = vmatmul.mubr.bf16.gmra.mrb[0].mxu0 %v1059
      %v1112 = vpop.f32.mrb[0].mxu0
      %v1113 = vadd.f32 0.0, %v1112
      %v1114 = vpop.f32.mrb[0].mxu0
      %v1115 = vpop.f32.mrb[0].mxu0
      %v1116 = vadd.f32 0.0, %v1115
      %v1117 = vpop.f32.mrb[0].mxu0
      %1118 = vmatprep.mubr.bf16.mxu0 0
      %1119 = vmatmul.mubr.bf16.gmra.mrb[0].mxu0 %v1062
      %v1120 = vpop.f32.mrb[0].mxu0
      %v1121 = vadd.f32 0.0, %v1120
      %v1122 = vpop.f32.mrb[0].mxu0
      %v1123 = vpop.f32.mrb[0].mxu0
      %v1124 = vadd.f32 0.0, %v1123
      %v1125 = vpop.f32.mrb[0].mxu0
      %1126 = vmatprep.mubr.bf16.mxu0 0
      %1127 = vmatmul.mubr.bf16.gmra.mrb[0].mxu0 %v1065
      %v1128 = vpop.f32.mrb[0].mxu0
      %v1129 = vadd.f32 0.0, %v1128
      %v1130 = vpop.f32.mrb[0].mxu0
      %v1131 = vpop.f32.mrb[0].mxu0
      %v1132 = vadd.f32 0.0, %v1131
      %v1133 = vpop.f32.mrb[0].mxu0
      %1134 = vdwg.mxu0
      %v1135 = vadd.f32 %v1017, %v1105
      %v1136 = vadd.f32 %v1018, %v1108
      %v1137 = vadd.f32 %v1019, %v1113
      %v1138 = vadd.f32 %v1020, %v1116
      %v1139 = vadd.f32 %v1021, %v1121
      %v1140 = vadd.f32 %v1022, %v1124
      %v1141 = vadd.f32 %v1023, %v1129
      %v1142 = vadd.f32 %v1024, %v1132
      %v1143 = vld [vmem:[%s445] sm:$0x1f]
      %v1144 = vld [vmem:[%s445 + $0x8] sm:$0x1f]
      %v1145 = vld [vmem:[%s445 + $0x10] sm:$0x1f]
      %v1146 = vld [vmem:[%s445 + $0x18] sm:$0x1f]
      %v1147 = vld [vmem:[%s445 + $0x20] sm:$0x1f]
      %v1148 = vld [vmem:[%s445 + $0x28] sm:$0x1f]
      %v1149 = vld [vmem:[%s445 + $0x30] sm:$0x1f]
      %v1150 = vld [vmem:[%s445 + $0x38] sm:$0x1f]
      %v1159 = vunpack.c.l.b16 %v1143
      %v1160 = vunpack.c.h.b16 %v1143
      %v1161 = vunpack.c.l.b16 %v1144
      %v1162 = vunpack.c.h.b16 %v1144
      %v1163 = vunpack.c.l.b16 %v1145
      %v1164 = vunpack.c.h.b16 %v1145
      %v1165 = vunpack.c.l.b16 %v1146
      %v1166 = vunpack.c.h.b16 %v1146
      %v1167 = vunpack.c.l.b16 %v1147
      %v1168 = vunpack.c.h.b16 %v1147
      %v1169 = vunpack.c.l.b16 %v1148
      %v1170 = vunpack.c.h.b16 %v1148
      %v1171 = vunpack.c.l.b16 %v1149
      %v1172 = vunpack.c.h.b16 %v1149
      %v1173 = vunpack.c.l.b16 %v1150
      %v1174 = vunpack.c.h.b16 %v1150
      %v1175 = vpack.c.b16 %v1159, %v1159
      %v1176 = vpack.c.b16 %v1160, %v1160
      %v1177 = vpack.c.b16 %v1161, %v1161
      %v1178 = vpack.c.b16 %v1162, %v1162
      %v1179 = vpack.c.b16 %v1163, %v1163
      %v1180 = vpack.c.b16 %v1164, %v1164
      %v1181 = vpack.c.b16 %v1165, %v1165
      %v1182 = vpack.c.b16 %v1166, %v1166
      %v1183 = vpack.c.b16 %v1167, %v1167
      %v1184 = vpack.c.b16 %v1168, %v1168
      %v1185 = vpack.c.b16 %v1169, %v1169
      %v1186 = vpack.c.b16 %v1170, %v1170
      %v1187 = vpack.c.b16 %v1171, %v1171
      %v1188 = vpack.c.b16 %v1172, %v1172
      %v1189 = vpack.c.b16 %v1173, %v1173
      %v1190 = vpack.c.b16 %v1174, %v1174
      %v1192 = vshrl.u32 %v1175, 16
      %v1194 = vrot.slane %v1192, 4
      %v1195 = vshll.u32 %v1175, 16
      %v1197 = vrot.slane %v1195, 5
      %v1198 = vor.u32 %v1194, %v1197
      %v1199 = vrot.slane %v1198, 4
      %v1201 = vshll.u32 %v1176, 16
      %v1203 = vrot.slane %v1201, 5
      %v1204 = vsel %vm532, %v1199, %v1203
      %v1206 = vshrl.u32 %v1177, 16
      %v1208 = vrot.slane %v1206, 4
      %v1209 = vshll.u32 %v1177, 16
      %v1211 = vrot.slane %v1209, 5
      %v1212 = vor.u32 %v1208, %v1211
      %v1213 = vrot.slane %v1212, 4
      %v1215 = vshll.u32 %v1178, 16
      %v1217 = vrot.slane %v1215, 5
      %v1218 = vsel %vm532, %v1213, %v1217
      %v1220 = vshrl.u32 %v1179, 16
      %v1222 = vrot.slane %v1220, 4
      %v1223 = vshll.u32 %v1179, 16
      %v1225 = vrot.slane %v1223, 5
      %v1226 = vor.u32 %v1222, %v1225
      %v1227 = vrot.slane %v1226, 4
      %v1229 = vshll.u32 %v1180, 16
      %v1231 = vrot.slane %v1229, 5
      %v1232 = vsel %vm532, %v1227, %v1231
      %v1234 = vshrl.u32 %v1181, 16
      %v1236 = vrot.slane %v1234, 4
      %v1237 = vshll.u32 %v1181, 16
      %v1239 = vrot.slane %v1237, 5
      %v1240 = vor.u32 %v1236, %v1239
      %v1241 = vrot.slane %v1240, 4
      %v1243 = vshll.u32 %v1182, 16
      %v1245 = vrot.slane %v1243, 5
      %v1246 = vsel %vm532, %v1241, %v1245
      %v1248 = vshrl.u32 %v1183, 16
      %v1250 = vrot.slane %v1248, 4
      %v1251 = vshll.u32 %v1183, 16
      %v1253 = vrot.slane %v1251, 5
      %v1254 = vor.u32 %v1250, %v1253
      %v1255 = vrot.slane %v1254, 4
      %v1257 = vshll.u32 %v1184, 16
      %v1259 = vrot.slane %v1257, 5
      %v1260 = vsel %vm532, %v1255, %v1259
      %v1262 = vshrl.u32 %v1185, 16
      %v1264 = vrot.slane %v1262, 4
      %v1265 = vshll.u32 %v1185, 16
      %v1267 = vrot.slane %v1265, 5
      %v1268 = vor.u32 %v1264, %v1267
      %v1269 = vrot.slane %v1268, 4
      %v1271 = vshll.u32 %v1186, 16
      %v1273 = vrot.slane %v1271, 5
      %v1274 = vsel %vm532, %v1269, %v1273
      %v1276 = vshrl.u32 %v1187, 16
      %v1278 = vrot.slane %v1276, 4
      %v1279 = vshll.u32 %v1187, 16
      %v1281 = vrot.slane %v1279, 5
      %v1282 = vor.u32 %v1278, %v1281
      %v1283 = vrot.slane %v1282, 4
      %v1285 = vshll.u32 %v1188, 16
      %v1287 = vrot.slane %v1285, 5
      %v1288 = vsel %vm532, %v1283, %v1287
      %v1290 = vshrl.u32 %v1189, 16
      %v1292 = vrot.slane %v1290, 4
      %v1293 = vshll.u32 %v1189, 16
      %v1295 = vrot.slane %v1293, 5
      %v1296 = vor.u32 %v1292, %v1295
      %v1297 = vrot.slane %v1296, 4
      %v1299 = vshll.u32 %v1190, 16
      %v1301 = vrot.slane %v1299, 5
      %v1302 = vsel %vm532, %v1297, %v1301
      %s1303 = scalar_lea.vmem %s1, 8
      %v1304 = vld [vmem:[%s1303] sm:$0x3]
      %v1305 = vunpack.c.l.b16 %v1204
      %v1306 = vunpack.c.l.b16 %v1218
      %v1307 = vunpack.c.l.b16 %v1232
      %v1308 = vunpack.c.l.b16 %v1246
      %v1309 = vunpack.c.l.b16 %v1260
      %v1310 = vunpack.c.l.b16 %v1274
      %v1311 = vunpack.c.l.b16 %v1288
      %v1312 = vunpack.c.l.b16 %v1302
      %v1313 = vpack.c.b16 %v1306, %v1305
      %v1314 = vpack.c.b16 %v1308, %v1307
      %v1315 = vpack.c.b16 %v1310, %v1309
      %v1316 = vpack.c.b16 %v1312, %v1311
      %v1318 = vsel %vm287, %v1313, 0
      %v1321 = vsel %vm287, %v1314, 0
      %v1324 = vsel %vm287, %v1315, 0
      %v1327 = vsel %vm287, %v1316, 0
      %v1330 = vsel %vm671, %v1304, 0
      %1332 = vmatprep.subr.bf16.mxu0 0
      %1333 = vmatpush1.bf16.msra.mxu0 %v1330
      %1334 = vmatprep.subr.bf16.mxu0 0
      %1335 = vmatpush1.bf16.msra.mxu0 0
      %1336 = vmatprep.subr.bf16.mxu0 0
      %1337 = vmatpush1.bf16.msra.mxu0 0
      %1338 = vmatprep.subr.bf16.mxu0 0
      %1339 = vmatpush1.bf16.msra.mxu0 0
      %1340 = vmatprep.subr.bf16.mxu0 0
      %1341 = vmatpush1.bf16.msra.mxu0 0
      %1342 = vmatprep.subr.bf16.mxu0 0
      %1343 = vmatpush1.bf16.msra.mxu0 0
      %1344 = vmatprep.subr.bf16.mxu0 0
      %1345 = vmatpush1.bf16.msra.mxu0 0
      %1346 = vmatprep.subr.bf16.mxu0 0
      %1347 = vmatpush1.bf16.msra.mxu0 0
      %1348 = vmatprep.subr.bf16.mxu0 0
      %1349 = vmatpush1.bf16.msra.mxu0 0
      %1350 = vmatprep.subr.bf16.mxu0 0
      %1351 = vmatpush1.bf16.msra.mxu0 0
      %1352 = vmatprep.subr.bf16.mxu0 0
      %1353 = vmatpush1.bf16.msra.mxu0 0
      %1354 = vmatprep.subr.bf16.mxu0 0
      %1355 = vmatpush1.bf16.msra.mxu0 0
      %1356 = vmatprep.subr.bf16.mxu0 0
      %1357 = vmatpush1.bf16.msra.mxu0 0
      %1358 = vmatprep.subr.bf16.mxu0 0
      %1359 = vmatpush1.bf16.msra.mxu0 0
      %1360 = vmatprep.subr.bf16.mxu0 0
      %1361 = vmatpush1.bf16.msra.mxu0 0
      %1362 = vmatprep.subr.bf16.mxu0 0
      %1363 = vmatpush1.bf16.msra.mxu0 0
      %1364 = vmatprep.mubr.bf16.mxu0 0
      %1365 = vmatmul.mubr.bf16.gmra.mrb[0].mxu0 %v1318
      %v1366 = vpop.f32.mrb[0].mxu0
      %v1367 = vadd.f32 0.0, %v1366
      %v1368 = vpop.f32.mrb[0].mxu0
      %v1369 = vpop.f32.mrb[0].mxu0
      %v1370 = vadd.f32 0.0, %v1369
      %v1371 = vpop.f32.mrb[0].mxu0
      %1372 = vmatprep.mubr.bf16.mxu0 0
      %1373 = vmatmul.mubr.bf16.gmra.mrb[0].mxu0 %v1321
      %v1374 = vpop.f32.mrb[0].mxu0
      %v1375 = vadd.f32 0.0, %v1374
      %v1376 = vpop.f32.mrb[0].mxu0
      %v1377 = vpop.f32.mrb[0].mxu0
      %v1378 = vadd.f32 0.0, %v1377
      %v1379 = vpop.f32.mrb[0].mxu0
      %1380 = vmatprep.mubr.bf16.mxu0 0
      %1381 = vmatmul.mubr.bf16.gmra.mrb[0].mxu0 %v1324
      %v1382 = vpop.f32.mrb[0].mxu0
      %v1383 = vadd.f32 0.0, %v1382
      %v1384 = vpop.f32.mrb[0].mxu0
      %v1385 = vpop.f32.mrb[0].mxu0
      %v1386 = vadd.f32 0.0, %v1385
      %v1387 = vpop.f32.mrb[0].mxu0
      %1388 = vmatprep.mubr.bf16.mxu0 0
      %1389 = vmatmul.mubr.bf16.gmra.mrb[0].mxu0 %v1327
      %v1390 = vpop.f32.mrb[0].mxu0
      %v1391 = vadd.f32 0.0, %v1390
      %v1392 = vpop.f32.mrb[0].mxu0
      %v1393 = vpop.f32.mrb[0].mxu0
      %v1394 = vadd.f32 0.0, %v1393
      %v1395 = vpop.f32.mrb[0].mxu0
      %1396 = vdwg.mxu0
      %v1397 = vadd.f32 %v1135, %v1367
      %v1398 = vadd.f32 %v1136, %v1370
      %v1399 = vadd.f32 %v1137, %v1375
      %v1400 = vadd.f32 %v1138, %v1378
      %v1401 = vadd.f32 %v1139, %v1383
      %v1402 = vadd.f32 %v1140, %v1386
      %v1403 = vadd.f32 %v1141, %v1391
      %v1404 = vadd.f32 %v1142, %v1394
      %v1405 = vld [vmem:[%s445] sm:$0x1e]
      %v1406 = vld [vmem:[%s445 + $0x8] sm:$0x1e]
      %v1407 = vld [vmem:[%s445 + $0x10] sm:$0x1e]
      %v1408 = vld [vmem:[%s445 + $0x18] sm:$0x1e]
      %v1409 = vld [vmem:[%s445 + $0x20] sm:$0x1e]
      %v1410 = vld [vmem:[%s445 + $0x28] sm:$0x1e]
      %v1411 = vld [vmem:[%s445 + $0x30] sm:$0x1e]
      %v1412 = vld [vmem:[%s445 + $0x38] sm:$0x1e]
      %v1421 = vunpack.c.l.b16 %v1405
      %v1422 = vunpack.c.h.b16 %v1405
      %v1423 = vunpack.c.l.b16 %v1406
      %v1424 = vunpack.c.h.b16 %v1406
      %v1425 = vunpack.c.l.b16 %v1407
      %v1426 = vunpack.c.h.b16 %v1407
      %v1427 = vunpack.c.l.b16 %v1408
      %v1428 = vunpack.c.h.b16 %v1408
      %v1429 = vunpack.c.l.b16 %v1409
      %v1430 = vunpack.c.h.b16 %v1409
      %v1431 = vunpack.c.l.b16 %v1410
      %v1432 = vunpack.c.h.b16 %v1410
      %v1433 = vunpack.c.l.b16 %v1411
      %v1434 = vunpack.c.h.b16 %v1411
      %v1435 = vunpack.c.l.b16 %v1412
      %v1436 = vunpack.c.h.b16 %v1412
      %v1437 = vpack.c.b16 %v1421, %v1421
      %v1438 = vpack.c.b16 %v1422, %v1422
      %v1439 = vpack.c.b16 %v1423, %v1423
      %v1440 = vpack.c.b16 %v1424, %v1424
      %v1441 = vpack.c.b16 %v1425, %v1425
      %v1442 = vpack.c.b16 %v1426, %v1426
      %v1443 = vpack.c.b16 %v1427, %v1427
      %v1444 = vpack.c.b16 %v1428, %v1428
      %v1445 = vpack.c.b16 %v1429, %v1429
      %v1446 = vpack.c.b16 %v1430, %v1430
      %v1447 = vpack.c.b16 %v1431, %v1431
      %v1448 = vpack.c.b16 %v1432, %v1432
      %v1449 = vpack.c.b16 %v1433, %v1433
      %v1450 = vpack.c.b16 %v1434, %v1434
      %v1451 = vpack.c.b16 %v1435, %v1435
      %v1452 = vpack.c.b16 %v1436, %v1436
      %v1453 = vrot.slane %v1437, 5
      %v1454 = vrot.slane %v1453, 4
      %v1455 = vrot.slane %v1438, 5
      %v1456 = vsel %vm890, %v1454, %v1455
      %v1457 = vrot.slane %v1439, 5
      %v1458 = vrot.slane %v1457, 4
      %v1459 = vrot.slane %v1440, 5
      %v1460 = vsel %vm890, %v1458, %v1459
      %v1461 = vrot.slane %v1441, 5
      %v1462 = vrot.slane %v1461, 4
      %v1463 = vrot.slane %v1442, 5
      %v1464 = vsel %vm890, %v1462, %v1463
      %v1465 = vrot.slane %v1443, 5
      %v1466 = vrot.slane %v1465, 4
      %v1467 = vrot.slane %v1444, 5
      %v1468 = vsel %vm890, %v1466, %v1467
      %v1469 = vrot.slane %v1445, 5
      %v1470 = vrot.slane %v1469, 4
      %v1471 = vrot.slane %v1446, 5
      %v1472 = vsel %vm890, %v1470, %v1471
      %v1473 = vrot.slane %v1447, 5
      %v1474 = vrot.slane %v1473, 4
      %v1475 = vrot.slane %v1448, 5
      %v1476 = vsel %vm890, %v1474, %v1475
      %v1477 = vrot.slane %v1449, 5
      %v1478 = vrot.slane %v1477, 4
      %v1479 = vrot.slane %v1450, 5
      %v1480 = vsel %vm890, %v1478, %v1479
      %v1481 = vrot.slane %v1451, 5
      %v1482 = vrot.slane %v1481, 4
      %v1483 = vrot.slane %v1452, 5
      %v1484 = vsel %vm890, %v1482, %v1483
      %s1485 = scalar_lea.vmem %s1, 10
      %v1486 = vld [vmem:[%s1485] sm:$0x3]
      %v1487 = vunpack.c.l.b16 %v1456
      %v1488 = vunpack.c.l.b16 %v1460
      %v1489 = vunpack.c.l.b16 %v1464
      %v1490 = vunpack.c.l.b16 %v1468
      %v1491 = vunpack.c.l.b16 %v1472
      %v1492 = vunpack.c.l.b16 %v1476
      %v1493 = vunpack.c.l.b16 %v1480
      %v1494 = vunpack.c.l.b16 %v1484
      %v1495 = vpack.c.b16 %v1488, %v1487
      %v1496 = vpack.c.b16 %v1490, %v1489
      %v1497 = vpack.c.b16 %v1492, %v1491
      %v1498 = vpack.c.b16 %v1494, %v1493
      %v1500 = vsel %vm287, %v1495, 0
      %v1503 = vsel %vm287, %v1496, 0
      %v1506 = vsel %vm287, %v1497, 0
      %v1509 = vsel %vm287, %v1498, 0
      %v1512 = vsel %vm671, %v1486, 0
      %1514 = vmatprep.subr.bf16.mxu0 0
      %1515 = vmatpush1.bf16.msra.mxu0 %v1512
      %1516 = vmatprep.subr.bf16.mxu0 0
      %1517 = vmatpush1.bf16.msra.mxu0 0
      %1518 = vmatprep.subr.bf16.mxu0 0
      %1519 = vmatpush1.bf16.msra.mxu0 0
      %1520 = vmatprep.subr.bf16.mxu0 0
      %1521 = vmatpush1.bf16.msra.mxu0 0
      %1522 = vmatprep.subr.bf16.mxu0 0
      %1523 = vmatpush1.bf16.msra.mxu0 0
      %1524 = vmatprep.subr.bf16.mxu0 0
      %1525 = vmatpush1.bf16.msra.mxu0 0
      %1526 = vmatprep.subr.bf16.mxu0 0
      %1527 = vmatpush1.bf16.msra.mxu0 0
      %1528 = vmatprep.subr.bf16.mxu0 0
      %1529 = vmatpush1.bf16.msra.mxu0 0
      %1530 = vmatprep.subr.bf16.mxu0 0
      %1531 = vmatpush1.bf16.msra.mxu0 0
      %1532 = vmatprep.subr.bf16.mxu0 0
      %1533 = vmatpush1.bf16.msra.mxu0 0
      %1534 = vmatprep.subr.bf16.mxu0 0
      %1535 = vmatpush1.bf16.msra.mxu0 0
      %1536 = vmatprep.subr.bf16.mxu0 0
      %1537 = vmatpush1.bf16.msra.mxu0 0
      %1538 = vmatprep.subr.bf16.mxu0 0
      %1539 = vmatpush1.bf16.msra.mxu0 0
      %1540 = vmatprep.subr.bf16.mxu0 0
      %1541 = vmatpush1.bf16.msra.mxu0 0
      %1542 = vmatprep.subr.bf16.mxu0 0
      %1543 = vmatpush1.bf16.msra.mxu0 0
      %1544 = vmatprep.subr.bf16.mxu0 0
      %1545 = vmatpush1.bf16.msra.mxu0 0
      %1546 = vmatprep.mubr.bf16.mxu0 0
      %1547 = vmatmul.mubr.bf16.gmra.mrb[0].mxu0 %v1500
      %v1548 = vpop.f32.mrb[0].mxu0
      %v1549 = vadd.f32 0.0, %v1548
      %v1550 = vpop.f32.mrb[0].mxu0
      %v1551 = vpop.f32.mrb[0].mxu0
      %v1552 = vadd.f32 0.0, %v1551
      %v1553 = vpop.f32.mrb[0].mxu0
      %1554 = vmatprep.mubr.bf16.mxu0 0
      %1555 = vmatmul.mubr.bf16.gmra.mrb[0].mxu0 %v1503
      %v1556 = vpop.f32.mrb[0].mxu0
      %v1557 = vadd.f32 0.0, %v1556
      %v1558 = vpop.f32.mrb[0].mxu0
      %v1559 = vpop.f32.mrb[0].mxu0
      %v1560 = vadd.f32 0.0, %v1559
      %v1561 = vpop.f32.mrb[0].mxu0
      %1562 = vmatprep.mubr.bf16.mxu0 0
      %1563 = vmatmul.mubr.bf16.gmra.mrb[0].mxu0 %v1506
      %v1564 = vpop.f32.mrb[0].mxu0
      %v1565 = vadd.f32 0.0, %v1564
      %v1566 = vpop.f32.mrb[0].mxu0
      %v1567 = vpop.f32.mrb[0].mxu0
      %v1568 = vadd.f32 0.0, %v1567
      %v1569 = vpop.f32.mrb[0].mxu0
      %1570 = vmatprep.mubr.bf16.mxu0 0
      %1571 = vmatmul.mubr.bf16.gmra.mrb[0].mxu0 %v1509
      %v1572 = vpop.f32.mrb[0].mxu0
      %v1573 = vadd.f32 0.0, %v1572
      %v1574 = vpop.f32.mrb[0].mxu0
      %v1575 = vpop.f32.mrb[0].mxu0
      %v1576 = vadd.f32 0.0, %v1575
      %v1577 = vpop.f32.mrb[0].mxu0
      %1578 = vdwg.mxu0
      %v1579 = vadd.f32 %v1397, %v1549
      %v1580 = vadd.f32 %v1398, %v1552
      %v1581 = vadd.f32 %v1399, %v1557
      %v1582 = vadd.f32 %v1400, %v1560
      %v1583 = vadd.f32 %v1401, %v1565
      %v1584 = vadd.f32 %v1402, %v1568
      %v1585 = vadd.f32 %v1403, %v1573
      %v1586 = vadd.f32 %v1404, %v1576
      %s1587 = scalar_lea.vmem [#allocation2], 16
      %v1588 = vld [vmem:[%s1587] sm:$0xf]
      %v1589 = vld [vmem:[%s1587 + $0x8] sm:$0xf]
      %v1590 = vld [vmem:[%s1587 + $0x10] sm:$0xf]
      %v1591 = vld [vmem:[%s1587 + $0x18] sm:$0xf]
      %v1592 = vld [vmem:[%s1587 + $0x20] sm:$0xf]
      %v1593 = vld [vmem:[%s1587 + $0x28] sm:$0xf]
      %v1594 = vld [vmem:[%s1587 + $0x30] sm:$0xf]
      %v1595 = vld [vmem:[%s1587 + $0x38] sm:$0xf]
      %s1596 = scalar_lea.vmem %s1, 12
      %v1597 = vld [vmem:[%s1596] sm:$0x3]
      %v1606 = vunpack.c.l.b16 %v1588
      %v1607 = vunpack.c.l.b16 %v1589
      %v1608 = vunpack.c.l.b16 %v1590
      %v1609 = vunpack.c.l.b16 %v1591
      %v1610 = vunpack.c.l.b16 %v1592
      %v1611 = vunpack.c.l.b16 %v1593
      %v1612 = vunpack.c.l.b16 %v1594
      %v1613 = vunpack.c.l.b16 %v1595
      %v1614 = vpack.c.b16 %v1607, %v1606
      %v1615 = vpack.c.b16 %v1609, %v1608
      %v1616 = vpack.c.b16 %v1611, %v1610
      %v1617 = vpack.c.b16 %v1613, %v1612
      %v1619 = vsel %vm287, %v1614, 0
      %v1622 = vsel %vm287, %v1615, 0
      %v1625 = vsel %vm287, %v1616, 0
      %v1628 = vsel %vm287, %v1617, 0
      %v1631 = vsel %vm671, %v1597, 0
      %1633 = vmatprep.subr.bf16.mxu0 0
      %1634 = vmatpush1.bf16.msra.mxu0 %v1631
      %1635 = vmatprep.subr.bf16.mxu0 0
      %1636 = vmatpush1.bf16.msra.mxu0 0
      %1637 = vmatprep.subr.bf16.mxu0 0
      %1638 = vmatpush1.bf16.msra.mxu0 0
      %1639 = vmatprep.subr.bf16.mxu0 0
      %1640 = vmatpush1.bf16.msra.mxu0 0
      %1641 = vmatprep.subr.bf16.mxu0 0
      %1642 = vmatpush1.bf16.msra.mxu0 0
      %1643 = vmatprep.subr.bf16.mxu0 0
      %1644 = vmatpush1.bf16.msra.mxu0 0
      %1645 = vmatprep.subr.bf16.mxu0 0
      %1646 = vmatpush1.bf16.msra.mxu0 0
      %1647 = vmatprep.subr.bf16.mxu0 0
      %1648 = vmatpush1.bf16.msra.mxu0 0
      %1649 = vmatprep.subr.bf16.mxu0 0
      %1650 = vmatpush1.bf16.msra.mxu0 0
      %1651 = vmatprep.subr.bf16.mxu0 0
      %1652 = vmatpush1.bf16.msra.mxu0 0
      %1653 = vmatprep.subr.bf16.mxu0 0
      %1654 = vmatpush1.bf16.msra.mxu0 0
      %1655 = vmatprep.subr.bf16.mxu0 0
      %1656 = vmatpush1.bf16.msra.mxu0 0
      %1657 = vmatprep.subr.bf16.mxu0 0
      %1658 = vmatpush1.bf16.msra.mxu0 0
      %1659 = vmatprep.subr.bf16.mxu0 0
      %1660 = vmatpush1.bf16.msra.mxu0 0
      %1661 = vmatprep.subr.bf16.mxu0 0
      %1662 = vmatpush1.bf16.msra.mxu0 0
      %1663 = vmatprep.subr.bf16.mxu0 0
      %1664 = vmatpush1.bf16.msra.mxu0 0
      %1665 = vmatprep.mubr.bf16.mxu0 0
      %1666 = vmatmul.mubr.bf16.gmra.mrb[0].mxu0 %v1619
      %v1667 = vpop.f32.mrb[0].mxu0
      %v1668 = vadd.f32 0.0, %v1667
      %v1669 = vpop.f32.mrb[0].mxu0
      %v1670 = vpop.f32.mrb[0].mxu0
      %v1671 = vadd.f32 0.0, %v1670
      %v1672 = vpop.f32.mrb[0].mxu0
      %1673 = vmatprep.mubr.bf16.mxu0 0
      %1674 = vmatmul.mubr.bf16.gmra.mrb[0].mxu0 %v1622
      %v1675 = vpop.f32.mrb[0].mxu0
      %v1676 = vadd.f32 0.0, %v1675
      %v1677 = vpop.f32.mrb[0].mxu0
      %v1678 = vpop.f32.mrb[0].mxu0
      %v1679 = vadd.f32 0.0, %v1678
      %v1680 = vpop.f32.mrb[0].mxu0
      %1681 = vmatprep.mubr.bf16.mxu0 0
      %1682 = vmatmul.mubr.bf16.gmra.mrb[0].mxu0 %v1625
      %v1683 = vpop.f32.mrb[0].mxu0
      %v1684 = vadd.f32 0.0, %v1683
      %v1685 = vpop.f32.mrb[0].mxu0
      %v1686 = vpop.f32.mrb[0].mxu0
      %v1687 = vadd.f32 0.0, %v1686
      %v1688 = vpop.f32.mrb[0].mxu0
      %1689 = vmatprep.mubr.bf16.mxu0 0
      %1690 = vmatmul.mubr.bf16.gmra.mrb[0].mxu0 %v1628
      %v1691 = vpop.f32.mrb[0].mxu0
      %v1692 = vadd.f32 0.0, %v1691
      %v1693 = vpop.f32.mrb[0].mxu0
      %v1694 = vpop.f32.mrb[0].mxu0
      %v1695 = vadd.f32 0.0, %v1694
      %v1696 = vpop.f32.mrb[0].mxu0
      %1697 = vdwg.mxu0
      %v1698 = vadd.f32 %v1579, %v1668
      %v1699 = vadd.f32 %v1580, %v1671
      %v1700 = vadd.f32 %v1581, %v1676
      %v1701 = vadd.f32 %v1582, %v1679
      %v1702 = vadd.f32 %v1583, %v1684
      %v1703 = vadd.f32 %v1584, %v1687
      %v1704 = vadd.f32 %v1585, %v1692
      %v1705 = vadd.f32 %v1586, %v1695
      %v1706 = vld [vmem:[%s1587] sm:$0x1f]
      %v1707 = vld [vmem:[%s1587 + $0x8] sm:$0x1f]
      %v1708 = vld [vmem:[%s1587 + $0x10] sm:$0x1f]
      %v1709 = vld [vmem:[%s1587 + $0x18] sm:$0x1f]
      %v1710 = vld [vmem:[%s1587 + $0x20] sm:$0x1f]
      %v1711 = vld [vmem:[%s1587 + $0x28] sm:$0x1f]
      %v1712 = vld [vmem:[%s1587 + $0x30] sm:$0x1f]
      %v1713 = vld [vmem:[%s1587 + $0x38] sm:$0x1f]
      %v1722 = vunpack.c.l.b16 %v1706
      %v1723 = vunpack.c.h.b16 %v1706
      %v1724 = vunpack.c.l.b16 %v1707
      %v1725 = vunpack.c.h.b16 %v1707
      %v1726 = vunpack.c.l.b16 %v1708
      %v1727 = vunpack.c.h.b16 %v1708
      %v1728 = vunpack.c.l.b16 %v1709
      %v1729 = vunpack.c.h.b16 %v1709
      %v1730 = vunpack.c.l.b16 %v1710
      %v1731 = vunpack.c.h.b16 %v1710
      %v1732 = vunpack.c.l.b16 %v1711
      %v1733 = vunpack.c.h.b16 %v1711
      %v1734 = vunpack.c.l.b16 %v1712
      %v1735 = vunpack.c.h.b16 %v1712
      %v1736 = vunpack.c.l.b16 %v1713
      %v1737 = vunpack.c.h.b16 %v1713
      %v1738 = vpack.c.b16 %v1722, %v1722
      %v1739 = vpack.c.b16 %v1723, %v1723
      %v1740 = vpack.c.b16 %v1724, %v1724
      %v1741 = vpack.c.b16 %v1725, %v1725
      %v1742 = vpack.c.b16 %v1726, %v1726
      %v1743 = vpack.c.b16 %v1727, %v1727
      %v1744 = vpack.c.b16 %v1728, %v1728
      %v1745 = vpack.c.b16 %v1729, %v1729
      %v1746 = vpack.c.b16 %v1730, %v1730
      %v1747 = vpack.c.b16 %v1731, %v1731
      %v1748 = vpack.c.b16 %v1732, %v1732
      %v1749 = vpack.c.b16 %v1733, %v1733
      %v1750 = vpack.c.b16 %v1734, %v1734
      %v1751 = vpack.c.b16 %v1735, %v1735
      %v1752 = vpack.c.b16 %v1736, %v1736
      %v1753 = vpack.c.b16 %v1737, %v1737
      %v1755 = vshrl.u32 %v1738, 16
      %v1757 = vrot.slane %v1755, 4
      %v1758 = vshll.u32 %v1738, 16
      %v1760 = vrot.slane %v1758, 5
      %v1761 = vor.u32 %v1757, %v1760
      %v1762 = vrot.slane %v1761, 4
      %v1764 = vshll.u32 %v1739, 16
      %v1766 = vrot.slane %v1764, 5
      %v1767 = vsel %vm532, %v1762, %v1766
      %v1769 = vshrl.u32 %v1740, 16
      %v1771 = vrot.slane %v1769, 4
      %v1772 = vshll.u32 %v1740, 16
      %v1774 = vrot.slane %v1772, 5
      %v1775 = vor.u32 %v1771, %v1774
      %v1776 = vrot.slane %v1775, 4
      %v1778 = vshll.u32 %v1741, 16
      %v1780 = vrot.slane %v1778, 5
      %v1781 = vsel %vm532, %v1776, %v1780
      %v1783 = vshrl.u32 %v1742, 16
      %v1785 = vrot.slane %v1783, 4
      %v1786 = vshll.u32 %v1742, 16
      %v1788 = vrot.slane %v1786, 5
      %v1789 = vor.u32 %v1785, %v1788
      %v1790 = vrot.slane %v1789, 4
      %v1792 = vshll.u32 %v1743, 16
      %v1794 = vrot.slane %v1792, 5
      %v1795 = vsel %vm532, %v1790, %v1794
      %v1797 = vshrl.u32 %v1744, 16
      %v1799 = vrot.slane %v1797, 4
      %v1800 = vshll.u32 %v1744, 16
      %v1802 = vrot.slane %v1800, 5
      %v1803 = vor.u32 %v1799, %v1802
      %v1804 = vrot.slane %v1803, 4
      %v1806 = vshll.u32 %v1745, 16
      %v1808 = vrot.slane %v1806, 5
      %v1809 = vsel %vm532, %v1804, %v1808
      %v1811 = vshrl.u32 %v1746, 16
      %v1813 = vrot.slane %v1811, 4
      %v1814 = vshll.u32 %v1746, 16
      %v1816 = vrot.slane %v1814, 5
      %v1817 = vor.u32 %v1813, %v1816
      %v1818 = vrot.slane %v1817, 4
      %v1820 = vshll.u32 %v1747, 16
      %v1822 = vrot.slane %v1820, 5
      %v1823 = vsel %vm532, %v1818, %v1822
      %v1825 = vshrl.u32 %v1748, 16
      %v1827 = vrot.slane %v1825, 4
      %v1828 = vshll.u32 %v1748, 16
      %v1830 = vrot.slane %v1828, 5
      %v1831 = vor.u32 %v1827, %v1830
      %v1832 = vrot.slane %v1831, 4
      %v1834 = vshll.u32 %v1749, 16
      %v1836 = vrot.slane %v1834, 5
      %v1837 = vsel %vm532, %v1832, %v1836
      %v1839 = vshrl.u32 %v1750, 16
      %v1841 = vrot.slane %v1839, 4
      %v1842 = vshll.u32 %v1750, 16
      %v1844 = vrot.slane %v1842, 5
      %v1845 = vor.u32 %v1841, %v1844
      %v1846 = vrot.slane %v1845, 4
      %v1848 = vshll.u32 %v1751, 16
      %v1850 = vrot.slane %v1848, 5
      %v1851 = vsel %vm532, %v1846, %v1850
      %v1853 = vshrl.u32 %v1752, 16
      %v1855 = vrot.slane %v1853, 4
      %v1856 = vshll.u32 %v1752, 16
      %v1858 = vrot.slane %v1856, 5
      %v1859 = vor.u32 %v1855, %v1858
      %v1860 = vrot.slane %v1859, 4
      %v1862 = vshll.u32 %v1753, 16
      %v1864 = vrot.slane %v1862, 5
      %v1865 = vsel %vm532, %v1860, %v1864
      %s1866 = scalar_lea.vmem %s1, 14
      %v1867 = vld [vmem:[%s1866] sm:$0x3]
      %v1868 = vunpack.c.l.b16 %v1767
      %v1869 = vunpack.c.l.b16 %v1781
      %v1870 = vunpack.c.l.b16 %v1795
      %v1871 = vunpack.c.l.b16 %v1809
      %v1872 = vunpack.c.l.b16 %v1823
      %v1873 = vunpack.c.l.b16 %v1837
      %v1874 = vunpack.c.l.b16 %v1851
      %v1875 = vunpack.c.l.b16 %v1865
      %v1876 = vpack.c.b16 %v1869, %v1868
      %v1877 = vpack.c.b16 %v1871, %v1870
      %v1878 = vpack.c.b16 %v1873, %v1872
      %v1879 = vpack.c.b16 %v1875, %v1874
      %v1881 = vsel %vm287, %v1876, 0
      %v1884 = vsel %vm287, %v1877, 0
      %v1887 = vsel %vm287, %v1878, 0
      %v1890 = vsel %vm287, %v1879, 0
      %v1893 = vsel %vm671, %v1867, 0
      %1895 = vmatprep.subr.bf16.mxu0 0
      %1896 = vmatpush1.bf16.msra.mxu0 %v1893
      %1897 = vmatprep.subr.bf16.mxu0 0
      %1898 = vmatpush1.bf16.msra.mxu0 0
      %1899 = vmatprep.subr.bf16.mxu0 0
      %1900 = vmatpush1.bf16.msra.mxu0 0
      %1901 = vmatprep.subr.bf16.mxu0 0
      %1902 = vmatpush1.bf16.msra.mxu0 0
      %1903 = vmatprep.subr.bf16.mxu0 0
      %1904 = vmatpush1.bf16.msra.mxu0 0
      %1905 = vmatprep.subr.bf16.mxu0 0
      %1906 = vmatpush1.bf16.msra.mxu0 0
      %1907 = vmatprep.subr.bf16.mxu0 0
      %1908 = vmatpush1.bf16.msra.mxu0 0
      %1909 = vmatprep.subr.bf16.mxu0 0
      %1910 = vmatpush1.bf16.msra.mxu0 0
      %1911 = vmatprep.subr.bf16.mxu0 0
      %1912 = vmatpush1.bf16.msra.mxu0 0
      %1913 = vmatprep.subr.bf16.mxu0 0
      %1914 = vmatpush1.bf16.msra.mxu0 0
      %1915 = vmatprep.subr.bf16.mxu0 0
      %1916 = vmatpush1.bf16.msra.mxu0 0
      %1917 = vmatprep.subr.bf16.mxu0 0
      %1918 = vmatpush1.bf16.msra.mxu0 0
      %1919 = vmatprep.subr.bf16.mxu0 0
      %1920 = vmatpush1.bf16.msra.mxu0 0
      %1921 = vmatprep.subr.bf16.mxu0 0
      %1922 = vmatpush1.bf16.msra.mxu0 0
      %1923 = vmatprep.subr.bf16.mxu0 0
      %1924 = vmatpush1.bf16.msra.mxu0 0
      %1925 = vmatprep.subr.bf16.mxu0 0
      %1926 = vmatpush1.bf16.msra.mxu0 0
      %1927 = vmatprep.mubr.bf16.mxu0 0
      %1928 = vmatmul.mubr.bf16.gmra.mrb[0].mxu0 %v1881
      %v1929 = vpop.f32.mrb[0].mxu0
      %v1930 = vadd.f32 0.0, %v1929
      %v1931 = vpop.f32.mrb[0].mxu0
      %v1932 = vpop.f32.mrb[0].mxu0
      %v1933 = vadd.f32 0.0, %v1932
      %v1934 = vpop.f32.mrb[0].mxu0
      %1935 = vmatprep.mubr.bf16.mxu0 0
      %1936 = vmatmul.mubr.bf16.gmra.mrb[0].mxu0 %v1884
      %v1937 = vpop.f32.mrb[0].mxu0
      %v1938 = vadd.f32 0.0, %v1937
      %v1939 = vpop.f32.mrb[0].mxu0
      %v1940 = vpop.f32.mrb[0].mxu0
      %v1941 = vadd.f32 0.0, %v1940
      %v1942 = vpop.f32.mrb[0].mxu0
      %1943 = vmatprep.mubr.bf16.mxu0 0
      %1944 = vmatmul.mubr.bf16.gmra.mrb[0].mxu0 %v1887
      %v1945 = vpop.f32.mrb[0].mxu0
      %v1946 = vadd.f32 0.0, %v1945
      %v1947 = vpop.f32.mrb[0].mxu0
      %v1948 = vpop.f32.mrb[0].mxu0
      %v1949 = vadd.f32 0.0, %v1948
      %v1950 = vpop.f32.mrb[0].mxu0
      %1951 = vmatprep.mubr.bf16.mxu0 0
      %1952 = vmatmul.mubr.bf16.gmra.mrb[0].mxu0 %v1890
      %v1953 = vpop.f32.mrb[0].mxu0
      %v1954 = vadd.f32 0.0, %v1953
      %v1955 = vpop.f32.mrb[0].mxu0
      %v1956 = vpop.f32.mrb[0].mxu0
      %v1957 = vadd.f32 0.0, %v1956
      %v1958 = vpop.f32.mrb[0].mxu0
      %1959 = vdwg.mxu0
      %v1960 = vadd.f32 %v1698, %v1930
      %v1961 = vadd.f32 %v1699, %v1933
      %v1962 = vadd.f32 %v1700, %v1938
      %v1963 = vadd.f32 %v1701, %v1941
      %v1964 = vadd.f32 %v1702, %v1946
      %v1965 = vadd.f32 %v1703, %v1949
      %v1966 = vadd.f32 %v1704, %v1954
      %v1967 = vadd.f32 %v1705, %v1957
      %v1968 = vld [vmem:[%s1587] sm:$0x1e]
      %v1969 = vld [vmem:[%s1587 + $0x8] sm:$0x1e]
      %v1970 = vld [vmem:[%s1587 + $0x10] sm:$0x1e]
      %v1971 = vld [vmem:[%s1587 + $0x18] sm:$0x1e]
      %v1972 = vld [vmem:[%s1587 + $0x20] sm:$0x1e]
      %v1973 = vld [vmem:[%s1587 + $0x28] sm:$0x1e]
      %v1974 = vld [vmem:[%s1587 + $0x30] sm:$0x1e]
      %v1975 = vld [vmem:[%s1587 + $0x38] sm:$0x1e]
      %v1984 = vunpack.c.l.b16 %v1968
      %v1985 = vunpack.c.h.b16 %v1968
      %v1986 = vunpack.c.l.b16 %v1969
      %v1987 = vunpack.c.h.b16 %v1969
      %v1988 = vunpack.c.l.b16 %v1970
      %v1989 = vunpack.c.h.b16 %v1970
      %v1990 = vunpack.c.l.b16 %v1971
      %v1991 = vunpack.c.h.b16 %v1971
      %v1992 = vunpack.c.l.b16 %v1972
      %v1993 = vunpack.c.h.b16 %v1972
      %v1994 = vunpack.c.l.b16 %v1973
      %v1995 = vunpack.c.h.b16 %v1973
      %v1996 = vunpack.c.l.b16 %v1974
      %v1997 = vunpack.c.h.b16 %v1974
      %v1998 = vunpack.c.l.b16 %v1975
      %v1999 = vunpack.c.h.b16 %v1975
      %v2000 = vpack.c.b16 %v1984, %v1984
      %v2001 = vpack.c.b16 %v1985, %v1985
      %v2002 = vpack.c.b16 %v1986, %v1986
      %v2003 = vpack.c.b16 %v1987, %v1987
      %v2004 = vpack.c.b16 %v1988, %v1988
      %v2005 = vpack.c.b16 %v1989, %v1989
      %v2006 = vpack.c.b16 %v1990, %v1990
      %v2007 = vpack.c.b16 %v1991, %v1991
      %v2008 = vpack.c.b16 %v1992, %v1992
      %v2009 = vpack.c.b16 %v1993, %v1993
      %v2010 = vpack.c.b16 %v1994, %v1994
      %v2011 = vpack.c.b16 %v1995, %v1995
      %v2012 = vpack.c.b16 %v1996, %v1996
      %v2013 = vpack.c.b16 %v1997, %v1997
      %v2014 = vpack.c.b16 %v1998, %v1998
      %v2015 = vpack.c.b16 %v1999, %v1999
      %v2016 = vrot.slane %v2000, 5
      %v2017 = vrot.slane %v2016, 4
      %v2018 = vrot.slane %v2001, 5
      %v2019 = vsel %vm890, %v2017, %v2018
      %v2020 = vrot.slane %v2002, 5
      %v2021 = vrot.slane %v2020, 4
      %v2022 = vrot.slane %v2003, 5
      %v2023 = vsel %vm890, %v2021, %v2022
      %v2024 = vrot.slane %v2004, 5
      %v2025 = vrot.slane %v2024, 4
      %v2026 = vrot.slane %v2005, 5
      %v2027 = vsel %vm890, %v2025, %v2026
      %v2028 = vrot.slane %v2006, 5
      %v2029 = vrot.slane %v2028, 4
      %v2030 = vrot.slane %v2007, 5
      %v2031 = vsel %vm890, %v2029, %v2030
      %v2032 = vrot.slane %v2008, 5
      %v2033 = vrot.slane %v2032, 4
      %v2034 = vrot.slane %v2009, 5
      %v2035 = vsel %vm890, %v2033, %v2034
      %v2036 = vrot.slane %v2010, 5
      %v2037 = vrot.slane %v2036, 4
      %v2038 = vrot.slane %v2011, 5
      %v2039 = vsel %vm890, %v2037, %v2038
      %v2040 = vrot.slane %v2012, 5
      %v2041 = vrot.slane %v2040, 4
      %v2042 = vrot.slane %v2013, 5
      %v2043 = vsel %vm890, %v2041, %v2042
      %v2044 = vrot.slane %v2014, 5
      %v2045 = vrot.slane %v2044, 4
      %v2046 = vrot.slane %v2015, 5
      %v2047 = vsel %vm890, %v2045, %v2046
      %s2048 = scalar_lea.vmem %s1, 16
      %v2049 = vld [vmem:[%s2048] sm:$0x3]
      %v2050 = vunpack.c.l.b16 %v2019
      %v2051 = vunpack.c.l.b16 %v2023
      %v2052 = vunpack.c.l.b16 %v2027
      %v2053 = vunpack.c.l.b16 %v2031
      %v2054 = vunpack.c.l.b16 %v2035
      %v2055 = vunpack.c.l.b16 %v2039
      %v2056 = vunpack.c.l.b16 %v2043
      %v2057 = vunpack.c.l.b16 %v2047
      %v2058 = vpack.c.b16 %v2051, %v2050
      %v2059 = vpack.c.b16 %v2053, %v2052
      %v2060 = vpack.c.b16 %v2055, %v2054
      %v2061 = vpack.c.b16 %v2057, %v2056
      %v2063 = vsel %vm287, %v2058, 0
      %v2066 = vsel %vm287, %v2059, 0
      %v2069 = vsel %vm287, %v2060, 0
      %v2072 = vsel %vm287, %v2061, 0
      %v2075 = vsel %vm671, %v2049, 0
      %2077 = vmatprep.subr.bf16.mxu0 0
      %2078 = vmatpush1.bf16.msra.mxu0 %v2075
      %2079 = vmatprep.subr.bf16.mxu0 0
      %2080 = vmatpush1.bf16.msra.mxu0 0
      %2081 = vmatprep.subr.bf16.mxu0 0
      %2082 = vmatpush1.bf16.msra.mxu0 0
      %2083 = vmatprep.subr.bf16.mxu0 0
      %2084 = vmatpush1.bf16.msra.mxu0 0
      %2085 = vmatprep.subr.bf16.mxu0 0
      %2086 = vmatpush1.bf16.msra.mxu0 0
      %2087 = vmatprep.subr.bf16.mxu0 0
      %2088 = vmatpush1.bf16.msra.mxu0 0
      %2089 = vmatprep.subr.bf16.mxu0 0
      %2090 = vmatpush1.bf16.msra.mxu0 0
      %2091 = vmatprep.subr.bf16.mxu0 0
      %2092 = vmatpush1.bf16.msra.mxu0 0
      %2093 = vmatprep.subr.bf16.mxu0 0
      %2094 = vmatpush1.bf16.msra.mxu0 0
      %2095 = vmatprep.subr.bf16.mxu0 0
      %2096 = vmatpush1.bf16.msra.mxu0 0
      %2097 = vmatprep.subr.bf16.mxu0 0
      %2098 = vmatpush1.bf16.msra.mxu0 0
      %2099 = vmatprep.subr.bf16.mxu0 0
      %2100 = vmatpush1.bf16.msra.mxu0 0
      %2101 = vmatprep.subr.bf16.mxu0 0
      %2102 = vmatpush1.bf16.msra.mxu0 0
      %2103 = vmatprep.subr.bf16.mxu0 0
      %2104 = vmatpush1.bf16.msra.mxu0 0
      %2105 = vmatprep.subr.bf16.mxu0 0
      %2106 = vmatpush1.bf16.msra.mxu0 0
      %2107 = vmatprep.subr.bf16.mxu0 0
      %2108 = vmatpush1.bf16.msra.mxu0 0
      %2109 = vmatprep.mubr.bf16.mxu0 0
      %2110 = vmatmul.mubr.bf16.gmra.mrb[0].mxu0 %v2063
      %v2111 = vpop.f32.mrb[0].mxu0
      %v2112 = vadd.f32 0.0, %v2111
      %v2113 = vpop.f32.mrb[0].mxu0
      %v2114 = vpop.f32.mrb[0].mxu0
      %v2115 = vadd.f32 0.0, %v2114
      %v2116 = vpop.f32.mrb[0].mxu0
      %2117 = vmatprep.mubr.bf16.mxu0 0
      %2118 = vmatmul.mubr.bf16.gmra.mrb[0].mxu0 %v2066
      %v2119 = vpop.f32.mrb[0].mxu0
      %v2120 = vadd.f32 0.0, %v2119
      %v2121 = vpop.f32.mrb[0].mxu0
      %v2122 = vpop.f32.mrb[0].mxu0
      %v2123 = vadd.f32 0.0, %v2122
      %v2124 = vpop.f32.mrb[0].mxu0
      %2125 = vmatprep.mubr.bf16.mxu0 0
      %2126 = vmatmul.mubr.bf16.gmra.mrb[0].mxu0 %v2069
      %v2127 = vpop.f32.mrb[0].mxu0
      %v2128 = vadd.f32 0.0, %v2127
      %v2129 = vpop.f32.mrb[0].mxu0
      %v2130 = vpop.f32.mrb[0].mxu0
      %v2131 = vadd.f32 0.0, %v2130
      %v2132 = vpop.f32.mrb[0].mxu0
      %2133 = vmatprep.mubr.bf16.mxu0 0
      %2134 = vmatmul.mubr.bf16.gmra.mrb[0].mxu0 %v2072
      %v2135 = vpop.f32.mrb[0].mxu0
      %v2136 = vadd.f32 0.0, %v2135
      %v2137 = vpop.f32.mrb[0].mxu0
      %v2138 = vpop.f32.mrb[0].mxu0
      %v2139 = vadd.f32 0.0, %v2138
      %v2140 = vpop.f32.mrb[0].mxu0
      %2141 = vdwg.mxu0
      %v2142 = vadd.f32 %v1960, %v2112
      %v2143 = vadd.f32 %v1961, %v2115
      %v2144 = vadd.f32 %v1962, %v2120
      %v2145 = vadd.f32 %v1963, %v2123
      %v2146 = vadd.f32 %v1964, %v2128
      %v2147 = vadd.f32 %v1965, %v2131
      %v2148 = vadd.f32 %v1966, %v2136
      %v2149 = vadd.f32 %v1967, %v2139
      %vm2150 = vcmask 64512
      %2151 = vst.msk [vmem:[%s177] sm:$0xff] %vm2150, %v2142
      %2152 = vst.msk [vmem:[%s177 + $0x8] sm:$0xff] %vm2150, %v2143
      %2153 = vst.msk [vmem:[%s177 + $0x10] sm:$0xff] %vm2150, %v2144
      %2154 = vst.msk [vmem:[%s177 + $0x18] sm:$0xff] %vm2150, %v2145
      %2155 = vst.msk [vmem:[%s177 + $0x20] sm:$0xff] %vm2150, %v2146
      %2156 = vst.msk [vmem:[%s177 + $0x28] sm:$0xff] %vm2150, %v2147
      %2157 = vst.msk [vmem:[%s177 + $0x30] sm:$0xff] %vm2150, %v2148
      %2158 = vst.msk [vmem:[%s177 + $0x38] sm:$0xff] %vm2150, %v2149
      %v2159 = vsel %vm2150, %v2142, 0.0
      %v2160 = vsel %vm2150, %v2143, 0.0
      %v2161 = vadd.f32 %v2159, %v2160
      %v2162 = vsel %vm2150, %v2144, 0.0
      %v2163 = vadd.f32 %v2161, %v2162
      %v2164 = vsel %vm2150, %v2145, 0.0
      %v2165 = vadd.f32 %v2163, %v2164
      %v2166 = vsel %vm2150, %v2146, 0.0
      %v2167 = vadd.f32 %v2165, %v2166
      %v2168 = vsel %vm2150, %v2147, 0.0
      %v2169 = vadd.f32 %v2167, %v2168
      %v2170 = vsel %vm2150, %v2148, 0.0
      %v2171 = vadd.f32 %v2169, %v2170
      %v2172 = vsel %vm2150, %v2149, 0.0
      %v2173 = vadd.f32 %v2171, %v2172
      %v2174 = vrot.slane %v2173, 4
      %v2175 = vadd.f32 %v2173, %v2174
      %v2176 = vrot.slane %v2175, 2
      %v2177 = vadd.f32 %v2175, %v2176
      %v2178 = vrot.slane %v2177, 1
      %v2179 = vadd.f32 %v2177, %v2178
      %v2180 = vmul.f32 %v2142, %v2142
      %v2181 = vmul.f32 %v2143, %v2143
      %v2182 = vmul.f32 %v2144, %v2144
      %v2183 = vmul.f32 %v2145, %v2145
      %v2184 = vmul.f32 %v2146, %v2146
      %v2185 = vmul.f32 %v2147, %v2147
      %v2186 = vmul.f32 %v2148, %v2148
      %v2187 = vmul.f32 %v2149, %v2149
      %v2188 = vsel %vm2150, %v2180, 0.0
      %v2189 = vsel %vm2150, %v2181, 0.0
      %v2190 = vadd.f32 %v2188, %v2189
      %v2191 = vsel %vm2150, %v2182, 0.0
      %v2192 = vadd.f32 %v2190, %v2191
      %v2193 = vsel %vm2150, %v2183, 0.0
      %v2194 = vadd.f32 %v2192, %v2193
      %v2195 = vsel %vm2150, %v2184, 0.0
      %v2196 = vadd.f32 %v2194, %v2195
      %v2197 = vsel %vm2150, %v2185, 0.0
      %v2198 = vadd.f32 %v2196, %v2197
      %v2199 = vsel %vm2150, %v2186, 0.0
      %v2200 = vadd.f32 %v2198, %v2199
      %v2201 = vsel %vm2150, %v2187, 0.0
      %v2202 = vadd.f32 %v2200, %v2201
      %v2203 = vrot.slane %v2202, 4
      %v2204 = vadd.f32 %v2202, %v2203
      %v2205 = vrot.slane %v2204, 2
      %v2206 = vadd.f32 %v2204, %v2205
      %v2207 = vrot.slane %v2206, 1
      %v2208 = vadd.f32 %v2206, %v2207
      %vm2209 = vcmask 1040384
      %v2210 = vsel %vm2209, %v2179, %v2208
      %vm2211 = vcmask 58368
      %2212 = vst.msk [vmem:[%s181] sm:$0x3] %vm2211, %v2210
      %p2213 = scmp.lt.s32.totalorder %s15, 1
      %s2214 = scalar_select %p2213, %s15, 1
      %s2215 = smul.addr %s2214, 8
      %s2216 = smul.addr %s2215, 8
      %s2217 = scalar_lea.vmem %s2, %s2216
      %p2218 = scmp.lt.s32.totalorder %s15, 1
      %s2219 = scalar_select %p2218, %s15, 1
      %s2220 = smul.addr %s2219, 2
      %s2221 = scalar_lea.vmem %s3, %s2220
      // Predicated region
      $region29: #{down_forward.3} parent=27 // pred_check
        %p2222 = pneg %p80
      $region30: #{down_forward.3} parent=27 // pred_check_branch
        %2224 = sbr.rel (%p2222) target = $region32
      $region31: #{down_forward.3} parent=27 // pred_region
        _
      $region32: #{down_forward.3} parent=27 // pred_fallthru
        _
      // Predicated region
      $region33: #{down_forward.3} parent=27 // pred_check
        %p2225 = pneg %p106
      $region34: #{down_forward.3} parent=27 // pred_check_branch
        %2227 = sbr.rel (%p2225) target = $region36
      $region35: #{down_forward.3} parent=27 // pred_region
        _
      $region36: #{down_forward.3} parent=27 // pred_fallthru
        _
    $region28: #{down_forward.3} parent=5 // pred_fallthru
      _
    %p2228 = scmp.le.s32.totalorder 2, %s10
    // Predicated region
    $region37: #{down_forward.3} parent=5 // pred_check
      %p2229 = pneg %p2228
    $region38: #{down_forward.3} parent=5 // pred_check_branch
      %2231 = sbr.rel (%p2229) target = $region40
    $region39: #{down_forward.3} parent=5 // pred_region
      %s2232 = ssub.s32 %s10, 2
      // Predicated region
      $region41: #{down_forward.3} parent=39 // pred_check
        %p2233 = pneg %p86
      $region42: #{down_forward.3} parent=39 // pred_check_branch
        %2235 = sbr.rel (%p2233) target = $region44
      $region43: #{down_forward.3} parent=39 // pred_region
        %p2236 = scmp.lt.s32.totalorder %s16, 1
        %s2237 = scalar_select %p2236, %s16, 1
        %s2238 = smul.addr %s2237, 8
        %s2239 = smul.addr %s2238, 8
        %s2240 = scalar_lea.vmem %s2, %s2239
      $region44: #{down_forward.3} parent=39 // pred_fallthru
        _
      // Predicated region
      $region45: #{down_forward.3} parent=39 // pred_check
        %p2241 = pneg %p112
      $region46: #{down_forward.3} parent=39 // pred_check_branch
        %2243 = sbr.rel (%p2241) target = $region48
      $region47: #{down_forward.3} parent=39 // pred_region
        %p2244 = scmp.lt.s32.totalorder %s16, 1
        %s2245 = scalar_select %p2244, %s16, 1
        %s2246 = smul.addr %s2245, 2
        %s2247 = scalar_lea.vmem %s3, %s2246
      $region48: #{down_forward.3} parent=39 // pred_fallthru
        _
    $region40: #{down_forward.3} parent=5 // pred_fallthru
      _
  $region6: #{down_forward.3} parent=0 // loop_footer
    %s14 = sadd.s32 1, %s10
  $region7: #{down_forward.3} parent=0 // loop_footer_branch
    %9 = sbr.rel target = $region3
  $region8: #{down_forward.3} parent=0 // loop_exit
    _

// kernel: down_forward.4
$region0: #{down_forward.4}
  #allocation0 [shape = 'u32[]', space=smem, size = 0x4, offset = 0x4, fixed_abs, tag = 'smem constant byte address 0x4 - core index']
  #allocation1 [shape = 'u32[144,128]{1,0:T(1,128)}', space=vmem, size = 0x12000, scoped, tag = 'internal scratch']
  #allocation2 [shape = 'bf16[10,16,8]{2,1,0:T(16,128)(2,1)}', space=vmem, size = 0xa000, scoped, tag = 'scratch operand']
  %s0 = inlined_call_operand.vmem [shape: f32[2,8,8,8], index: 0, kind: input, shape index: {}]
  %s1 = inlined_call_operand.vmem [shape: f32[1,8], index: 1, kind: input, shape index: {}]
  %s2 = inlined_call_operand.vmem [shape: f32[1,8], index: 2, kind: input, shape index: {}]
  %s3 = inlined_call_operand.vmem [shape: bf16[9,8,8], index: 3, kind: input, shape index: {}]
  %s4 = inlined_call_operand.vmem [shape: f32[2,8,8,8], index: 4, kind: output, shape index: {0}]
  %s5 = inlined_call_operand.vmem [shape: f32[2,2,8], index: 5, kind: output, shape index: {1}]
  %6 = xla_tuple %s4, %s5
  %s7 = sld [smem:[#allocation0]]
  $region57: #{down_forward.4} parent=0
    _
  %s9 = ssub.s32 1, %s7
  %s10 = scalar_select 0, %s9, %s7
  loop: start=0, step=1, limit=4
  $region2: #{down_forward.4} parent=0 // loop_pre_header
    _
  $region3: #{down_forward.4} parent=0 // loop_header
    %s12 = sphi 0, %s16
    %p13 = scmp.ge.s32.totalorder %s12, 4
    %s22 = sphi 0, %s24
    %s25 = sphi 0, %s22
    %s26 = sphi 0, %s25
    %s42 = sphi 0, %s26
    %s46 = sphi 0, %s46
    %s48 = sphi 0, %s46
    %s49 = sphi 0, %s48
    %s63 = sphi 0, %s49
    %s67 = sphi 0, %s67
    %s69 = sphi 0, %s67
    %s70 = sphi 0, %s69
    %s84 = sphi 0, %s70
    %s88 = sphi 0, %s88
    %s90 = sphi 0, %s88
    %s91 = sphi 0, %s90
    %s105 = sphi 0, %s91
    %s111 = sphi 0, %s113
    %s114 = sphi 0, %s111
    %s115 = sphi 0, %s114
    %s131 = sphi 0, %s115
    %s137 = sphi 0, %s139
    %s140 = sphi 0, %s137
    %s141 = sphi 0, %s140
    %s157 = sphi 0, %s141
  $region4: #{down_forward.4} parent=0 // loop_header_branch
    %15 = sbr.rel (%p13) target = $region8
  $region5: #{down_forward.4} parent=0 // loop_body
    %s17 = ssub.s32 %s12, 1
    %s18 = ssub.s32 %s12, 2
    %s19 = sadd.s32 %s12, 1
    %s20 = ssub.s32 %s12, %s19
    %p21 = scmp.eq.s32.totalorder %s20, 0
    %s23 = sadd.s32 %s22, 1
    %s24 = scalar_select %p21, %s22, %s23
    %p27 = pneg %p21
    %p28 = scmp.eq.s32.totalorder %s12, 1
    %p29 = por %p27, %p28
    %p30 = scmp.ne.s32.totalorder %s22, %s25
    %p31 = scmp.eq.s32.totalorder %s12, 0
    %p32 = por %p30, %p31
    %p33 = scmp.ne.s32.totalorder %s22, %s25
    %p34 = scmp.eq.s32.totalorder %s17, 1
    %p35 = por %p33, %p34
    %p36 = scmp.ne.s32.totalorder %s25, %s26
    %p37 = scmp.eq.s32.totalorder %s17, 0
    %p38 = por %p36, %p37
    %p39 = scmp.ne.s32.totalorder %s25, %s26
    %p40 = scmp.eq.s32.totalorder %s18, 1
    %p41 = por %p39, %p40
    %p43 = scmp.ne.s32.totalorder %s26, %s42
    %p44 = scmp.eq.s32.totalorder %s18, 0
    %p45 = por %p43, %p44
    %s47 = sadd.s32 %s46, 1
    %p50 = scmp.eq.s32.totalorder %s12, 1
    %p51 = scmp.ne.s32.totalorder %s46, %s48
    %p52 = scmp.eq.s32.totalorder %s12, 0
    %p53 = por %p51, %p52
    %p54 = scmp.ne.s32.totalorder %s46, %s48
    %p55 = scmp.eq.s32.totalorder %s17, 1
    %p56 = por %p54, %p55
    %p57 = scmp.ne.s32.totalorder %s48, %s49
    %p58 = scmp.eq.s32.totalorder %s17, 0
    %p59 = por %p57, %p58
    %p60 = scmp.ne.s32.totalorder %s48, %s49
    %p61 = scmp.eq.s32.totalorder %s18, 1
    %p62 = por %p60, %p61
    %p64 = scmp.ne.s32.totalorder %s49, %s63
    %p65 = scmp.eq.s32.totalorder %s18, 0
    %p66 = por %p64, %p65
    %s68 = sadd.s32 %s67, 1
    %p71 = scmp.eq.s32.totalorder %s12, 1
    %p72 = scmp.ne.s32.totalorder %s67, %s69
    %p73 = scmp.eq.s32.totalorder %s12, 0
    %p74 = por %p72, %p73
    %p75 = scmp.ne.s32.totalorder %s67, %s69
    %p76 = scmp.eq.s32.totalorder %s17, 1
    %p77 = por %p75, %p76
    %p78 = scmp.ne.s32.totalorder %s69, %s70
    %p79 = scmp.eq.s32.totalorder %s17, 0
    %p80 = por %p78, %p79
    %p81 = scmp.ne.s32.totalorder %s69, %s70
    %p82 = scmp.eq.s32.totalorder %s18, 1
    %p83 = por %p81, %p82
    %p85 = scmp.ne.s32.totalorder %s70, %s84
    %p86 = scmp.eq.s32.totalorder %s18, 0
    %p87 = por %p85, %p86
    %s89 = sadd.s32 %s88, 1
    %p92 = scmp.eq.s32.totalorder %s12, 1
    %p93 = scmp.ne.s32.totalorder %s88, %s90
    %p94 = scmp.eq.s32.totalorder %s12, 0
    %p95 = por %p93, %p94
    %p96 = scmp.ne.s32.totalorder %s88, %s90
    %p97 = scmp.eq.s32.totalorder %s17, 1
    %p98 = por %p96, %p97
    %p99 = scmp.ne.s32.totalorder %s90, %s91
    %p100 = scmp.eq.s32.totalorder %s17, 0
    %p101 = por %p99, %p100
    %p102 = scmp.ne.s32.totalorder %s90, %s91
    %p103 = scmp.eq.s32.totalorder %s18, 1
    %p104 = por %p102, %p103
    %p106 = scmp.ne.s32.totalorder %s91, %s105
    %p107 = scmp.eq.s32.totalorder %s18, 0
    %p108 = por %p106, %p107
    %s109 = ssub.s32 %s12, %s19
    %p110 = scmp.eq.s32.totalorder %s109, 0
    %s112 = sadd.s32 %s111, 1
    %s113 = scalar_select %p110, %s111, %s112
    %p116 = pneg %p110
    %p117 = scmp.eq.s32.totalorder %s12, 1
    %p118 = por %p116, %p117
    %p119 = scmp.ne.s32.totalorder %s111, %s114
    %p120 = scmp.eq.s32.totalorder %s12, 0
    %p121 = por %p119, %p120
    %p122 = scmp.ne.s32.totalorder %s111, %s114
    %p123 = scmp.eq.s32.totalorder %s17, 1
    %p124 = por %p122, %p123
    %p125 = scmp.ne.s32.totalorder %s114, %s115
    %p126 = scmp.eq.s32.totalorder %s17, 0
    %p127 = por %p125, %p126
    %p128 = scmp.ne.s32.totalorder %s114, %s115
    %p129 = scmp.eq.s32.totalorder %s18, 1
    %p130 = por %p128, %p129
    %p132 = scmp.ne.s32.totalorder %s115, %s131
    %p133 = scmp.eq.s32.totalorder %s18, 0
    %p134 = por %p132, %p133
    %s135 = ssub.s32 %s12, %s19
    %p136 = scmp.eq.s32.totalorder %s135, 0
    %s138 = sadd.s32 %s137, 1
    %s139 = scalar_select %p136, %s137, %s138
    %p142 = pneg %p136
    %p143 = scmp.eq.s32.totalorder %s12, 1
    %p144 = por %p142, %p143
    %p145 = scmp.ne.s32.totalorder %s137, %s140
    %p146 = scmp.eq.s32.totalorder %s12, 0
    %p147 = por %p145, %p146
    %p148 = scmp.ne.s32.totalorder %s137, %s140
    %p149 = scmp.eq.s32.totalorder %s17, 1
    %p150 = por %p148, %p149
    %p151 = scmp.ne.s32.totalorder %s140, %s141
    %p152 = scmp.eq.s32.totalorder %s17, 0
    %p153 = por %p151, %p152
    %p154 = scmp.ne.s32.totalorder %s140, %s141
    %p155 = scmp.eq.s32.totalorder %s18, 1
    %p156 = por %p154, %p155
    %p158 = scmp.ne.s32.totalorder %s141, %s157
    %p159 = scmp.eq.s32.totalorder %s18, 0
    %p160 = por %p158, %p159
    %p161 = scmp.le.s32.totalorder 1, %s12
    %p162 = scmp.lt.s32.totalorder %s12, 3
    %p163 = pnand %p161, %p162
    %p164 = pneg %p163
    // Predicated region
    $region9: #{down_forward.4} parent=5 // pred_check
      _
    $region10: #{down_forward.4} parent=5 // pred_check_branch
      %166 = sbr.rel (%p163) target = $region12
    $region11: #{down_forward.4} parent=5 // pred_region
      %s167 = ssub.s32 %s12, 1
      // Predicated region
      $region13: #{down_forward.4} parent=11 // pred_check
        %p168 = pneg %p59
      $region14: #{down_forward.4} parent=11 // pred_check_branch
        %170 = sbr.rel (%p168) target = $region16
      $region15: #{down_forward.4} parent=11 // pred_region
        _
      $region16: #{down_forward.4} parent=11 // pred_fallthru
        _
      // Predicated region
      $region17: #{down_forward.4} parent=11 // pred_check
        %p171 = pneg %p80
      $region18: #{down_forward.4} parent=11 // pred_check_branch
        %173 = sbr.rel (%p171) target = $region20
      $region19: #{down_forward.4} parent=11 // pred_region
        _
      $region20: #{down_forward.4} parent=11 // pred_fallthru
        _
      // Predicated region
      $region21: #{down_forward.4} parent=11 // pred_check
        %p174 = pneg %p101
      $region22: #{down_forward.4} parent=11 // pred_check_branch
        %176 = sbr.rel (%p174) target = $region24
      $region23: #{down_forward.4} parent=11 // pred_region
        _
      $region24: #{down_forward.4} parent=11 // pred_fallthru
        _
    $region12: #{down_forward.4} parent=5 // pred_fallthru
      _
    %p177 = scmp.lt.s32.totalorder %s12, 2
    // Predicated region
    $region25: #{down_forward.4} parent=5 // pred_check
      %p178 = pneg %p177
    $region26: #{down_forward.4} parent=5 // pred_check_branch
      %180 = sbr.rel (%p178) target = $region28
    $region27: #{down_forward.4} parent=5 // pred_region
      // Predicated region
      $region29: #{down_forward.4} parent=27 // pred_check
        %p181 = pneg %p32
      $region30: #{down_forward.4} parent=27 // pred_check_branch
        %183 = sbr.rel (%p181) target = $region32
      $region31: #{down_forward.4} parent=27 // pred_region
        %p184 = scmp.lt.s32.totalorder %s12, 1
        %s185 = scalar_select %p184, %s12, 1
        %s186 = smul.addr %s185, 8
        %s187 = smul.addr %s186, 8
        %s188 = scalar_lea.vmem %s0, %s187
      $region32: #{down_forward.4} parent=27 // pred_fallthru
        _
    $region28: #{down_forward.4} parent=5 // pred_fallthru
      _
    %p189 = scmp.le.s32.totalorder 1, %s12
    %p190 = scmp.lt.s32.totalorder %s12, 3
    %p191 = pnand %p189, %p190
    %p192 = pneg %p191
    // Predicated region
    $region33: #{down_forward.4} parent=5 // pred_check
      _
    $region34: #{down_forward.4} parent=5 // pred_check_branch
      %194 = sbr.rel (%p191) target = $region36
    $region35: #{down_forward.4} parent=5 // pred_region
      %s195 = ssub.s32 %s12, 1
      %p196 = scmp.lt.s32.totalorder %s17, 1
      %s197 = scalar_select %p196, %s17, 1
      %s198 = smul.addr %s197, 8
      %s199 = smul.addr %s198, 8
      %s200 = scalar_lea.vmem %s0, %s199
      %p201 = pneg %p38
      %p202 = pneg %p35
      %p203 = pneg %p59
      %p204 = pneg %p56
      %p205 = pneg %p80
      %p206 = pneg %p77
      %p207 = pneg %p101
      %p208 = pneg %p98
      %p209 = pneg %p127
      %p210 = pneg %p124
      %p211 = scmp.lt.s32.totalorder %s17, 1
      %s212 = scalar_select %p211, %s17, 1
      %s213 = smul.addr %s212, 8
      %s214 = smul.addr %s213, 8
      %s215 = scalar_lea.vmem %s4, %s214
      %p216 = pneg %p153
      %p217 = pneg %p150
      %p218 = scmp.lt.s32.totalorder %s17, 1
      %s219 = scalar_select %p218, %s17, 1
      %s220 = smul.addr %s219, 2
      %s221 = scalar_lea.vmem %s5, %s220
      %p222 = scmp.lt.s32.totalorder %s17, 1
      %s223 = scalar_select %p222, %s17, 1
      %s224 = smul.addr %s223, 8
      %s225 = smul.addr %s224, 8
      %s226 = scalar_lea.vmem %s0, %s225
      %p227 = scmp.lt.s32.totalorder %s17, 1
      %s228 = scalar_select %p227, %s17, 1
      %s229 = smul.addr %s228, 8
      %s230 = smul.addr %s229, 8
      %s231 = scalar_lea.vmem %s4, %s230
      %p232 = scmp.lt.s32.totalorder %s17, 1
      %s233 = scalar_select %p232, %s17, 1
      %s234 = smul.addr %s233, 2
      %s235 = scalar_lea.vmem %s5, %s234
      %v237 = vld [vmem:[%s1] sm:$0x1]
      %v238 = vld [vmem:[%s2] sm:$0x1]
      %v239 = vld [vmem:[%s226] sm:$0xff]
      %v240 = vld [vmem:[%s226 + $0x8] sm:$0xff]
      %v241 = vld [vmem:[%s226 + $0x10] sm:$0xff]
      %v242 = vld [vmem:[%s226 + $0x18] sm:$0xff]
      %v243 = vld [vmem:[%s226 + $0x20] sm:$0xff]
      %v244 = vld [vmem:[%s226 + $0x28] sm:$0xff]
      %v245 = vld [vmem:[%s226 + $0x30] sm:$0xff]
      %v246 = vld [vmem:[%s226 + $0x38] sm:$0xff]
      %v248 = vlaneseq
      %v249 = vshrl.u32 %v248, 7
      %v250 = vsub.s32 0, %v249
      %v251 = vrot.slane %v237, %v250
      %v253 = vmul.f32 %v239, %v251
      %v254 = vmul.f32 %v240, %v251
      %v255 = vmul.f32 %v241, %v251
      %v256 = vmul.f32 %v242, %v251
      %v257 = vmul.f32 %v243, %v251
      %v258 = vmul.f32 %v244, %v251
      %v259 = vmul.f32 %v245, %v251
      %v260 = vmul.f32 %v246, %v251
      %v262 = vlaneseq
      %v263 = vshrl.u32 %v262, 7
      %v264 = vsub.s32 0, %v263
      %v265 = vrot.slane %v238, %v264
      %v267 = vadd.f32 %v253, %v265
      %v268 = vadd.f32 %v254, %v265
      %v269 = vadd.f32 %v255, %v265
      %v270 = vadd.f32 %v256, %v265
      %v271 = vadd.f32 %v257, %v265
      %v272 = vadd.f32 %v258, %v265
      %v273 = vadd.f32 %v259, %v265
      %v274 = vadd.f32 %v260, %v265
      %v275 = vmax.f32 %v267, 0.0
      %v276 = vmax.f32 %v268, 0.0
      %v277 = vmax.f32 %v269, 0.0
      %v278 = vmax.f32 %v270, 0.0
      %v279 = vmax.f32 %v271, 0.0
      %v280 = vmax.f32 %v272, 0.0
      %v281 = vmax.f32 %v273, 0.0
      %v282 = vmax.f32 %v274, 0.0
      %vm283 = vcmask 64512
      %284 = vst.msk [vmem:[#allocation2] sm:$0xff] %vm283, 0
      %s285 = scalar_lea.vmem [#allocation2], 72
      %286 = vst.msk [vmem:[%s285] sm:$0xff] %vm283, 0
      %vm287 = vcmask 57344
      %vm288 = vsmask.f32 256
      %vm289 = vmand %vm287, %vm288
      %v290 = vld [vmem:[#allocation2] sm:$0x1]
      %v291 = vsel %vm289, 0, %v290
      %292 = vst [vmem:[#allocation2] sm:$0x1] %v291
      %v293 = vld [vmem:[#allocation2 + $0x8] sm:$0x1]
      %v294 = vsel %vm289, 0, %v293
      %295 = vst [vmem:[#allocation2 + $0x8] sm:$0x1] %v294
      %v296 = vld [vmem:[#allocation2 + $0x10] sm:$0x1]
      %v297 = vsel %vm289, 0, %v296
      %298 = vst [vmem:[#allocation2 + $0x10] sm:$0x1] %v297
      %v299 = vld [vmem:[#allocation2 + $0x18] sm:$0x1]
      %v300 = vsel %vm289, 0, %v299
      %301 = vst [vmem:[#allocation2 + $0x18] sm:$0x1] %v300
      %v302 = vld [vmem:[#allocation2 + $0x20] sm:$0x1]
      %v303 = vsel %vm289, 0, %v302
      %304 = vst [vmem:[#allocation2 + $0x20] sm:$0x1] %v303
      %v305 = vld [vmem:[#allocation2 + $0x28] sm:$0x1]
      %v306 = vsel %vm289, 0, %v305
      %307 = vst [vmem:[#allocation2 + $0x28] sm:$0x1] %v306
      %v308 = vld [vmem:[#allocation2 + $0x30] sm:$0x1]
      %v309 = vsel %vm289, 0, %v308
      %310 = vst [vmem:[#allocation2 + $0x30] sm:$0x1] %v309
      %v311 = vld [vmem:[#allocation2 + $0x38] sm:$0x1]
      %v312 = vsel %vm289, 0, %v311
      %313 = vst [vmem:[#allocation2 + $0x38] sm:$0x1] %v312
      %v314 = vld [vmem:[#allocation2 + $0x40] sm:$0x1]
      %v315 = vsel %vm289, 0, %v314
      %316 = vst [vmem:[#allocation2 + $0x40] sm:$0x1] %v315
      %v317 = vld [vmem:[#allocation2 + $0x48] sm:$0x1]
      %v318 = vsel %vm289, 0, %v317
      %319 = vst [vmem:[#allocation2 + $0x48] sm:$0x1] %v318
      %vm320 = vcmask 61444
      %vm321 = vsmask.f32 7954
      %vm322 = vmand %vm320, %vm321
      %v323 = vld [vmem:[#allocation2] sm:$0x10]
      %v324 = vsel %vm322, 0, %v323
      %325 = vst [vmem:[#allocation2] sm:$0x10] %v324
      %v326 = vld [vmem:[#allocation2 + $0x8] sm:$0x10]
      %v327 = vsel %vm322, 0, %v326
      %328 = vst [vmem:[#allocation2 + $0x8] sm:$0x10] %v327
      %v329 = vld [vmem:[#allocation2 + $0x10] sm:$0x10]
      %v330 = vsel %vm322, 0, %v329
      %331 = vst [vmem:[#allocation2 + $0x10] sm:$0x10] %v330
      %v332 = vld [vmem:[#allocation2 + $0x18] sm:$0x10]
      %v333 = vsel %vm322, 0, %v332
      %334 = vst [vmem:[#allocation2 + $0x18] sm:$0x10] %v333
      %v335 = vld [vmem:[#allocation2 + $0x20] sm:$0x10]
      %v336 = vsel %vm322, 0, %v335
      %337 = vst [vmem:[#allocation2 + $0x20] sm:$0x10] %v336
      %v338 = vld [vmem:[#allocation2 + $0x28] sm:$0x10]
      %v339 = vsel %vm322, 0, %v338
      %340 = vst [vmem:[#allocation2 + $0x28] sm:$0x10] %v339
      %v341 = vld [vmem:[#allocation2 + $0x30] sm:$0x10]
      %v342 = vsel %vm322, 0, %v341
      %343 = vst [vmem:[#allocation2 + $0x30] sm:$0x10] %v342
      %v344 = vld [vmem:[#allocation2 + $0x38] sm:$0x10]
      %v345 = vsel %vm322, 0, %v344
      %346 = vst [vmem:[#allocation2 + $0x38] sm:$0x10] %v345
      %v347 = vld [vmem:[#allocation2 + $0x40] sm:$0x10]
      %v348 = vsel %vm322, 0, %v347
      %349 = vst [vmem:[#allocation2 + $0x40] sm:$0x10] %v348
      %v350 = vld [vmem:[#allocation2 + $0x48] sm:$0x10]
      %v351 = vsel %vm322, 0, %v350
      %352 = vst [vmem:[#allocation2 + $0x48] sm:$0x10] %v351
      %v353 = vpack.c.bf16 %v275, %v275
      %v354 = vpack.c.bf16 %v276, %v276
      %v355 = vpack.c.bf16 %v277, %v277
      %v356 = vpack.c.bf16 %v278, %v278
      %v357 = vpack.c.bf16 %v279, %v279
      %v358 = vpack.c.bf16 %v280, %v280
      %v359 = vpack.c.bf16 %v281, %v281
      %v360 = vpack.c.bf16 %v282, %v282
      %v362 = vshrl.u32 %v353, 16
      %v364 = vrot.slane %v362, 7
      %v365 = vshll.u32 %v353, 16
      %v367 = vor.u32 %v364, %v365
      %v369 = vshrl.u32 %v354, 16
      %v371 = vrot.slane %v369, 7
      %v372 = vshll.u32 %v354, 16
      %v374 = vor.u32 %v371, %v372
      %v376 = vshrl.u32 %v355, 16
      %v378 = vrot.slane %v376, 7
      %v379 = vshll.u32 %v355, 16
      %v381 = vor.u32 %v378, %v379
      %v383 = vshrl.u32 %v356, 16
      %v385 = vrot.slane %v383, 7
      %v386 = vshll.u32 %v356, 16
      %v388 = vor.u32 %v385, %v386
      %v390 = vshrl.u32 %v357, 16
      %v392 = vrot.slane %v390, 7
      %v393 = vshll.u32 %v357, 16
      %v395 = vor.u32 %v392, %v393
      %v397 = vshrl.u32 %v358, 16
      %v399 = vrot.slane %v397, 7
      %v400 = vshll.u32 %v358, 16
      %v402 = vor.u32 %v399, %v400
      %v404 = vshrl.u32 %v359, 16
      %v406 = vrot.slane %v404, 7
      %v407 = vshll.u32 %v359, 16
      %v409 = vor.u32 %v406, %v407
      %v411 = vshrl.u32 %v360, 16
      %v413 = vrot.slane %v411, 7
      %v414 = vshll.u32 %v360, 16
      %v416 = vor.u32 %v413, %v414
      %s425 = scalar_lea.vmem [#allocation2], 8
      %vm426 = vcmask 61440
      %vm427 = vsmask.f32 4354
      %vm428 = vmand %vm426, %vm427
      %v429 = vld [vmem:[%s425] sm:$0x1f]
      %v430 = vsel %vm428, %v367, %v429
      %431 = vst [vmem:[%s425] sm:$0x1f] %v430
      %v432 = vld [vmem:[%s425 + $0x8] sm:$0x1f]
      %v433 = vsel %vm428, %v374, %v432
      %434 = vst [vmem:[%s425 + $0x8] sm:$0x1f] %v433
      %v435 = vld [vmem:[%s425 + $0x10] sm:$0x1f]
      %v436 = vsel %vm428, %v381, %v435
      %437 = vst [vmem:[%s425 + $0x10] sm:$0x1f] %v436
      %v438 = vld [vmem:[%s425 + $0x18] sm:$0x1f]
      %v439 = vsel %vm428, %v388, %v438
      %440 = vst [vmem:[%s425 + $0x18] sm:$0x1f] %v439
      %v441 = vld [vmem:[%s425 + $0x20] sm:$0x1f]
      %v442 = vsel %vm428, %v395, %v441
      %443 = vst [vmem:[%s425 + $0x20] sm:$0x1f] %v442
      %v444 = vld [vmem:[%s425 + $0x28] sm:$0x1f]
      %v445 = vsel %vm428, %v402, %v444
      %446 = vst [vmem:[%s425 + $0x28] sm:$0x1f] %v445
      %v447 = vld [vmem:[%s425 + $0x30] sm:$0x1f]
      %v448 = vsel %vm428, %v409, %v447
      %449 = vst [vmem:[%s425 + $0x30] sm:$0x1f] %v448
      %v450 = vld [vmem:[%s425 + $0x38] sm:$0x1f]
      %v451 = vsel %vm428, %v416, %v450
      %452 = vst [vmem:[%s425 + $0x38] sm:$0x1f] %v451
      %v453 = vld [vmem:[#allocation2] sm:$0xf]
      %v454 = vld [vmem:[#allocation2 + $0x8] sm:$0xf]
      %v455 = vld [vmem:[#allocation2 + $0x10] sm:$0xf]
      %v456 = vld [vmem:[#allocation2 + $0x18] sm:$0xf]
      %v457 = vld [vmem:[#allocation2 + $0x20] sm:$0xf]
      %v458 = vld [vmem:[#allocation2 + $0x28] sm:$0xf]
      %v459 = vld [vmem:[#allocation2 + $0x30] sm:$0xf]
      %v460 = vld [vmem:[#allocation2 + $0x38] sm:$0xf]
      %v461 = vld [vmem:[%s3] sm:$0xf]
      %v462 = vld [vmem:[#allocation2] sm:$0x1f]
      %v463 = vld [vmem:[#allocation2 + $0x8] sm:$0x1f]
      %v464 = vld [vmem:[#allocation2 + $0x10] sm:$0x1f]
      %v465 = vld [vmem:[#allocation2 + $0x18] sm:$0x1f]
      %v466 = vld [vmem:[#allocation2 + $0x20] sm:$0x1f]
      %v467 = vld [vmem:[#allocation2 + $0x28] sm:$0x1f]
      %v468 = vld [vmem:[#allocation2 + $0x30] sm:$0x1f]
      %v469 = vld [vmem:[#allocation2 + $0x38] sm:$0x1f]
      %v478 = vunpack.c.l.b16 %v462
      %v479 = vunpack.c.h.b16 %v462
      %v480 = vunpack.c.l.b16 %v463
      %v481 = vunpack.c.h.b16 %v463
      %v482 = vunpack.c.l.b16 %v464
      %v483 = vunpack.c.h.b16 %v464
      %v484 = vunpack.c.l.b16 %v465
      %v485 = vunpack.c.h.b16 %v465
      %v486 = vunpack.c.l.b16 %v466
      %v487 = vunpack.c.h.b16 %v466
      %v488 = vunpack.c.l.b16 %v467
      %v489 = vunpack.c.h.b16 %v467
      %v490 = vunpack.c.l.b16 %v468
      %v491 = vunpack.c.h.b16 %v468
      %v492 = vunpack.c.l.b16 %v469
      %v493 = vunpack.c.h.b16 %v469
      %v494 = vpack.c.b16 %v478, %v478
      %v495 = vpack.c.b16 %v479, %v479
      %v496 = vpack.c.b16 %v480, %v480
      %v497 = vpack.c.b16 %v481, %v481
      %v498 = vpack.c.b16 %v482, %v482
      %v499 = vpack.c.b16 %v483, %v483
      %v500 = vpack.c.b16 %v484, %v484
      %v501 = vpack.c.b16 %v485, %v485
      %v502 = vpack.c.b16 %v486, %v486
      %v503 = vpack.c.b16 %v487, %v487
      %v504 = vpack.c.b16 %v488, %v488
      %v505 = vpack.c.b16 %v489, %v489
      %v506 = vpack.c.b16 %v490, %v490
      %v507 = vpack.c.b16 %v491, %v491
      %v508 = vpack.c.b16 %v492, %v492
      %v509 = vpack.c.b16 %v493, %v493
      %vm510 = vsmask.f32 3328
      %vm511 = vsmask.f32 7440
      %vm512 = vmor %vm510, %vm511
      %v514 = vshrl.u32 %v494, 16
      %v516 = vrot.slane %v514, 4
      %v517 = vshll.u32 %v494, 16
      %v519 = vrot.slane %v517, 5
      %v520 = vor.u32 %v516, %v519
      %v521 = vrot.slane %v520, 4
      %v523 = vshll.u32 %v495, 16
      %v525 = vrot.slane %v523, 5
      %v526 = vsel %vm512, %v521, %v525
      %v528 = vshrl.u32 %v496, 16
      %v530 = vrot.slane %v528, 4
      %v531 = vshll.u32 %v496, 16
      %v533 = vrot.slane %v531, 5
      %v534 = vor.u32 %v530, %v533
      %v535 = vrot.slane %v534, 4
      %v537 = vshll.u32 %v497, 16
      %v539 = vrot.slane %v537, 5
      %v540 = vsel %vm512, %v535, %v539
      %v542 = vshrl.u32 %v498, 16
      %v544 = vrot.slane %v542, 4
      %v545 = vshll.u32 %v498, 16
      %v547 = vrot.slane %v545, 5
      %v548 = vor.u32 %v544, %v547
      %v549 = vrot.slane %v548, 4
      %v551 = vshll.u32 %v499, 16
      %v553 = vrot.slane %v551, 5
      %v554 = vsel %vm512, %v549, %v553
      %v556 = vshrl.u32 %v500, 16
      %v558 = vrot.slane %v556, 4
      %v559 = vshll.u32 %v500, 16
      %v561 = vrot.slane %v559, 5
      %v562 = vor.u32 %v558, %v561
      %v563 = vrot.slane %v562, 4
      %v565 = vshll.u32 %v501, 16
      %v567 = vrot.slane %v565, 5
      %v568 = vsel %vm512, %v563, %v567
      %v570 = vshrl.u32 %v502, 16
      %v572 = vrot.slane %v570, 4
      %v573 = vshll.u32 %v502, 16
      %v575 = vrot.slane %v573, 5
      %v576 = vor.u32 %v572, %v575
      %v577 = vrot.slane %v576, 4
      %v579 = vshll.u32 %v503, 16
      %v581 = vrot.slane %v579, 5
      %v582 = vsel %vm512, %v577, %v581
      %v584 = vshrl.u32 %v504, 16
      %v586 = vrot.slane %v584, 4
      %v587 = vshll.u32 %v504, 16
      %v589 = vrot.slane %v587, 5
      %v590 = vor.u32 %v586, %v589
      %v591 = vrot.slane %v590, 4
      %v593 = vshll.u32 %v505, 16
      %v595 = vrot.slane %v593, 5
      %v596 = vsel %vm512, %v591, %v595
      %v598 = vshrl.u32 %v506, 16
      %v600 = vrot.slane %v598, 4
      %v601 = vshll.u32 %v506, 16
      %v603 = vrot.slane %v601, 5
      %v604 = vor.u32 %v600, %v603
      %v605 = vrot.slane %v604, 4
      %v607 = vshll.u32 %v507, 16
      %v609 = vrot.slane %v607, 5
      %v610 = vsel %vm512, %v605, %v609
      %v612 = vshrl.u32 %v508, 16
      %v614 = vrot.slane %v612, 4
      %v615 = vshll.u32 %v508, 16
      %v617 = vrot.slane %v615, 5
      %v618 = vor.u32 %v614, %v617
      %v619 = vrot.slane %v618, 4
      %v621 = vshll.u32 %v509, 16
      %v623 = vrot.slane %v621, 5
      %v624 = vsel %vm512, %v619, %v623
      %s625 = scalar_lea.vmem %s3, 4
      %v626 = vld [vmem:[%s625] sm:$0xf]
      %v627 = vunpack.c.l.b16 %v526
      %v628 = vunpack.c.l.b16 %v540
      %v629 = vunpack.c.l.b16 %v554
      %v630 = vunpack.c.l.b16 %v568
      %v631 = vunpack.c.l.b16 %v582
      %v632 = vunpack.c.l.b16 %v596
      %v633 = vunpack.c.l.b16 %v610
      %v634 = vunpack.c.l.b16 %v624
      %v635 = vpack.c.b16 %v628, %v627
      %v636 = vpack.c.b16 %v630, %v629
      %v637 = vpack.c.b16 %v632, %v631
      %v638 = vpack.c.b16 %v634, %v633
      %v640 = vsel %vm283, %v635, 0
      %v643 = vsel %vm283, %v636, 0
      %v646 = vsel %vm283, %v637, 0
      %v649 = vsel %vm283, %v638, 0
      %vm651 = vcmask 1043456
      %v653 = vsel %vm651, %v626, 0
      %655 = vmatprep.subr.bf16.mxu0 0
      %656 = vmatpush1.bf16.msra.mxu0 %v653
      %657 = vmatprep.subr.bf16.mxu0 0
      %658 = vmatpush1.bf16.msra.mxu0 0
      %659 = vmatprep.subr.bf16.mxu0 0
      %660 = vmatpush1.bf16.msra.mxu0 0
      %661 = vmatprep.subr.bf16.mxu0 0
      %662 = vmatpush1.bf16.msra.mxu0 0
      %663 = vmatprep.subr.bf16.mxu0 0
      %664 = vmatpush1.bf16.msra.mxu0 0
      %665 = vmatprep.subr.bf16.mxu0 0
      %666 = vmatpush1.bf16.msra.mxu0 0
      %667 = vmatprep.subr.bf16.mxu0 0
      %668 = vmatpush1.bf16.msra.mxu0 0
      %669 = vmatprep.subr.bf16.mxu0 0
      %670 = vmatpush1.bf16.msra.mxu0 0
      %671 = vmatprep.subr.bf16.mxu0 0
      %672 = vmatpush1.bf16.msra.mxu0 0
      %673 = vmatprep.subr.bf16.mxu0 0
      %674 = vmatpush1.bf16.msra.mxu0 0
      %675 = vmatprep.subr.bf16.mxu0 0
      %676 = vmatpush1.bf16.msra.mxu0 0
      %677 = vmatprep.subr.bf16.mxu0 0
      %678 = vmatpush1.bf16.msra.mxu0 0
      %679 = vmatprep.subr.bf16.mxu0 0
      %680 = vmatpush1.bf16.msra.mxu0 0
      %681 = vmatprep.subr.bf16.mxu0 0
      %682 = vmatpush1.bf16.msra.mxu0 0
      %683 = vmatprep.subr.bf16.mxu0 0
      %684 = vmatpush1.bf16.msra.mxu0 0
      %685 = vmatprep.subr.bf16.mxu0 0
      %686 = vmatpush1.bf16.msra.mxu0 0
      %687 = vmatprep.mubr.bf16.mxu0 0
      %688 = vmatmul.mubr.bf16.gmra.mrb[0].mxu0 %v640
      %v689 = vpop.f32.mrb[0].mxu0
      %v690 = vadd.f32 0.0, %v689
      %v691 = vpop.f32.mrb[0].mxu0
      %v692 = vpop.f32.mrb[0].mxu0
      %v693 = vadd.f32 0.0, %v692
      %v694 = vpop.f32.mrb[0].mxu0
      %695 = vmatprep.mubr.bf16.mxu0 0
      %696 = vmatmul.mubr.bf16.gmra.mrb[0].mxu0 %v643
      %v697 = vpop.f32.mrb[0].mxu0
      %v698 = vadd.f32 0.0, %v697
      %v699 = vpop.f32.mrb[0].mxu0
      %v700 = vpop.f32.mrb[0].mxu0
      %v701 = vadd.f32 0.0, %v700
      %v702 = vpop.f32.mrb[0].mxu0
      %703 = vmatprep.mubr.bf16.mxu0 0
      %704 = vmatmul.mubr.bf16.gmra.mrb[0].mxu0 %v646
      %v705 = vpop.f32.mrb[0].mxu0
      %v706 = vadd.f32 0.0, %v705
      %v707 = vpop.f32.mrb[0].mxu0
      %v708 = vpop.f32.mrb[0].mxu0
      %v709 = vadd.f32 0.0, %v708
      %v710 = vpop.f32.mrb[0].mxu0
      %711 = vmatprep.mubr.bf16.mxu0 0
      %712 = vmatmul.mubr.bf16.gmra.mrb[0].mxu0 %v649
      %v713 = vpop.f32.mrb[0].mxu0
      %v714 = vadd.f32 0.0, %v713
      %v715 = vpop.f32.mrb[0].mxu0
      %v716 = vpop.f32.mrb[0].mxu0
      %v717 = vadd.f32 0.0, %v716
      %v718 = vpop.f32.mrb[0].mxu0
      %719 = vdwg.mxu0
      %v728 = vunpack.c.l.b16 %v453
      %v729 = vunpack.c.l.b16 %v454
      %v730 = vunpack.c.l.b16 %v455
      %v731 = vunpack.c.l.b16 %v456
      %v732 = vunpack.c.l.b16 %v457
      %v733 = vunpack.c.l.b16 %v458
      %v734 = vunpack.c.l.b16 %v459
      %v735 = vunpack.c.l.b16 %v460
      %v736 = vpack.c.b16 %v729, %v728
      %v737 = vpack.c.b16 %v731, %v730
      %v738 = vpack.c.b16 %v733, %v732
      %v739 = vpack.c.b16 %v735, %v734
      %v741 = vsel %vm283, %v736, 0
      %v744 = vsel %vm283, %v737, 0
      %v747 = vsel %vm283, %v738, 0
      %v750 = vsel %vm283, %v739, 0
      %v753 = vsel %vm651, %v461, 0
      %755 = vmatprep.subr.bf16.mxu0 0
      %756 = vmatpush1.bf16.msra.mxu0 %v753
      %757 = vmatprep.subr.bf16.mxu0 0
      %758 = vmatpush1.bf16.msra.mxu0 0
      %759 = vmatprep.subr.bf16.mxu0 0
      %760 = vmatpush1.bf16.msra.mxu0 0
      %761 = vmatprep.subr.bf16.mxu0 0
      %762 = vmatpush1.bf16.msra.mxu0 0
      %763 = vmatprep.subr.bf16.mxu0 0
      %764 = vmatpush1.bf16.msra.mxu0 0
      %765 = vmatprep.subr.bf16.mxu0 0
      %766 = vmatpush1.bf16.msra.mxu0 0
      %767 = vmatprep.subr.bf16.mxu0 0
      %768 = vmatpush1.bf16.msra.mxu0 0
      %769 = vmatprep.subr.bf16.mxu0 0
      %770 = vmatpush1.bf16.msra.mxu0 0
      %771 = vmatprep.subr.bf16.mxu0 0
      %772 = vmatpush1.bf16.msra.mxu0 0
      %773 = vmatprep.subr.bf16.mxu0 0
      %774 = vmatpush1.bf16.msra.mxu0 0
      %775 = vmatprep.subr.bf16.mxu0 0
      %776 = vmatpush1.bf16.msra.mxu0 0
      %777 = vmatprep.subr.bf16.mxu0 0
      %778 = vmatpush1.bf16.msra.mxu0 0
      %779 = vmatprep.subr.bf16.mxu0 0
      %780 = vmatpush1.bf16.msra.mxu0 0
      %781 = vmatprep.subr.bf16.mxu0 0
      %782 = vmatpush1.bf16.msra.mxu0 0
      %783 = vmatprep.subr.bf16.mxu0 0
      %784 = vmatpush1.bf16.msra.mxu0 0
      %785 = vmatprep.subr.bf16.mxu0 0
      %786 = vmatpush1.bf16.msra.mxu0 0
      %787 = vmatprep.mubr.bf16.mxu0 0
      %788 = vmatmul.mubr.bf16.gmra.mrb[0].mxu0 %v741
      %v789 = vpop.f32.mrb[0].mxu0
      %v790 = vadd.f32 %v690, %v789
      %v791 = vpop.f32.mrb[0].mxu0
      %v792 = vpop.f32.mrb[0].mxu0
      %v793 = vadd.f32 %v693, %v792
      %v794 = vpop.f32.mrb[0].mxu0
      %795 = vmatprep.mubr.bf16.mxu0 0
      %796 = vmatmul.mubr.bf16.gmra.mrb[0].mxu0 %v744
      %v797 = vpop.f32.mrb[0].mxu0
      %v798 = vadd.f32 %v698, %v797
      %v799 = vpop.f32.mrb[0].mxu0
      %v800 = vpop.f32.mrb[0].mxu0
      %v801 = vadd.f32 %v701, %v800
      %v802 = vpop.f32.mrb[0].mxu0
      %803 = vmatprep.mubr.bf16.mxu0 0
      %804 = vmatmul.mubr.bf16.gmra.mrb[0].mxu0 %v747
      %v805 = vpop.f32.mrb[0].mxu0
      %v806 = vadd.f32 %v706, %v805
      %v807 = vpop.f32.mrb[0].mxu0
      %v808 = vpop.f32.mrb[0].mxu0
      %v809 = vadd.f32 %v709, %v808
      %v810 = vpop.f32.mrb[0].mxu0
      %811 = vmatprep.mubr.bf16.mxu0 0
      %812 = vmatmul.mubr.bf16.gmra.mrb[0].mxu0 %v750
      %v813 = vpop.f32.mrb[0].mxu0
      %v814 = vadd.f32 %v714, %v813
      %v815 = vpop.f32.mrb[0].mxu0
      %v816 = vpop.f32.mrb[0].mxu0
      %v817 = vadd.f32 %v717, %v816
      %v818 = vpop.f32.mrb[0].mxu0
      %819 = vdwg.mxu0
      %v820 = vld [vmem:[#allocation2] sm:$0x1e]
      %v821 = vld [vmem:[#allocation2 + $0x8] sm:$0x1e]
      %v822 = vld [vmem:[#allocation2 + $0x10] sm:$0x1e]
      %v823 = vld [vmem:[#allocation2 + $0x18] sm:$0x1e]
      %v824 = vld [vmem:[#allocation2 + $0x20] sm:$0x1e]
      %v825 = vld [vmem:[#allocation2 + $0x28] sm:$0x1e]
      %v826 = vld [vmem:[#allocation2 + $0x30] sm:$0x1e]
      %v827 = vld [vmem:[#allocation2 + $0x38] sm:$0x1e]
      %v836 = vunpack.c.l.b16 %v820
      %v837 = vunpack.c.h.b16 %v820
      %v838 = vunpack.c.l.b16 %v821
      %v839 = vunpack.c.h.b16 %v821
      %v840 = vunpack.c.l.b16 %v822
      %v841 = vunpack.c.h.b16 %v822
      %v842 = vunpack.c.l.b16 %v823
      %v843 = vunpack.c.h.b16 %v823
      %v844 = vunpack.c.l.b16 %v824
      %v845 = vunpack.c.h.b16 %v824
      %v846 = vunpack.c.l.b16 %v825
      %v847 = vunpack.c.h.b16 %v825
      %v848 = vunpack.c.l.b16 %v826
      %v849 = vunpack.c.h.b16 %v826
      %v850 = vunpack.c.l.b16 %v827
      %v851 = vunpack.c.h.b16 %v827
      %v852 = vpack.c.b16 %v836, %v836
      %v853 = vpack.c.b16 %v837, %v837
      %v854 = vpack.c.b16 %v838, %v838
      %v855 = vpack.c.b16 %v839, %v839
      %v856 = vpack.c.b16 %v840, %v840
      %v857 = vpack.c.b16 %v841, %v841
      %v858 = vpack.c.b16 %v842, %v842
      %v859 = vpack.c.b16 %v843, %v843
      %v860 = vpack.c.b16 %v844, %v844
      %v861 = vpack.c.b16 %v845, %v845
      %v862 = vpack.c.b16 %v846, %v846
      %v863 = vpack.c.b16 %v847, %v847
      %v864 = vpack.c.b16 %v848, %v848
      %v865 = vpack.c.b16 %v849, %v849
      %v866 = vpack.c.b16 %v850, %v850
      %v867 = vpack.c.b16 %v851, %v851
      %vm868 = vcmask 1042432
      %vm869 = vcmask 1046532
      %vm870 = vmor %vm868, %vm869
      %v871 = vrot.slane %v852, 5
      %v872 = vrot.slane %v871, 4
      %v873 = vrot.slane %v853, 5
      %v874 = vsel %vm870, %v872, %v873
      %v875 = vrot.slane %v854, 5
      %v876 = vrot.slane %v875, 4
      %v877 = vrot.slane %v855, 5
      %v878 = vsel %vm870, %v876, %v877
      %v879 = vrot.slane %v856, 5
      %v880 = vrot.slane %v879, 4
      %v881 = vrot.slane %v857, 5
      %v882 = vsel %vm870, %v880, %v881
      %v883 = vrot.slane %v858, 5
      %v884 = vrot.slane %v883, 4
      %v885 = vrot.slane %v859, 5
      %v886 = vsel %vm870, %v884, %v885
      %v887 = vrot.slane %v860, 5
      %v888 = vrot.slane %v887, 4
      %v889 = vrot.slane %v861, 5
      %v890 = vsel %vm870, %v888, %v889
      %v891 = vrot.slane %v862, 5
      %v892 = vrot.slane %v891, 4
      %v893 = vrot.slane %v863, 5
      %v894 = vsel %vm870, %v892, %v893
      %v895 = vrot.slane %v864, 5
      %v896 = vrot.slane %v895, 4
      %v897 = vrot.slane %v865, 5
      %v898 = vsel %vm870, %v896, %v897
      %v899 = vrot.slane %v866, 5
      %v900 = vrot.slane %v899, 4
      %v901 = vrot.slane %v867, 5
      %v902 = vsel %vm870, %v900, %v901
      %s903 = scalar_lea.vmem %s3, 8
      %v904 = vld [vmem:[%s903] sm:$0xf]
      %v905 = vunpack.c.l.b16 %v874
      %v906 = vunpack.c.l.b16 %v878
      %v907 = vunpack.c.l.b16 %v882
      %v908 = vunpack.c.l.b16 %v886
      %v909 = vunpack.c.l.b16 %v890
      %v910 = vunpack.c.l.b16 %v894
      %v911 = vunpack.c.l.b16 %v898
      %v912 = vunpack.c.l.b16 %v902
      %v913 = vpack.c.b16 %v906, %v905
      %v914 = vpack.c.b16 %v908, %v907
      %v915 = vpack.c.b16 %v910, %v909
      %v916 = vpack.c.b16 %v912, %v911
      %v918 = vsel %vm283, %v913, 0
      %v921 = vsel %vm283, %v914, 0
      %v924 = vsel %vm283, %v915, 0
      %v927 = vsel %vm283, %v916, 0
      %v930 = vsel %vm651, %v904, 0
      %932 = vmatprep.subr.bf16.mxu0 0
      %933 = vmatpush1.bf16.msra.mxu0 %v930
      %934 = vmatprep.subr.bf16.mxu0 0
      %935 = vmatpush1.bf16.msra.mxu0 0
      %936 = vmatprep.subr.bf16.mxu0 0
      %937 = vmatpush1.bf16.msra.mxu0 0
      %938 = vmatprep.subr.bf16.mxu0 0
      %939 = vmatpush1.bf16.msra.mxu0 0
      %940 = vmatprep.subr.bf16.mxu0 0
      %941 = vmatpush1.bf16.msra.mxu0 0
      %942 = vmatprep.subr.bf16.mxu0 0
      %943 = vmatpush1.bf16.msra.mxu0 0
      %944 = vmatprep.subr.bf16.mxu0 0
      %945 = vmatpush1.bf16.msra.mxu0 0
      %946 = vmatprep.subr.bf16.mxu0 0
      %947 = vmatpush1.bf16.msra.mxu0 0
      %948 = vmatprep.subr.bf16.mxu0 0
      %949 = vmatpush1.bf16.msra.mxu0 0
      %950 = vmatprep.subr.bf16.mxu0 0
      %951 = vmatpush1.bf16.msra.mxu0 0
      %952 = vmatprep.subr.bf16.mxu0 0
      %953 = vmatpush1.bf16.msra.mxu0 0
      %954 = vmatprep.subr.bf16.mxu0 0
      %955 = vmatpush1.bf16.msra.mxu0 0
      %956 = vmatprep.subr.bf16.mxu0 0
      %957 = vmatpush1.bf16.msra.mxu0 0
      %958 = vmatprep.subr.bf16.mxu0 0
      %959 = vmatpush1.bf16.msra.mxu0 0
      %960 = vmatprep.subr.bf16.mxu0 0
      %961 = vmatpush1.bf16.msra.mxu0 0
      %962 = vmatprep.subr.bf16.mxu0 0
      %963 = vmatpush1.bf16.msra.mxu0 0
      %964 = vmatprep.mubr.bf16.mxu0 0
      %965 = vmatmul.mubr.bf16.gmra.mrb[0].mxu0 %v918
      %v966 = vpop.f32.mrb[0].mxu0
      %v967 = vadd.f32 0.0, %v966
      %v968 = vpop.f32.mrb[0].mxu0
      %v969 = vpop.f32.mrb[0].mxu0
      %v970 = vadd.f32 0.0, %v969
      %v971 = vpop.f32.mrb[0].mxu0
      %972 = vmatprep.mubr.bf16.mxu0 0
      %973 = vmatmul.mubr.bf16.gmra.mrb[0].mxu0 %v921
      %v974 = vpop.f32.mrb[0].mxu0
      %v975 = vadd.f32 0.0, %v974
      %v976 = vpop.f32.mrb[0].mxu0
      %v977 = vpop.f32.mrb[0].mxu0
      %v978 = vadd.f32 0.0, %v977
      %v979 = vpop.f32.mrb[0].mxu0
      %980 = vmatprep.mubr.bf16.mxu0 0
      %981 = vmatmul.mubr.bf16.gmra.mrb[0].mxu0 %v924
      %v982 = vpop.f32.mrb[0].mxu0
      %v983 = vadd.f32 0.0, %v982
      %v984 = vpop.f32.mrb[0].mxu0
      %v985 = vpop.f32.mrb[0].mxu0
      %v986 = vadd.f32 0.0, %v985
      %v987 = vpop.f32.mrb[0].mxu0
      %988 = vmatprep.mubr.bf16.mxu0 0
      %989 = vmatmul.mubr.bf16.gmra.mrb[0].mxu0 %v927
      %v990 = vpop.f32.mrb[0].mxu0
      %v991 = vadd.f32 0.0, %v990
      %v992 = vpop.f32.mrb[0].mxu0
      %v993 = vpop.f32.mrb[0].mxu0
      %v994 = vadd.f32 0.0, %v993
      %v995 = vpop.f32.mrb[0].mxu0
      %996 = vdwg.mxu0
      %v997 = vadd.f32 %v790, %v967
      %v998 = vadd.f32 %v793, %v970
      %v999 = vadd.f32 %v798, %v975
      %v1000 = vadd.f32 %v801, %v978
      %v1001 = vadd.f32 %v806, %v983
      %v1002 = vadd.f32 %v809, %v986
      %v1003 = vadd.f32 %v814, %v991
      %v1004 = vadd.f32 %v817, %v994
      %v1005 = vld [vmem:[%s425] sm:$0xf]
      %v1006 = vld [vmem:[%s425 + $0x8] sm:$0xf]
      %v1007 = vld [vmem:[%s425 + $0x10] sm:$0xf]
      %v1008 = vld [vmem:[%s425 + $0x18] sm:$0xf]
      %v1009 = vld [vmem:[%s425 + $0x20] sm:$0xf]
      %v1010 = vld [vmem:[%s425 + $0x28] sm:$0xf]
      %v1011 = vld [vmem:[%s425 + $0x30] sm:$0xf]
      %v1012 = vld [vmem:[%s425 + $0x38] sm:$0xf]
      %s1013 = scalar_lea.vmem %s3, 12
      %v1014 = vld [vmem:[%s1013] sm:$0xf]
      %v1023 = vunpack.c.l.b16 %v1005
      %v1024 = vunpack.c.l.b16 %v1006
      %v1025 = vunpack.c.l.b16 %v1007
      %v1026 = vunpack.c.l.b16 %v1008
      %v1027 = vunpack.c.l.b16 %v1009
      %v1028 = vunpack.c.l.b16 %v1010
      %v1029 = vunpack.c.l.b16 %v1011
      %v1030 = vunpack.c.l.b16 %v1012
      %v1031 = vpack.c.b16 %v1024, %v1023
      %v1032 = vpack.c.b16 %v1026, %v1025
      %v1033 = vpack.c.b16 %v1028, %v1027
      %v1034 = vpack.c.b16 %v1030, %v1029
      %v1036 = vsel %vm283, %v1031, 0
      %v1039 = vsel %vm283, %v1032, 0
      %v1042 = vsel %vm283, %v1033, 0
      %v1045 = vsel %vm283, %v1034, 0
      %v1048 = vsel %vm651, %v1014, 0
      %1050 = vmatprep.subr.bf16.mxu0 0
      %1051 = vmatpush1.bf16.msra.mxu0 %v1048
      %1052 = vmatprep.subr.bf16.mxu0 0
      %1053 = vmatpush1.bf16.msra.mxu0 0
      %1054 = vmatprep.subr.bf16.mxu0 0
      %1055 = vmatpush1.bf16.msra.mxu0 0
      %1056 = vmatprep.subr.bf16.mxu0 0
      %1057 = vmatpush1.bf16.msra.mxu0 0
      %1058 = vmatprep.subr.bf16.mxu0 0
      %1059 = vmatpush1.bf16.msra.mxu0 0
      %1060 = vmatprep.subr.bf16.mxu0 0
      %1061 = vmatpush1.bf16.msra.mxu0 0
      %1062 = vmatprep.subr.bf16.mxu0 0
      %1063 = vmatpush1.bf16.msra.mxu0 0
      %1064 = vmatprep.subr.bf16.mxu0 0
      %1065 = vmatpush1.bf16.msra.mxu0 0
      %1066 = vmatprep.subr.bf16.mxu0 0
      %1067 = vmatpush1.bf16.msra.mxu0 0
      %1068 = vmatprep.subr.bf16.mxu0 0
      %1069 = vmatpush1.bf16.msra.mxu0 0
      %1070 = vmatprep.subr.bf16.mxu0 0
      %1071 = vmatpush1.bf16.msra.mxu0 0
      %1072 = vmatprep.subr.bf16.mxu0 0
      %1073 = vmatpush1.bf16.msra.mxu0 0
      %1074 = vmatprep.subr.bf16.mxu0 0
      %1075 = vmatpush1.bf16.msra.mxu0 0
      %1076 = vmatprep.subr.bf16.mxu0 0
      %1077 = vmatpush1.bf16.msra.mxu0 0
      %1078 = vmatprep.subr.bf16.mxu0 0
      %1079 = vmatpush1.bf16.msra.mxu0 0
      %1080 = vmatprep.subr.bf16.mxu0 0
      %1081 = vmatpush1.bf16.msra.mxu0 0
      %1082 = vmatprep.mubr.bf16.mxu0 0
      %1083 = vmatmul.mubr.bf16.gmra.mrb[0].mxu0 %v1036
      %v1084 = vpop.f32.mrb[0].mxu0
      %v1085 = vadd.f32 0.0, %v1084
      %v1086 = vpop.f32.mrb[0].mxu0
      %v1087 = vpop.f32.mrb[0].mxu0
      %v1088 = vadd.f32 0.0, %v1087
      %v1089 = vpop.f32.mrb[0].mxu0
      %1090 = vmatprep.mubr.bf16.mxu0 0
      %1091 = vmatmul.mubr.bf16.gmra.mrb[0].mxu0 %v1039
      %v1092 = vpop.f32.mrb[0].mxu0
      %v1093 = vadd.f32 0.0, %v1092
      %v1094 = vpop.f32.mrb[0].mxu0
      %v1095 = vpop.f32.mrb[0].mxu0
      %v1096 = vadd.f32 0.0, %v1095
      %v1097 = vpop.f32.mrb[0].mxu0
      %1098 = vmatprep.mubr.bf16.mxu0 0
      %1099 = vmatmul.mubr.bf16.gmra.mrb[0].mxu0 %v1042
      %v1100 = vpop.f32.mrb[0].mxu0
      %v1101 = vadd.f32 0.0, %v1100
      %v1102 = vpop.f32.mrb[0].mxu0
      %v1103 = vpop.f32.mrb[0].mxu0
      %v1104 = vadd.f32 0.0, %v1103
      %v1105 = vpop.f32.mrb[0].mxu0
      %1106 = vmatprep.mubr.bf16.mxu0 0
      %1107 = vmatmul.mubr.bf16.gmra.mrb[0].mxu0 %v1045
      %v1108 = vpop.f32.mrb[0].mxu0
      %v1109 = vadd.f32 0.0, %v1108
      %v1110 = vpop.f32.mrb[0].mxu0
      %v1111 = vpop.f32.mrb[0].mxu0
      %v1112 = vadd.f32 0.0, %v1111
      %v1113 = vpop.f32.mrb[0].mxu0
      %1114 = vdwg.mxu0
      %v1115 = vadd.f32 %v997, %v1085
      %v1116 = vadd.f32 %v998, %v1088
      %v1117 = vadd.f32 %v999, %v1093
      %v1118 = vadd.f32 %v1000, %v1096
      %v1119 = vadd.f32 %v1001, %v1101
      %v1120 = vadd.f32 %v1002, %v1104
      %v1121 = vadd.f32 %v1003, %v1109
      %v1122 = vadd.f32 %v1004, %v1112
      %v1123 = vld [vmem:[%s425] sm:$0x1f]
      %v1124 = vld [vmem:[%s425 + $0x8] sm:$0x1f]
      %v1125 = vld [vmem:[%s425 + $0x10] sm:$0x1f]
      %v1126 = vld [vmem:[%s425 + $0x18] sm:$0x1f]
      %v1127 = vld [vmem:[%s425 + $0x20] sm:$0x1f]
      %v1128 = vld [vmem:[%s425 + $0x28] sm:$0x1f]
      %v1129 = vld [vmem:[%s425 + $0x30] sm:$0x1f]
      %v1130 = vld [vmem:[%s425 + $0x38] sm:$0x1f]
      %v1139 = vunpack.c.l.b16 %v1123
      %v1140 = vunpack.c.h.b16 %v1123
      %v1141 = vunpack.c.l.b16 %v1124
      %v1142 = vunpack.c.h.b16 %v1124
      %v1143 = vunpack.c.l.b16 %v1125
      %v1144 = vunpack.c.h.b16 %v1125
      %v1145 = vunpack.c.l.b16 %v1126
      %v1146 = vunpack.c.h.b16 %v1126
      %v1147 = vunpack.c.l.b16 %v1127
      %v1148 = vunpack.c.h.b16 %v1127
      %v1149 = vunpack.c.l.b16 %v1128
      %v1150 = vunpack.c.h.b16 %v1128
      %v1151 = vunpack.c.l.b16 %v1129
      %v1152 = vunpack.c.h.b16 %v1129
      %v1153 = vunpack.c.l.b16 %v1130
      %v1154 = vunpack.c.h.b16 %v1130
      %v1155 = vpack.c.b16 %v1139, %v1139
      %v1156 = vpack.c.b16 %v1140, %v1140
      %v1157 = vpack.c.b16 %v1141, %v1141
      %v1158 = vpack.c.b16 %v1142, %v1142
      %v1159 = vpack.c.b16 %v1143, %v1143
      %v1160 = vpack.c.b16 %v1144, %v1144
      %v1161 = vpack.c.b16 %v1145, %v1145
      %v1162 = vpack.c.b16 %v1146, %v1146
      %v1163 = vpack.c.b16 %v1147, %v1147
      %v1164 = vpack.c.b16 %v1148, %v1148
      %v1165 = vpack.c.b16 %v1149, %v1149
      %v1166 = vpack.c.b16 %v1150, %v1150
      %v1167 = vpack.c.b16 %v1151, %v1151
      %v1168 = vpack.c.b16 %v1152, %v1152
      %v1169 = vpack.c.b16 %v1153, %v1153
      %v1170 = vpack.c.b16 %v1154, %v1154
      %v1172 = vshrl.u32 %v1155, 16
      %v1174 = vrot.slane %v1172, 4
      %v1175 = vshll.u32 %v1155, 16
      %v1177 = vrot.slane %v1175, 5
      %v1178 = vor.u32 %v1174, %v1177
      %v1179 = vrot.slane %v1178, 4
      %v1181 = vshll.u32 %v1156, 16
      %v1183 = vrot.slane %v1181, 5
      %v1184 = vsel %vm512, %v1179, %v1183
      %v1186 = vshrl.u32 %v1157, 16
      %v1188 = vrot.slane %v1186, 4
      %v1189 = vshll.u32 %v1157, 16
      %v1191 = vrot.slane %v1189, 5
      %v1192 = vor.u32 %v1188, %v1191
      %v1193 = vrot.slane %v1192, 4
      %v1195 = vshll.u32 %v1158, 16
      %v1197 = vrot.slane %v1195, 5
      %v1198 = vsel %vm512, %v1193, %v1197
      %v1200 = vshrl.u32 %v1159, 16
      %v1202 = vrot.slane %v1200, 4
      %v1203 = vshll.u32 %v1159, 16
      %v1205 = vrot.slane %v1203, 5
      %v1206 = vor.u32 %v1202, %v1205
      %v1207 = vrot.slane %v1206, 4
      %v1209 = vshll.u32 %v1160, 16
      %v1211 = vrot.slane %v1209, 5
      %v1212 = vsel %vm512, %v1207, %v1211
      %v1214 = vshrl.u32 %v1161, 16
      %v1216 = vrot.slane %v1214, 4
      %v1217 = vshll.u32 %v1161, 16
      %v1219 = vrot.slane %v1217, 5
      %v1220 = vor.u32 %v1216, %v1219
      %v1221 = vrot.slane %v1220, 4
      %v1223 = vshll.u32 %v1162, 16
      %v1225 = vrot.slane %v1223, 5
      %v1226 = vsel %vm512, %v1221, %v1225
      %v1228 = vshrl.u32 %v1163, 16
      %v1230 = vrot.slane %v1228, 4
      %v1231 = vshll.u32 %v1163, 16
      %v1233 = vrot.slane %v1231, 5
      %v1234 = vor.u32 %v1230, %v1233
      %v1235 = vrot.slane %v1234, 4
      %v1237 = vshll.u32 %v1164, 16
      %v1239 = vrot.slane %v1237, 5
      %v1240 = vsel %vm512, %v1235, %v1239
      %v1242 = vshrl.u32 %v1165, 16
      %v1244 = vrot.slane %v1242, 4
      %v1245 = vshll.u32 %v1165, 16
      %v1247 = vrot.slane %v1245, 5
      %v1248 = vor.u32 %v1244, %v1247
      %v1249 = vrot.slane %v1248, 4
      %v1251 = vshll.u32 %v1166, 16
      %v1253 = vrot.slane %v1251, 5
      %v1254 = vsel %vm512, %v1249, %v1253
      %v1256 = vshrl.u32 %v1167, 16
      %v1258 = vrot.slane %v1256, 4
      %v1259 = vshll.u32 %v1167, 16
      %v1261 = vrot.slane %v1259, 5
      %v1262 = vor.u32 %v1258, %v1261
      %v1263 = vrot.slane %v1262, 4
      %v1265 = vshll.u32 %v1168, 16
      %v1267 = vrot.slane %v1265, 5
      %v1268 = vsel %vm512, %v1263, %v1267
      %v1270 = vshrl.u32 %v1169, 16
      %v1272 = vrot.slane %v1270, 4
      %v1273 = vshll.u32 %v1169, 16
      %v1275 = vrot.slane %v1273, 5
      %v1276 = vor.u32 %v1272, %v1275
      %v1277 = vrot.slane %v1276, 4
      %v1279 = vshll.u32 %v1170, 16
      %v1281 = vrot.slane %v1279, 5
      %v1282 = vsel %vm512, %v1277, %v1281
      %s1283 = scalar_lea.vmem %s3, 16
      %v1284 = vld [vmem:[%s1283] sm:$0xf]
      %v1285 = vunpack.c.l.b16 %v1184
      %v1286 = vunpack.c.l.b16 %v1198
      %v1287 = vunpack.c.l.b16 %v1212
      %v1288 = vunpack.c.l.b16 %v1226
      %v1289 = vunpack.c.l.b16 %v1240
      %v1290 = vunpack.c.l.b16 %v1254
      %v1291 = vunpack.c.l.b16 %v1268
      %v1292 = vunpack.c.l.b16 %v1282
      %v1293 = vpack.c.b16 %v1286, %v1285
      %v1294 = vpack.c.b16 %v1288, %v1287
      %v1295 = vpack.c.b16 %v1290, %v1289
      %v1296 = vpack.c.b16 %v1292, %v1291
      %v1298 = vsel %vm283, %v1293, 0
      %v1301 = vsel %vm283, %v1294, 0
      %v1304 = vsel %vm283, %v1295, 0
      %v1307 = vsel %vm283, %v1296, 0
      %v1310 = vsel %vm651, %v1284, 0
      %1312 = vmatprep.subr.bf16.mxu0 0
      %1313 = vmatpush1.bf16.msra.mxu0 %v1310
      %1314 = vmatprep.subr.bf16.mxu0 0
      %1315 = vmatpush1.bf16.msra.mxu0 0
      %1316 = vmatprep.subr.bf16.mxu0 0
      %1317 = vmatpush1.bf16.msra.mxu0 0
      %1318 = vmatprep.subr.bf16.mxu0 0
      %1319 = vmatpush1.bf16.msra.mxu0 0
      %1320 = vmatprep.subr.bf16.mxu0 0
      %1321 = vmatpush1.bf16.msra.mxu0 0
      %1322 = vmatprep.subr.bf16.mxu0 0
      %1323 = vmatpush1.bf16.msra.mxu0 0
      %1324 = vmatprep.subr.bf16.mxu0 0
      %1325 = vmatpush1.bf16.msra.mxu0 0
      %1326 = vmatprep.subr.bf16.mxu0 0
      %1327 = vmatpush1.bf16.msra.mxu0 0
      %1328 = vmatprep.subr.bf16.mxu0 0
      %1329 = vmatpush1.bf16.msra.mxu0 0
      %1330 = vmatprep.subr.bf16.mxu0 0
      %1331 = vmatpush1.bf16.msra.mxu0 0
      %1332 = vmatprep.subr.bf16.mxu0 0
      %1333 = vmatpush1.bf16.msra.mxu0 0
      %1334 = vmatprep.subr.bf16.mxu0 0
      %1335 = vmatpush1.bf16.msra.mxu0 0
      %1336 = vmatprep.subr.bf16.mxu0 0
      %1337 = vmatpush1.bf16.msra.mxu0 0
      %1338 = vmatprep.subr.bf16.mxu0 0
      %1339 = vmatpush1.bf16.msra.mxu0 0
      %1340 = vmatprep.subr.bf16.mxu0 0
      %1341 = vmatpush1.bf16.msra.mxu0 0
      %1342 = vmatprep.subr.bf16.mxu0 0
      %1343 = vmatpush1.bf16.msra.mxu0 0
      %1344 = vmatprep.mubr.bf16.mxu0 0
      %1345 = vmatmul.mubr.bf16.gmra.mrb[0].mxu0 %v1298
      %v1346 = vpop.f32.mrb[0].mxu0
      %v1347 = vadd.f32 0.0, %v1346
      %v1348 = vpop.f32.mrb[0].mxu0
      %v1349 = vpop.f32.mrb[0].mxu0
      %v1350 = vadd.f32 0.0, %v1349
      %v1351 = vpop.f32.mrb[0].mxu0
      %1352 = vmatprep.mubr.bf16.mxu0 0
      %1353 = vmatmul.mubr.bf16.gmra.mrb[0].mxu0 %v1301
      %v1354 = vpop.f32.mrb[0].mxu0
      %v1355 = vadd.f32 0.0, %v1354
      %v1356 = vpop.f32.mrb[0].mxu0
      %v1357 = vpop.f32.mrb[0].mxu0
      %v1358 = vadd.f32 0.0, %v1357
      %v1359 = vpop.f32.mrb[0].mxu0
      %1360 = vmatprep.mubr.bf16.mxu0 0
      %1361 = vmatmul.mubr.bf16.gmra.mrb[0].mxu0 %v1304
      %v1362 = vpop.f32.mrb[0].mxu0
      %v1363 = vadd.f32 0.0, %v1362
      %v1364 = vpop.f32.mrb[0].mxu0
      %v1365 = vpop.f32.mrb[0].mxu0
      %v1366 = vadd.f32 0.0, %v1365
      %v1367 = vpop.f32.mrb[0].mxu0
      %1368 = vmatprep.mubr.bf16.mxu0 0
      %1369 = vmatmul.mubr.bf16.gmra.mrb[0].mxu0 %v1307
      %v1370 = vpop.f32.mrb[0].mxu0
      %v1371 = vadd.f32 0.0, %v1370
      %v1372 = vpop.f32.mrb[0].mxu0
      %v1373 = vpop.f32.mrb[0].mxu0
      %v1374 = vadd.f32 0.0, %v1373
      %v1375 = vpop.f32.mrb[0].mxu0
      %1376 = vdwg.mxu0
      %v1377 = vadd.f32 %v1115, %v1347
      %v1378 = vadd.f32 %v1116, %v1350
      %v1379 = vadd.f32 %v1117, %v1355
      %v1380 = vadd.f32 %v1118, %v1358
      %v1381 = vadd.f32 %v1119, %v1363
      %v1382 = vadd.f32 %v1120, %v1366
      %v1383 = vadd.f32 %v1121, %v1371
      %v1384 = vadd.f32 %v1122, %v1374
      %v1385 = vld [vmem:[%s425] sm:$0x1e]
      %v1386 = vld [vmem:[%s425 + $0x8] sm:$0x1e]
      %v1387 = vld [vmem:[%s425 + $0x10] sm:$0x1e]
      %v1388 = vld [vmem:[%s425 + $0x18] sm:$0x1e]
      %v1389 = vld [vmem:[%s425 + $0x20] sm:$0x1e]
      %v1390 = vld [vmem:[%s425 + $0x28] sm:$0x1e]
      %v1391 = vld [vmem:[%s425 + $0x30] sm:$0x1e]
      %v1392 = vld [vmem:[%s425 + $0x38] sm:$0x1e]
      %v1401 = vunpack.c.l.b16 %v1385
      %v1402 = vunpack.c.h.b16 %v1385
      %v1403 = vunpack.c.l.b16 %v1386
      %v1404 = vunpack.c.h.b16 %v1386
      %v1405 = vunpack.c.l.b16 %v1387
      %v1406 = vunpack.c.h.b16 %v1387
      %v1407 = vunpack.c.l.b16 %v1388
      %v1408 = vunpack.c.h.b16 %v1388
      %v1409 = vunpack.c.l.b16 %v1389
      %v1410 = vunpack.c.h.b16 %v1389
      %v1411 = vunpack.c.l.b16 %v1390
      %v1412 = vunpack.c.h.b16 %v1390
      %v1413 = vunpack.c.l.b16 %v1391
      %v1414 = vunpack.c.h.b16 %v1391
      %v1415 = vunpack.c.l.b16 %v1392
      %v1416 = vunpack.c.h.b16 %v1392
      %v1417 = vpack.c.b16 %v1401, %v1401
      %v1418 = vpack.c.b16 %v1402, %v1402
      %v1419 = vpack.c.b16 %v1403, %v1403
      %v1420 = vpack.c.b16 %v1404, %v1404
      %v1421 = vpack.c.b16 %v1405, %v1405
      %v1422 = vpack.c.b16 %v1406, %v1406
      %v1423 = vpack.c.b16 %v1407, %v1407
      %v1424 = vpack.c.b16 %v1408, %v1408
      %v1425 = vpack.c.b16 %v1409, %v1409
      %v1426 = vpack.c.b16 %v1410, %v1410
      %v1427 = vpack.c.b16 %v1411, %v1411
      %v1428 = vpack.c.b16 %v1412, %v1412
      %v1429 = vpack.c.b16 %v1413, %v1413
      %v1430 = vpack.c.b16 %v1414, %v1414
      %v1431 = vpack.c.b16 %v1415, %v1415
      %v1432 = vpack.c.b16 %v1416, %v1416
      %v1433 = vrot.slane %v1417, 5
      %v1434 = vrot.slane %v1433, 4
      %v1435 = vrot.slane %v1418, 5
      %v1436 = vsel %vm870, %v1434, %v1435
      %v1437 = vrot.slane %v1419, 5
      %v1438 = vrot.slane %v1437, 4
      %v1439 = vrot.slane %v1420, 5
      %v1440 = vsel %vm870, %v1438, %v1439
      %v1441 = vrot.slane %v1421, 5
      %v1442 = vrot.slane %v1441, 4
      %v1443 = vrot.slane %v1422, 5
      %v1444 = vsel %vm870, %v1442, %v1443
      %v1445 = vrot.slane %v1423, 5
      %v1446 = vrot.slane %v1445, 4
      %v1447 = vrot.slane %v1424, 5
      %v1448 = vsel %vm870, %v1446, %v1447
      %v1449 = vrot.slane %v1425, 5
      %v1450 = vrot.slane %v1449, 4
      %v1451 = vrot.slane %v1426, 5
      %v1452 = vsel %vm870, %v1450, %v1451
      %v1453 = vrot.slane %v1427, 5
      %v1454 = vrot.slane %v1453, 4
      %v1455 = vrot.slane %v1428, 5
      %v1456 = vsel %vm870, %v1454, %v1455
      %v1457 = vrot.slane %v1429, 5
      %v1458 = vrot.slane %v1457, 4
      %v1459 = vrot.slane %v1430, 5
      %v1460 = vsel %vm870, %v1458, %v1459
      %v1461 = vrot.slane %v1431, 5
      %v1462 = vrot.slane %v1461, 4
      %v1463 = vrot.slane %v1432, 5
      %v1464 = vsel %vm870, %v1462, %v1463
      %s1465 = scalar_lea.vmem %s3, 20
      %v1466 = vld [vmem:[%s1465] sm:$0xf]
      %v1467 = vunpack.c.l.b16 %v1436
      %v1468 = vunpack.c.l.b16 %v1440
      %v1469 = vunpack.c.l.b16 %v1444
      %v1470 = vunpack.c.l.b16 %v1448
      %v1471 = vunpack.c.l.b16 %v1452
      %v1472 = vunpack.c.l.b16 %v1456
      %v1473 = vunpack.c.l.b16 %v1460
      %v1474 = vunpack.c.l.b16 %v1464
      %v1475 = vpack.c.b16 %v1468, %v1467
      %v1476 = vpack.c.b16 %v1470, %v1469
      %v1477 = vpack.c.b16 %v1472, %v1471
      %v1478 = vpack.c.b16 %v1474, %v1473
      %v1480 = vsel %vm283, %v1475, 0
      %v1483 = vsel %vm283, %v1476, 0
      %v1486 = vsel %vm283, %v1477, 0
      %v1489 = vsel %vm283, %v1478, 0
      %v1492 = vsel %vm651, %v1466, 0
      %1494 = vmatprep.subr.bf16.mxu0 0
      %1495 = vmatpush1.bf16.msra.mxu0 %v1492
      %1496 = vmatprep.subr.bf16.mxu0 0
      %1497 = vmatpush1.bf16.msra.mxu0 0
      %1498 = vmatprep.subr.bf16.mxu0 0
      %1499 = vmatpush1.bf16.msra.mxu0 0
      %1500 = vmatprep.subr.bf16.mxu0 0
      %1501 = vmatpush1.bf16.msra.mxu0 0
      %1502 = vmatprep.subr.bf16.mxu0 0
      %1503 = vmatpush1.bf16.msra.mxu0 0
      %1504 = vmatprep.subr.bf16.mxu0 0
      %1505 = vmatpush1.bf16.msra.mxu0 0
      %1506 = vmatprep.subr.bf16.mxu0 0
      %1507 = vmatpush1.bf16.msra.mxu0 0
      %1508 = vmatprep.subr.bf16.mxu0 0
      %1509 = vmatpush1.bf16.msra.mxu0 0
      %1510 = vmatprep.subr.bf16.mxu0 0
      %1511 = vmatpush1.bf16.msra.mxu0 0
      %1512 = vmatprep.subr.bf16.mxu0 0
      %1513 = vmatpush1.bf16.msra.mxu0 0
      %1514 = vmatprep.subr.bf16.mxu0 0
      %1515 = vmatpush1.bf16.msra.mxu0 0
      %1516 = vmatprep.subr.bf16.mxu0 0
      %1517 = vmatpush1.bf16.msra.mxu0 0
      %1518 = vmatprep.subr.bf16.mxu0 0
      %1519 = vmatpush1.bf16.msra.mxu0 0
      %1520 = vmatprep.subr.bf16.mxu0 0
      %1521 = vmatpush1.bf16.msra.mxu0 0
      %1522 = vmatprep.subr.bf16.mxu0 0
      %1523 = vmatpush1.bf16.msra.mxu0 0
      %1524 = vmatprep.subr.bf16.mxu0 0
      %1525 = vmatpush1.bf16.msra.mxu0 0
      %1526 = vmatprep.mubr.bf16.mxu0 0
      %1527 = vmatmul.mubr.bf16.gmra.mrb[0].mxu0 %v1480
      %v1528 = vpop.f32.mrb[0].mxu0
      %v1529 = vadd.f32 0.0, %v1528
      %v1530 = vpop.f32.mrb[0].mxu0
      %v1531 = vpop.f32.mrb[0].mxu0
      %v1532 = vadd.f32 0.0, %v1531
      %v1533 = vpop.f32.mrb[0].mxu0
      %1534 = vmatprep.mubr.bf16.mxu0 0
      %1535 = vmatmul.mubr.bf16.gmra.mrb[0].mxu0 %v1483
      %v1536 = vpop.f32.mrb[0].mxu0
      %v1537 = vadd.f32 0.0, %v1536
      %v1538 = vpop.f32.mrb[0].mxu0
      %v1539 = vpop.f32.mrb[0].mxu0
      %v1540 = vadd.f32 0.0, %v1539
      %v1541 = vpop.f32.mrb[0].mxu0
      %1542 = vmatprep.mubr.bf16.mxu0 0
      %1543 = vmatmul.mubr.bf16.gmra.mrb[0].mxu0 %v1486
      %v1544 = vpop.f32.mrb[0].mxu0
      %v1545 = vadd.f32 0.0, %v1544
      %v1546 = vpop.f32.mrb[0].mxu0
      %v1547 = vpop.f32.mrb[0].mxu0
      %v1548 = vadd.f32 0.0, %v1547
      %v1549 = vpop.f32.mrb[0].mxu0
      %1550 = vmatprep.mubr.bf16.mxu0 0
      %1551 = vmatmul.mubr.bf16.gmra.mrb[0].mxu0 %v1489
      %v1552 = vpop.f32.mrb[0].mxu0
      %v1553 = vadd.f32 0.0, %v1552
      %v1554 = vpop.f32.mrb[0].mxu0
      %v1555 = vpop.f32.mrb[0].mxu0
      %v1556 = vadd.f32 0.0, %v1555
      %v1557 = vpop.f32.mrb[0].mxu0
      %1558 = vdwg.mxu0
      %v1559 = vadd.f32 %v1377, %v1529
      %v1560 = vadd.f32 %v1378, %v1532
      %v1561 = vadd.f32 %v1379, %v1537
      %v1562 = vadd.f32 %v1380, %v1540
      %v1563 = vadd.f32 %v1381, %v1545
      %v1564 = vadd.f32 %v1382, %v1548
      %v1565 = vadd.f32 %v1383, %v1553
      %v1566 = vadd.f32 %v1384, %v1556
      %s1567 = scalar_lea.vmem [#allocation2], 16
      %v1568 = vld [vmem:[%s1567] sm:$0xf]
      %v1569 = vld [vmem:[%s1567 + $0x8] sm:$0xf]
      %v1570 = vld [vmem:[%s1567 + $0x10] sm:$0xf]
      %v1571 = vld [vmem:[%s1567 + $0x18] sm:$0xf]
      %v1572 = vld [vmem:[%s1567 + $0x20] sm:$0xf]
      %v1573 = vld [vmem:[%s1567 + $0x28] sm:$0xf]
      %v1574 = vld [vmem:[%s1567 + $0x30] sm:$0xf]
      %v1575 = vld [vmem:[%s1567 + $0x38] sm:$0xf]
      %s1576 = scalar_lea.vmem %s3, 24
      %v1577 = vld [vmem:[%s1576] sm:$0xf]
      %v1586 = vunpack.c.l.b16 %v1568
      %v1587 = vunpack.c.l.b16 %v1569
      %v1588 = vunpack.c.l.b16 %v1570
      %v1589 = vunpack.c.l.b16 %v1571
      %v1590 = vunpack.c.l.b16 %v1572
      %v1591 = vunpack.c.l.b16 %v1573
      %v1592 = vunpack.c.l.b16 %v1574
      %v1593 = vunpack.c.l.b16 %v1575
      %v1594 = vpack.c.b16 %v1587, %v1586
      %v1595 = vpack.c.b16 %v1589, %v1588
      %v1596 = vpack.c.b16 %v1591, %v1590
      %v1597 = vpack.c.b16 %v1593, %v1592
      %v1599 = vsel %vm283, %v1594, 0
      %v1602 = vsel %vm283, %v1595, 0
      %v1605 = vsel %vm283, %v1596, 0
      %v1608 = vsel %vm283, %v1597, 0
      %v1611 = vsel %vm651, %v1577, 0
      %1613 = vmatprep.subr.bf16.mxu0 0
      %1614 = vmatpush1.bf16.msra.mxu0 %v1611
      %1615 = vmatprep.subr.bf16.mxu0 0
      %1616 = vmatpush1.bf16.msra.mxu0 0
      %1617 = vmatprep.subr.bf16.mxu0 0
      %1618 = vmatpush1.bf16.msra.mxu0 0
      %1619 = vmatprep.subr.bf16.mxu0 0
      %1620 = vmatpush1.bf16.msra.mxu0 0
      %1621 = vmatprep.subr.bf16.mxu0 0
      %1622 = vmatpush1.bf16.msra.mxu0 0
      %1623 = vmatprep.subr.bf16.mxu0 0
      %1624 = vmatpush1.bf16.msra.mxu0 0
      %1625 = vmatprep.subr.bf16.mxu0 0
      %1626 = vmatpush1.bf16.msra.mxu0 0
      %1627 = vmatprep.subr.bf16.mxu0 0
      %1628 = vmatpush1.bf16.msra.mxu0 0
      %1629 = vmatprep.subr.bf16.mxu0 0
      %1630 = vmatpush1.bf16.msra.mxu0 0
      %1631 = vmatprep.subr.bf16.mxu0 0
      %1632 = vmatpush1.bf16.msra.mxu0 0
      %1633 = vmatprep.subr.bf16.mxu0 0
      %1634 = vmatpush1.bf16.msra.mxu0 0
      %1635 = vmatprep.subr.bf16.mxu0 0
      %1636 = vmatpush1.bf16.msra.mxu0 0
      %1637 = vmatprep.subr.bf16.mxu0 0
      %1638 = vmatpush1.bf16.msra.mxu0 0
      %1639 = vmatprep.subr.bf16.mxu0 0
      %1640 = vmatpush1.bf16.msra.mxu0 0
      %1641 = vmatprep.subr.bf16.mxu0 0
      %1642 = vmatpush1.bf16.msra.mxu0 0
      %1643 = vmatprep.subr.bf16.mxu0 0
      %1644 = vmatpush1.bf16.msra.mxu0 0
      %1645 = vmatprep.mubr.bf16.mxu0 0
      %1646 = vmatmul.mubr.bf16.gmra.mrb[0].mxu0 %v1599
      %v1647 = vpop.f32.mrb[0].mxu0
      %v1648 = vadd.f32 0.0, %v1647
      %v1649 = vpop.f32.mrb[0].mxu0
      %v1650 = vpop.f32.mrb[0].mxu0
      %v1651 = vadd.f32 0.0, %v1650
      %v1652 = vpop.f32.mrb[0].mxu0
      %1653 = vmatprep.mubr.bf16.mxu0 0
      %1654 = vmatmul.mubr.bf16.gmra.mrb[0].mxu0 %v1602
      %v1655 = vpop.f32.mrb[0].mxu0
      %v1656 = vadd.f32 0.0, %v1655
      %v1657 = vpop.f32.mrb[0].mxu0
      %v1658 = vpop.f32.mrb[0].mxu0
      %v1659 = vadd.f32 0.0, %v1658
      %v1660 = vpop.f32.mrb[0].mxu0
      %1661 = vmatprep.mubr.bf16.mxu0 0
      %1662 = vmatmul.mubr.bf16.gmra.mrb[0].mxu0 %v1605
      %v1663 = vpop.f32.mrb[0].mxu0
      %v1664 = vadd.f32 0.0, %v1663
      %v1665 = vpop.f32.mrb[0].mxu0
      %v1666 = vpop.f32.mrb[0].mxu0
      %v1667 = vadd.f32 0.0, %v1666
      %v1668 = vpop.f32.mrb[0].mxu0
      %1669 = vmatprep.mubr.bf16.mxu0 0
      %1670 = vmatmul.mubr.bf16.gmra.mrb[0].mxu0 %v1608
      %v1671 = vpop.f32.mrb[0].mxu0
      %v1672 = vadd.f32 0.0, %v1671
      %v1673 = vpop.f32.mrb[0].mxu0
      %v1674 = vpop.f32.mrb[0].mxu0
      %v1675 = vadd.f32 0.0, %v1674
      %v1676 = vpop.f32.mrb[0].mxu0
      %1677 = vdwg.mxu0
      %v1678 = vadd.f32 %v1559, %v1648
      %v1679 = vadd.f32 %v1560, %v1651
      %v1680 = vadd.f32 %v1561, %v1656
      %v1681 = vadd.f32 %v1562, %v1659
      %v1682 = vadd.f32 %v1563, %v1664
      %v1683 = vadd.f32 %v1564, %v1667
      %v1684 = vadd.f32 %v1565, %v1672
      %v1685 = vadd.f32 %v1566, %v1675
      %v1686 = vld [vmem:[%s1567] sm:$0x1f]
      %v1687 = vld [vmem:[%s1567 + $0x8] sm:$0x1f]
      %v1688 = vld [vmem:[%s1567 + $0x10] sm:$0x1f]
      %v1689 = vld [vmem:[%s1567 + $0x18] sm:$0x1f]
      %v1690 = vld [vmem:[%s1567 + $0x20] sm:$0x1f]
      %v1691 = vld [vmem:[%s1567 + $0x28] sm:$0x1f]
      %v1692 = vld [vmem:[%s1567 + $0x30] sm:$0x1f]
      %v1693 = vld [vmem:[%s1567 + $0x38] sm:$0x1f]
      %v1702 = vunpack.c.l.b16 %v1686
      %v1703 = vunpack.c.h.b16 %v1686
      %v1704 = vunpack.c.l.b16 %v1687
      %v1705 = vunpack.c.h.b16 %v1687
      %v1706 = vunpack.c.l.b16 %v1688
      %v1707 = vunpack.c.h.b16 %v1688
      %v1708 = vunpack.c.l.b16 %v1689
      %v1709 = vunpack.c.h.b16 %v1689
      %v1710 = vunpack.c.l.b16 %v1690
      %v1711 = vunpack.c.h.b16 %v1690
      %v1712 = vunpack.c.l.b16 %v1691
      %v1713 = vunpack.c.h.b16 %v1691
      %v1714 = vunpack.c.l.b16 %v1692
      %v1715 = vunpack.c.h.b16 %v1692
      %v1716 = vunpack.c.l.b16 %v1693
      %v1717 = vunpack.c.h.b16 %v1693
      %v1718 = vpack.c.b16 %v1702, %v1702
      %v1719 = vpack.c.b16 %v1703, %v1703
      %v1720 = vpack.c.b16 %v1704, %v1704
      %v1721 = vpack.c.b16 %v1705, %v1705
      %v1722 = vpack.c.b16 %v1706, %v1706
      %v1723 = vpack.c.b16 %v1707, %v1707
      %v1724 = vpack.c.b16 %v1708, %v1708
      %v1725 = vpack.c.b16 %v1709, %v1709
      %v1726 = vpack.c.b16 %v1710, %v1710
      %v1727 = vpack.c.b16 %v1711, %v1711
      %v1728 = vpack.c.b16 %v1712, %v1712
      %v1729 = vpack.c.b16 %v1713, %v1713
      %v1730 = vpack.c.b16 %v1714, %v1714
      %v1731 = vpack.c.b16 %v1715, %v1715
      %v1732 = vpack.c.b16 %v1716, %v1716
      %v1733 = vpack.c.b16 %v1717, %v1717
      %v1735 = vshrl.u32 %v1718, 16
      %v1737 = vrot.slane %v1735, 4
      %v1738 = vshll.u32 %v1718, 16
      %v1740 = vrot.slane %v1738, 5
      %v1741 = vor.u32 %v1737, %v1740
      %v1742 = vrot.slane %v1741, 4
      %v1744 = vshll.u32 %v1719, 16
      %v1746 = vrot.slane %v1744, 5
      %v1747 = vsel %vm512, %v1742, %v1746
      %v1749 = vshrl.u32 %v1720, 16
      %v1751 = vrot.slane %v1749, 4
      %v1752 = vshll.u32 %v1720, 16
      %v1754 = vrot.slane %v1752, 5
      %v1755 = vor.u32 %v1751, %v1754
      %v1756 = vrot.slane %v1755, 4
      %v1758 = vshll.u32 %v1721, 16
      %v1760 = vrot.slane %v1758, 5
      %v1761 = vsel %vm512, %v1756, %v1760
      %v1763 = vshrl.u32 %v1722, 16
      %v1765 = vrot.slane %v1763, 4
      %v1766 = vshll.u32 %v1722, 16
      %v1768 = vrot.slane %v1766, 5
      %v1769 = vor.u32 %v1765, %v1768
      %v1770 = vrot.slane %v1769, 4
      %v1772 = vshll.u32 %v1723, 16
      %v1774 = vrot.slane %v1772, 5
      %v1775 = vsel %vm512, %v1770, %v1774
      %v1777 = vshrl.u32 %v1724, 16
      %v1779 = vrot.slane %v1777, 4
      %v1780 = vshll.u32 %v1724, 16
      %v1782 = vrot.slane %v1780, 5
      %v1783 = vor.u32 %v1779, %v1782
      %v1784 = vrot.slane %v1783, 4
      %v1786 = vshll.u32 %v1725, 16
      %v1788 = vrot.slane %v1786, 5
      %v1789 = vsel %vm512, %v1784, %v1788
      %v1791 = vshrl.u32 %v1726, 16
      %v1793 = vrot.slane %v1791, 4
      %v1794 = vshll.u32 %v1726, 16
      %v1796 = vrot.slane %v1794, 5
      %v1797 = vor.u32 %v1793, %v1796
      %v1798 = vrot.slane %v1797, 4
      %v1800 = vshll.u32 %v1727, 16
      %v1802 = vrot.slane %v1800, 5
      %v1803 = vsel %vm512, %v1798, %v1802
      %v1805 = vshrl.u32 %v1728, 16
      %v1807 = vrot.slane %v1805, 4
      %v1808 = vshll.u32 %v1728, 16
      %v1810 = vrot.slane %v1808, 5
      %v1811 = vor.u32 %v1807, %v1810
      %v1812 = vrot.slane %v1811, 4
      %v1814 = vshll.u32 %v1729, 16
      %v1816 = vrot.slane %v1814, 5
      %v1817 = vsel %vm512, %v1812, %v1816
      %v1819 = vshrl.u32 %v1730, 16
      %v1821 = vrot.slane %v1819, 4
      %v1822 = vshll.u32 %v1730, 16
      %v1824 = vrot.slane %v1822, 5
      %v1825 = vor.u32 %v1821, %v1824
      %v1826 = vrot.slane %v1825, 4
      %v1828 = vshll.u32 %v1731, 16
      %v1830 = vrot.slane %v1828, 5
      %v1831 = vsel %vm512, %v1826, %v1830
      %v1833 = vshrl.u32 %v1732, 16
      %v1835 = vrot.slane %v1833, 4
      %v1836 = vshll.u32 %v1732, 16
      %v1838 = vrot.slane %v1836, 5
      %v1839 = vor.u32 %v1835, %v1838
      %v1840 = vrot.slane %v1839, 4
      %v1842 = vshll.u32 %v1733, 16
      %v1844 = vrot.slane %v1842, 5
      %v1845 = vsel %vm512, %v1840, %v1844
      %s1846 = scalar_lea.vmem %s3, 28
      %v1847 = vld [vmem:[%s1846] sm:$0xf]
      %v1848 = vunpack.c.l.b16 %v1747
      %v1849 = vunpack.c.l.b16 %v1761
      %v1850 = vunpack.c.l.b16 %v1775
      %v1851 = vunpack.c.l.b16 %v1789
      %v1852 = vunpack.c.l.b16 %v1803
      %v1853 = vunpack.c.l.b16 %v1817
      %v1854 = vunpack.c.l.b16 %v1831
      %v1855 = vunpack.c.l.b16 %v1845
      %v1856 = vpack.c.b16 %v1849, %v1848
      %v1857 = vpack.c.b16 %v1851, %v1850
      %v1858 = vpack.c.b16 %v1853, %v1852
      %v1859 = vpack.c.b16 %v1855, %v1854
      %v1861 = vsel %vm283, %v1856, 0
      %v1864 = vsel %vm283, %v1857, 0
      %v1867 = vsel %vm283, %v1858, 0
      %v1870 = vsel %vm283, %v1859, 0
      %v1873 = vsel %vm651, %v1847, 0
      %1875 = vmatprep.subr.bf16.mxu0 0
      %1876 = vmatpush1.bf16.msra.mxu0 %v1873
      %1877 = vmatprep.subr.bf16.mxu0 0
      %1878 = vmatpush1.bf16.msra.mxu0 0
      %1879 = vmatprep.subr.bf16.mxu0 0
      %1880 = vmatpush1.bf16.msra.mxu0 0
      %1881 = vmatprep.subr.bf16.mxu0 0
      %1882 = vmatpush1.bf16.msra.mxu0 0
      %1883 = vmatprep.subr.bf16.mxu0 0
      %1884 = vmatpush1.bf16.msra.mxu0 0
      %1885 = vmatprep.subr.bf16.mxu0 0
      %1886 = vmatpush1.bf16.msra.mxu0 0
      %1887 = vmatprep.subr.bf16.mxu0 0
      %1888 = vmatpush1.bf16.msra.mxu0 0
      %1889 = vmatprep.subr.bf16.mxu0 0
      %1890 = vmatpush1.bf16.msra.mxu0 0
      %1891 = vmatprep.subr.bf16.mxu0 0
      %1892 = vmatpush1.bf16.msra.mxu0 0
      %1893 = vmatprep.subr.bf16.mxu0 0
      %1894 = vmatpush1.bf16.msra.mxu0 0
      %1895 = vmatprep.subr.bf16.mxu0 0
      %1896 = vmatpush1.bf16.msra.mxu0 0
      %1897 = vmatprep.subr.bf16.mxu0 0
      %1898 = vmatpush1.bf16.msra.mxu0 0
      %1899 = vmatprep.subr.bf16.mxu0 0
      %1900 = vmatpush1.bf16.msra.mxu0 0
      %1901 = vmatprep.subr.bf16.mxu0 0
      %1902 = vmatpush1.bf16.msra.mxu0 0
      %1903 = vmatprep.subr.bf16.mxu0 0
      %1904 = vmatpush1.bf16.msra.mxu0 0
      %1905 = vmatprep.subr.bf16.mxu0 0
      %1906 = vmatpush1.bf16.msra.mxu0 0
      %1907 = vmatprep.mubr.bf16.mxu0 0
      %1908 = vmatmul.mubr.bf16.gmra.mrb[0].mxu0 %v1861
      %v1909 = vpop.f32.mrb[0].mxu0
      %v1910 = vadd.f32 0.0, %v1909
      %v1911 = vpop.f32.mrb[0].mxu0
      %v1912 = vpop.f32.mrb[0].mxu0
      %v1913 = vadd.f32 0.0, %v1912
      %v1914 = vpop.f32.mrb[0].mxu0
      %1915 = vmatprep.mubr.bf16.mxu0 0
      %1916 = vmatmul.mubr.bf16.gmra.mrb[0].mxu0 %v1864
      %v1917 = vpop.f32.mrb[0].mxu0
      %v1918 = vadd.f32 0.0, %v1917
      %v1919 = vpop.f32.mrb[0].mxu0
      %v1920 = vpop.f32.mrb[0].mxu0
      %v1921 = vadd.f32 0.0, %v1920
      %v1922 = vpop.f32.mrb[0].mxu0
      %1923 = vmatprep.mubr.bf16.mxu0 0
      %1924 = vmatmul.mubr.bf16.gmra.mrb[0].mxu0 %v1867
      %v1925 = vpop.f32.mrb[0].mxu0
      %v1926 = vadd.f32 0.0, %v1925
      %v1927 = vpop.f32.mrb[0].mxu0
      %v1928 = vpop.f32.mrb[0].mxu0
      %v1929 = vadd.f32 0.0, %v1928
      %v1930 = vpop.f32.mrb[0].mxu0
      %1931 = vmatprep.mubr.bf16.mxu0 0
      %1932 = vmatmul.mubr.bf16.gmra.mrb[0].mxu0 %v1870
      %v1933 = vpop.f32.mrb[0].mxu0
      %v1934 = vadd.f32 0.0, %v1933
      %v1935 = vpop.f32.mrb[0].mxu0
      %v1936 = vpop.f32.mrb[0].mxu0
      %v1937 = vadd.f32 0.0, %v1936
      %v1938 = vpop.f32.mrb[0].mxu0
      %1939 = vdwg.mxu0
      %v1940 = vadd.f32 %v1678, %v1910
      %v1941 = vadd.f32 %v1679, %v1913
      %v1942 = vadd.f32 %v1680, %v1918
      %v1943 = vadd.f32 %v1681, %v1921
      %v1944 = vadd.f32 %v1682, %v1926
      %v1945 = vadd.f32 %v1683, %v1929
      %v1946 = vadd.f32 %v1684, %v1934
      %v1947 = vadd.f32 %v1685, %v1937
      %v1948 = vld [vmem:[%s1567] sm:$0x1e]
      %v1949 = vld [vmem:[%s1567 + $0x8] sm:$0x1e]
      %v1950 = vld [vmem:[%s1567 + $0x10] sm:$0x1e]
      %v1951 = vld [vmem:[%s1567 + $0x18] sm:$0x1e]
      %v1952 = vld [vmem:[%s1567 + $0x20] sm:$0x1e]
      %v1953 = vld [vmem:[%s1567 + $0x28] sm:$0x1e]
      %v1954 = vld [vmem:[%s1567 + $0x30] sm:$0x1e]
      %v1955 = vld [vmem:[%s1567 + $0x38] sm:$0x1e]
      %v1964 = vunpack.c.l.b16 %v1948
      %v1965 = vunpack.c.h.b16 %v1948
      %v1966 = vunpack.c.l.b16 %v1949
      %v1967 = vunpack.c.h.b16 %v1949
      %v1968 = vunpack.c.l.b16 %v1950
      %v1969 = vunpack.c.h.b16 %v1950
      %v1970 = vunpack.c.l.b16 %v1951
      %v1971 = vunpack.c.h.b16 %v1951
      %v1972 = vunpack.c.l.b16 %v1952
      %v1973 = vunpack.c.h.b16 %v1952
      %v1974 = vunpack.c.l.b16 %v1953
      %v1975 = vunpack.c.h.b16 %v1953
      %v1976 = vunpack.c.l.b16 %v1954
      %v1977 = vunpack.c.h.b16 %v1954
      %v1978 = vunpack.c.l.b16 %v1955
      %v1979 = vunpack.c.h.b16 %v1955
      %v1980 = vpack.c.b16 %v1964, %v1964
      %v1981 = vpack.c.b16 %v1965, %v1965
      %v1982 = vpack.c.b16 %v1966, %v1966
      %v1983 = vpack.c.b16 %v1967, %v1967
      %v1984 = vpack.c.b16 %v1968, %v1968
      %v1985 = vpack.c.b16 %v1969, %v1969
      %v1986 = vpack.c.b16 %v1970, %v1970
      %v1987 = vpack.c.b16 %v1971, %v1971
      %v1988 = vpack.c.b16 %v1972, %v1972
      %v1989 = vpack.c.b16 %v1973, %v1973
      %v1990 = vpack.c.b16 %v1974, %v1974
      %v1991 = vpack.c.b16 %v1975, %v1975
      %v1992 = vpack.c.b16 %v1976, %v1976
      %v1993 = vpack.c.b16 %v1977, %v1977
      %v1994 = vpack.c.b16 %v1978, %v1978
      %v1995 = vpack.c.b16 %v1979, %v1979
      %v1996 = vrot.slane %v1980, 5
      %v1997 = vrot.slane %v1996, 4
      %v1998 = vrot.slane %v1981, 5
      %v1999 = vsel %vm870, %v1997, %v1998
      %v2000 = vrot.slane %v1982, 5
      %v2001 = vrot.slane %v2000, 4
      %v2002 = vrot.slane %v1983, 5
      %v2003 = vsel %vm870, %v2001, %v2002
      %v2004 = vrot.slane %v1984, 5
      %v2005 = vrot.slane %v2004, 4
      %v2006 = vrot.slane %v1985, 5
      %v2007 = vsel %vm870, %v2005, %v2006
      %v2008 = vrot.slane %v1986, 5
      %v2009 = vrot.slane %v2008, 4
      %v2010 = vrot.slane %v1987, 5
      %v2011 = vsel %vm870, %v2009, %v2010
      %v2012 = vrot.slane %v1988, 5
      %v2013 = vrot.slane %v2012, 4
      %v2014 = vrot.slane %v1989, 5
      %v2015 = vsel %vm870, %v2013, %v2014
      %v2016 = vrot.slane %v1990, 5
      %v2017 = vrot.slane %v2016, 4
      %v2018 = vrot.slane %v1991, 5
      %v2019 = vsel %vm870, %v2017, %v2018
      %v2020 = vrot.slane %v1992, 5
      %v2021 = vrot.slane %v2020, 4
      %v2022 = vrot.slane %v1993, 5
      %v2023 = vsel %vm870, %v2021, %v2022
      %v2024 = vrot.slane %v1994, 5
      %v2025 = vrot.slane %v2024, 4
      %v2026 = vrot.slane %v1995, 5
      %v2027 = vsel %vm870, %v2025, %v2026
      %s2028 = scalar_lea.vmem %s3, 32
      %v2029 = vld [vmem:[%s2028] sm:$0xf]
      %v2030 = vunpack.c.l.b16 %v1999
      %v2031 = vunpack.c.l.b16 %v2003
      %v2032 = vunpack.c.l.b16 %v2007
      %v2033 = vunpack.c.l.b16 %v2011
      %v2034 = vunpack.c.l.b16 %v2015
      %v2035 = vunpack.c.l.b16 %v2019
      %v2036 = vunpack.c.l.b16 %v2023
      %v2037 = vunpack.c.l.b16 %v2027
      %v2038 = vpack.c.b16 %v2031, %v2030
      %v2039 = vpack.c.b16 %v2033, %v2032
      %v2040 = vpack.c.b16 %v2035, %v2034
      %v2041 = vpack.c.b16 %v2037, %v2036
      %v2043 = vsel %vm283, %v2038, 0
      %v2046 = vsel %vm283, %v2039, 0
      %v2049 = vsel %vm283, %v2040, 0
      %v2052 = vsel %vm283, %v2041, 0
      %v2055 = vsel %vm651, %v2029, 0
      %2057 = vmatprep.subr.bf16.mxu0 0
      %2058 = vmatpush1.bf16.msra.mxu0 %v2055
      %2059 = vmatprep.subr.bf16.mxu0 0
      %2060 = vmatpush1.bf16.msra.mxu0 0
      %2061 = vmatprep.subr.bf16.mxu0 0
      %2062 = vmatpush1.bf16.msra.mxu0 0
      %2063 = vmatprep.subr.bf16.mxu0 0
      %2064 = vmatpush1.bf16.msra.mxu0 0
      %2065 = vmatprep.subr.bf16.mxu0 0
      %2066 = vmatpush1.bf16.msra.mxu0 0
      %2067 = vmatprep.subr.bf16.mxu0 0
      %2068 = vmatpush1.bf16.msra.mxu0 0
      %2069 = vmatprep.subr.bf16.mxu0 0
      %2070 = vmatpush1.bf16.msra.mxu0 0
      %2071 = vmatprep.subr.bf16.mxu0 0
      %2072 = vmatpush1.bf16.msra.mxu0 0
      %2073 = vmatprep.subr.bf16.mxu0 0
      %2074 = vmatpush1.bf16.msra.mxu0 0
      %2075 = vmatprep.subr.bf16.mxu0 0
      %2076 = vmatpush1.bf16.msra.mxu0 0
      %2077 = vmatprep.subr.bf16.mxu0 0
      %2078 = vmatpush1.bf16.msra.mxu0 0
      %2079 = vmatprep.subr.bf16.mxu0 0
      %2080 = vmatpush1.bf16.msra.mxu0 0
      %2081 = vmatprep.subr.bf16.mxu0 0
      %2082 = vmatpush1.bf16.msra.mxu0 0
      %2083 = vmatprep.subr.bf16.mxu0 0
      %2084 = vmatpush1.bf16.msra.mxu0 0
      %2085 = vmatprep.subr.bf16.mxu0 0
      %2086 = vmatpush1.bf16.msra.mxu0 0
      %2087 = vmatprep.subr.bf16.mxu0 0
      %2088 = vmatpush1.bf16.msra.mxu0 0
      %2089 = vmatprep.mubr.bf16.mxu0 0
      %2090 = vmatmul.mubr.bf16.gmra.mrb[0].mxu0 %v2043
      %v2091 = vpop.f32.mrb[0].mxu0
      %v2092 = vadd.f32 0.0, %v2091
      %v2093 = vpop.f32.mrb[0].mxu0
      %v2094 = vpop.f32.mrb[0].mxu0
      %v2095 = vadd.f32 0.0, %v2094
      %v2096 = vpop.f32.mrb[0].mxu0
      %2097 = vmatprep.mubr.bf16.mxu0 0
      %2098 = vmatmul.mubr.bf16.gmra.mrb[0].mxu0 %v2046
      %v2099 = vpop.f32.mrb[0].mxu0
      %v2100 = vadd.f32 0.0, %v2099
      %v2101 = vpop.f32.mrb[0].mxu0
      %v2102 = vpop.f32.mrb[0].mxu0
      %v2103 = vadd.f32 0.0, %v2102
      %v2104 = vpop.f32.mrb[0].mxu0
      %2105 = vmatprep.mubr.bf16.mxu0 0
      %2106 = vmatmul.mubr.bf16.gmra.mrb[0].mxu0 %v2049
      %v2107 = vpop.f32.mrb[0].mxu0
      %v2108 = vadd.f32 0.0, %v2107
      %v2109 = vpop.f32.mrb[0].mxu0
      %v2110 = vpop.f32.mrb[0].mxu0
      %v2111 = vadd.f32 0.0, %v2110
      %v2112 = vpop.f32.mrb[0].mxu0
      %2113 = vmatprep.mubr.bf16.mxu0 0
      %2114 = vmatmul.mubr.bf16.gmra.mrb[0].mxu0 %v2052
      %v2115 = vpop.f32.mrb[0].mxu0
      %v2116 = vadd.f32 0.0, %v2115
      %v2117 = vpop.f32.mrb[0].mxu0
      %v2118 = vpop.f32.mrb[0].mxu0
      %v2119 = vadd.f32 0.0, %v2118
      %v2120 = vpop.f32.mrb[0].mxu0
      %2121 = vdwg.mxu0
      %v2122 = vadd.f32 %v1940, %v2092
      %v2123 = vadd.f32 %v1941, %v2095
      %v2124 = vadd.f32 %v1942, %v2100
      %v2125 = vadd.f32 %v1943, %v2103
      %v2126 = vadd.f32 %v1944, %v2108
      %v2127 = vadd.f32 %v1945, %v2111
      %v2128 = vadd.f32 %v1946, %v2116
      %v2129 = vadd.f32 %v1947, %v2119
      %2130 = vst.msk [vmem:[%s231] sm:$0xff] %vm283, %v2122
      %2131 = vst.msk [vmem:[%s231 + $0x8] sm:$0xff] %vm283, %v2123
      %2132 = vst.msk [vmem:[%s231 + $0x10] sm:$0xff] %vm283, %v2124
      %2133 = vst.msk [vmem:[%s231 + $0x18] sm:$0xff] %vm283, %v2125
      %2134 = vst.msk [vmem:[%s231 + $0x20] sm:$0xff] %vm283, %v2126
      %2135 = vst.msk [vmem:[%s231 + $0x28] sm:$0xff] %vm283, %v2127
      %2136 = vst.msk [vmem:[%s231 + $0x30] sm:$0xff] %vm283, %v2128
      %2137 = vst.msk [vmem:[%s231 + $0x38] sm:$0xff] %vm283, %v2129
      %v2138 = vsel %vm283, %v2122, 0.0
      %v2139 = vsel %vm283, %v2123, 0.0
      %v2140 = vadd.f32 %v2138, %v2139
      %v2141 = vsel %vm283, %v2124, 0.0
      %v2142 = vadd.f32 %v2140, %v2141
      %v2143 = vsel %vm283, %v2125, 0.0
      %v2144 = vadd.f32 %v2142, %v2143
      %v2145 = vsel %vm283, %v2126, 0.0
      %v2146 = vadd.f32 %v2144, %v2145
      %v2147 = vsel %vm283, %v2127, 0.0
      %v2148 = vadd.f32 %v2146, %v2147
      %v2149 = vsel %vm283, %v2128, 0.0
      %v2150 = vadd.f32 %v2148, %v2149
      %v2151 = vsel %vm283, %v2129, 0.0
      %v2152 = vadd.f32 %v2150, %v2151
      %v2153 = vrot.slane %v2152, 4
      %v2154 = vadd.f32 %v2152, %v2153
      %v2155 = vrot.slane %v2154, 2
      %v2156 = vadd.f32 %v2154, %v2155
      %v2157 = vrot.slane %v2156, 1
      %v2158 = vadd.f32 %v2156, %v2157
      %v2159 = vmul.f32 %v2122, %v2122
      %v2160 = vmul.f32 %v2123, %v2123
      %v2161 = vmul.f32 %v2124, %v2124
      %v2162 = vmul.f32 %v2125, %v2125
      %v2163 = vmul.f32 %v2126, %v2126
      %v2164 = vmul.f32 %v2127, %v2127
      %v2165 = vmul.f32 %v2128, %v2128
      %v2166 = vmul.f32 %v2129, %v2129
      %v2167 = vsel %vm283, %v2159, 0.0
      %v2168 = vsel %vm283, %v2160, 0.0
      %v2169 = vadd.f32 %v2167, %v2168
      %v2170 = vsel %vm283, %v2161, 0.0
      %v2171 = vadd.f32 %v2169, %v2170
      %v2172 = vsel %vm283, %v2162, 0.0
      %v2173 = vadd.f32 %v2171, %v2172
      %v2174 = vsel %vm283, %v2163, 0.0
      %v2175 = vadd.f32 %v2173, %v2174
      %v2176 = vsel %vm283, %v2164, 0.0
      %v2177 = vadd.f32 %v2175, %v2176
      %v2178 = vsel %vm283, %v2165, 0.0
      %v2179 = vadd.f32 %v2177, %v2178
      %v2180 = vsel %vm283, %v2166, 0.0
      %v2181 = vadd.f32 %v2179, %v2180
      %v2182 = vrot.slane %v2181, 4
      %v2183 = vadd.f32 %v2181, %v2182
      %v2184 = vrot.slane %v2183, 2
      %v2185 = vadd.f32 %v2183, %v2184
      %v2186 = vrot.slane %v2185, 1
      %v2187 = vadd.f32 %v2185, %v2186
      %vm2188 = vcmask 1040384
      %v2189 = vsel %vm2188, %v2158, %v2187
      %vm2190 = vcmask 58368
      %2191 = vst.msk [vmem:[%s235] sm:$0x3] %vm2190, %v2189
      %p2192 = scmp.lt.s32.totalorder %s17, 1
      %s2193 = scalar_select %p2192, %s17, 1
      %s2194 = smul.addr %s2193, 8
      %s2195 = smul.addr %s2194, 8
      %s2196 = scalar_lea.vmem %s4, %s2195
      %p2197 = scmp.lt.s32.totalorder %s17, 1
      %s2198 = scalar_select %p2197, %s17, 1
      %s2199 = smul.addr %s2198, 2
      %s2200 = scalar_lea.vmem %s5, %s2199
      // Predicated region
      $region37: #{down_forward.4} parent=35 // pred_check
        %p2201 = pneg %p124
      $region38: #{down_forward.4} parent=35 // pred_check_branch
        %2203 = sbr.rel (%p2201) target = $region40
      $region39: #{down_forward.4} parent=35 // pred_region
        _
      $region40: #{down_forward.4} parent=35 // pred_fallthru
        _
      // Predicated region
      $region41: #{down_forward.4} parent=35 // pred_check
        %p2204 = pneg %p150
      $region42: #{down_forward.4} parent=35 // pred_check_branch
        %2206 = sbr.rel (%p2204) target = $region44
      $region43: #{down_forward.4} parent=35 // pred_region
        _
      $region44: #{down_forward.4} parent=35 // pred_fallthru
        _
    $region36: #{down_forward.4} parent=5 // pred_fallthru
      _
    %p2207 = scmp.le.s32.totalorder 2, %s12
    // Predicated region
    $region45: #{down_forward.4} parent=5 // pred_check
      %p2208 = pneg %p2207
    $region46: #{down_forward.4} parent=5 // pred_check_branch
      %2210 = sbr.rel (%p2208) target = $region48
    $region47: #{down_forward.4} parent=5 // pred_region
      %s2211 = ssub.s32 %s12, 2
      // Predicated region
      $region49: #{down_forward.4} parent=47 // pred_check
        %p2212 = pneg %p130
      $region50: #{down_forward.4} parent=47 // pred_check_branch
        %2214 = sbr.rel (%p2212) target = $region52
      $region51: #{down_forward.4} parent=47 // pred_region
        %p2215 = scmp.lt.s32.totalorder %s18, 1
        %s2216 = scalar_select %p2215, %s18, 1
        %s2217 = smul.addr %s2216, 8
        %s2218 = smul.addr %s2217, 8
        %s2219 = scalar_lea.vmem %s4, %s2218
      $region52: #{down_forward.4} parent=47 // pred_fallthru
        _
      // Predicated region
      $region53: #{down_forward.4} parent=47 // pred_check
        %p2220 = pneg %p156
      $region54: #{down_forward.4} parent=47 // pred_check_branch
        %2222 = sbr.rel (%p2220) target = $region56
      $region55: #{down_forward.4} parent=47 // pred_region
        %p2223 = scmp.lt.s32.totalorder %s18, 1
        %s2224 = scalar_select %p2223, %s18, 1
        %s2225 = smul.addr %s2224, 2
        %s2226 = scalar_lea.vmem %s5, %s2225
      $region56: #{down_forward.4} parent=47 // pred_fallthru
        _
    $region48: #{down_forward.4} parent=5 // pred_fallthru
      _
  $region6: #{down_forward.4} parent=0 // loop_footer
    %s16 = sadd.s32 1, %s12
  $region7: #{down_forward.4} parent=0 // loop_footer_branch
    %11 = sbr.rel target = $region3
  $region8: #{down_forward.4} parent=0 // loop_exit
    _

</llo_original>
